<compile_context>
chip_gen: v6e
topology: v6e:2x2x1
jax: 0.10.0
libtpu: 0.0.40
codegen_flags: <defaults>
</compile_context>

<pallas_src>
import functools

import numpy as np
import jax
import jax.numpy as jnp
from jax.experimental import pallas as pl
from jax.experimental.pallas import tpu as pltpu


_DEFAULT_BT = 128                      # batch tile (sweep 64-256 per generation)
_DEFAULT_VMEM_LIMIT = 48 * 1024 * 1024  # fits v5e/v6e/v7x; raise on v6e for bt=256


def _round_up(a, b):
    return ((a + b - 1) // b) * b


# --------------------------- host-side weight packing ------------------------


def _toeplitz_conv_weight(w, in_w, out_w):
    """PyTorch conv weight (OC, IC, KH, KW) -> (KH, in_w*IC, out_w*OC).

    Row index = v*IC + ic (input width pos, input channel); col index =
    q*OC + oc (output width pos, output channel).  Contracting an activation
    slab (rows, in_w*IC) with slice kh=i computes the kh=i term of a valid
    stride-1 convolution for every output width position in one matmul.
    """
    oc, ic, kh, kw = w.shape
    wt = np.transpose(np.asarray(w, np.float32), (2, 3, 1, 0))  # (kh, kw, ic, oc)
    t = np.zeros((kh, in_w, ic, out_w, oc), np.float32)
    for j in range(kw):
        for q in range(out_w):
            t[:, q + j, :, q, :] = wt[:, j, :, :]
    return t.reshape(kh, in_w * ic, out_w * oc)


def _pool_select(out_w, c, parity):
    """(2*out_w*c, out_w*c) 0/1 matrix selecting width positions 2q+parity."""
    s = np.zeros((2 * out_w * c, out_w * c), np.float32)
    for q in range(out_w):
        for k in range(c):
            s[(2 * q + parity) * c + k, q * c + k] = 1.0
    return s


def prepare_params(params):
    """One-time packing of PyTorch-layout params into kernel-ready arrays.

    Matmul operands (Toeplitz / selector / fc weights) are stored in bf16;
    biases stay f32 (added to f32 accumulators).  fc3 weight/bias are padded
    to 128 output lanes for a lane-dense output store.
    """
    w1 = np.asarray(params["conv1_w"], np.float32)
    b1 = np.asarray(params["conv1_b"], np.float32)
    w2 = np.asarray(params["conv2_w"], np.float32)
    b2 = np.asarray(params["conv2_b"], np.float32)
    fc1_w = np.asarray(params["fc1_w"], np.float32)   # (120, 400), cols = c*25+h*5+w
    fc1_b = np.asarray(params["fc1_b"], np.float32)
    fc2_w = np.asarray(params["fc2_w"], np.float32)   # (84, 120)
    fc2_b = np.asarray(params["fc2_b"], np.float32)
    fc3_w = np.asarray(params["fc3_w"], np.float32)   # (10, 84)
    fc3_b = np.asarray(params["fc3_b"], np.float32)

    # fc1 weight reordered to match the in-kernel feature layout: per spatial
    # row h a (W*C, 120) block with lane order (w, c).
    fc1_r = fc1_w.reshape(120, 16, 5, 5).transpose(2, 3, 1, 0).reshape(5, 80, 120)

    # fc3 padded to 128 output lanes (cols 10..127 zero).
    w5_pad = np.zeros((84, 128), np.float32)
    w5_pad[:, :10] = fc3_w.T
    b5_pad = np.zeros((1, 128), np.float32)
    b5_pad[0, :10] = fc3_b

    bf16_arrays = {
        "t1":  _toeplitz_conv_weight(w1, 32, 28),          # (5, 96, 168)
        "s1e": _pool_select(14, 6, 0),                      # (168, 84)
        "s1o": _pool_select(14, 6, 1),
        "t2":  _toeplitz_conv_weight(w2, 14, 10),           # (5, 84, 160)
        "s2e": _pool_select(5, 16, 0),                      # (160, 80)
        "s2o": _pool_select(5, 16, 1),
        "w3":  fc1_r,                                       # (5, 80, 120)
        "w4":  fc2_w.T,                                     # (120, 84)
        "w5":  w5_pad,                                      # (84, 128)
    }
    f32_arrays = {
        "b1":  np.tile(b1, 28)[None, :],                    # (1, 168)
        "b2":  np.tile(b2, 10)[None, :],                    # (1, 160)
        "b3":  fc1_b[None, :],                              # (1, 120)
        "b4":  fc2_b[None, :],                              # (1, 84)
        "b5":  b5_pad,                                      # (1, 128)
    }
    packed = {k: jnp.asarray(v, jnp.bfloat16) for k, v in bf16_arrays.items()}
    packed.update({k: jnp.asarray(v, jnp.float32) for k, v in f32_arrays.items()})
    return packed


# --------------------------------- kernel ------------------------------------


def _lenet_fused_kernel(x_ref, t1_ref, b1_ref, s1e_ref, s1o_ref,
                        t2_ref, b2_ref, s2e_ref, s2o_ref,
                        w3_ref, b3_ref, w4_ref, b4_ref, w5_ref, b5_ref,
                        o_ref, *, bt):
    f32 = jnp.float32
    bf16 = jnp.bfloat16
    x = x_ref[...]                                        # (32, bt, 96) bf16

    # ---- conv1: 3->6, 5x5 valid, as 5 Toeplitz matmuls over kernel rows ----
    acc1 = jnp.dot(x[0:28].reshape(28 * bt, 96), t1_ref[0],
                   preferred_element_type=f32)
    for i in range(1, 5):
        acc1 = acc1 + jnp.dot(x[i:i + 28].reshape(28 * bt, 96), t1_ref[i],
                              preferred_element_type=f32)
    a1 = jnp.maximum(acc1 + b1_ref[...], 0.0)             # f32 (28*bt, 28*6)

    # ---- maxpool 2x2: rows (H) via aligned reshape+max (f32, exact), cols (W)
    # ---- via even/odd 0/1 lane-selection matmuls + max ---------------------
    a1 = a1.reshape(14, 2, bt, 168)
    a1 = jnp.maximum(a1[:, 0], a1[:, 1]).reshape(14 * bt, 168)
    a1 = a1.astype(bf16)
    p1 = jnp.maximum(
        jnp.dot(a1, s1e_ref[...], preferred_element_type=f32),
        jnp.dot(a1, s1o_ref[...], preferred_element_type=f32))
    p1 = p1.astype(bf16).reshape(14, bt, 84)              # (H=14, B, W*C=14*6)

    # ---- conv2: 6->16, 5x5 valid ----
    acc2 = jnp.dot(p1[0:10].reshape(10 * bt, 84), t2_ref[0],
                   preferred_element_type=f32)
    for i in range(1, 5):
        acc2 = acc2 + jnp.dot(p1[i:i + 10].reshape(10 * bt, 84), t2_ref[i],
                              preferred_element_type=f32)
    a2 = jnp.maximum(acc2 + b2_ref[...], 0.0)             # f32 (10*bt, 10*16)

    a2 = a2.reshape(5, 2, bt, 160)
    a2 = jnp.maximum(a2[:, 0], a2[:, 1]).reshape(5 * bt, 160)
    a2 = a2.astype(bf16)
    p2 = jnp.maximum(
        jnp.dot(a2, s2e_ref[...], preferred_element_type=f32),
        jnp.dot(a2, s2o_ref[...], preferred_element_type=f32))
    p2 = p2.astype(bf16).reshape(5, bt, 80)               # (H=5, B, W*C=5*16)

    # ---- fc1 as 5 per-spatial-row matmuls (no in-kernel transpose), then
    # ---- fc2 / fc3 (fc3 lane-padded to 128), all resident in VMEM ----------
    acc3 = jnp.dot(p2[0], w3_ref[0], preferred_element_type=f32)
    for h in range(1, 5):
        acc3 = acc3 + jnp.dot(p2[h], w3_ref[h], preferred_element_type=f32)
    h1 = jnp.maximum(acc3 + b3_ref[...], 0.0).astype(bf16)        # (bt, 120)
    h2 = jnp.maximum(jnp.dot(h1, w4_ref[...], preferred_element_type=f32)
                     + b4_ref[...], 0.0).astype(bf16)             # (bt, 84)
    out = jnp.dot(h2, w5_ref[...], preferred_element_type=f32) + b5_ref[...]
    o_ref[...] = out.astype(o_ref.dtype)                          # (bt, 128)


# --------------------------------- wrapper -----------------------------------


def net_forward(packed, x, *, block_batch=_DEFAULT_BT,
                vmem_limit_bytes=_DEFAULT_VMEM_LIMIT):
    """x: (N, 3, 32, 32) f32 (NCHW, like the PyTorch module) -> (N, 10) f32."""
    n, c, h, w = x.shape
    assert (c, h, w) == (3, 32, 32), "Net requires 3x32x32 inputs (CIFAR-10)."

    # Batch tile: multiple of 16 so every bf16 sublane split in the kernel is
    # tile-aligned; clamp to the (padded) batch for small inputs.
    block_batch = _round_up(max(int(block_batch), 16), 16)
    bt = min(block_batch, _round_up(n, 16))
    n_pad = _round_up(n, bt)
    assert bt % 16 == 0 and n_pad % bt == 0

    # Cast to bf16 BEFORE the relayout: halves the extra HBM pass and the
    # kernel's input DMA bytes.
    xb = x.astype(jnp.bfloat16)
    if n_pad != n:
        xb = jnp.pad(xb, ((0, n_pad - n), (0, 0), (0, 0), (0, 0)))
    # NCHW -> (H, N, W*C) with channels innermost in the lane dim; done once on
    # the input, everything downstream stays in this layout inside the kernel.
    # TODO(synk): fold this relayout into the kernel (read the NCHW tile and
    # relayout in VMEM) to remove the remaining extra HBM pass.
    x_t = xb.transpose(2, 0, 3, 1).reshape(32, n_pad, 96)

    def wspec(shape):
        return pl.BlockSpec(shape, lambda b, _nd=len(shape): (0,) * _nd)

    # Advisory cost estimate so XLA overlaps the relayout/pad/slice with the kernel.
    macs_per_sample = (5 * 28 * 96 * 168      # conv1 Toeplitz matmuls
                       + 2 * 14 * 168 * 84    # pool1 selectors
                       + 5 * 10 * 84 * 160    # conv2
                       + 2 * 5 * 160 * 80     # pool2 selectors
                       + 5 * 80 * 120         # fc1
                       + 120 * 84 + 84 * 128)  # fc2, fc3 (lane-padded)
    weight_bytes = sum(int(np.prod(v.shape)) * v.dtype.itemsize
                       for v in packed.values())
    cost = pl.CostEstimate(
        flops=2 * macs_per_sample * n_pad,
        transcendentals=0,
        bytes_accessed=int(np.prod(x_t.shape)) * 2 + n_pad * 128 * 4 + weight_bytes)

    kernel = functools.partial(_lenet_fused_kernel, bt=bt)
    out = pl.pallas_call(
        kernel,
        out_shape=jax.ShapeDtypeStruct((n_pad, 128), jnp.float32),
        grid=(n_pad // bt,),
        in_specs=[
            pl.BlockSpec((32, bt, 96), lambda b: (0, b, 0)),  # input batch tile
            wspec((5, 96, 168)), wspec((1, 168)),             # conv1
            wspec((168, 84)), wspec((168, 84)),               # pool1 selectors
            wspec((5, 84, 160)), wspec((1, 160)),             # conv2
            wspec((160, 80)), wspec((160, 80)),               # pool2 selectors
            wspec((5, 80, 120)), wspec((1, 120)),             # fc1
            wspec((120, 84)), wspec((1, 84)),                 # fc2
            wspec((84, 128)), wspec((1, 128)),                # fc3 (lane-padded)
        ],
        out_specs=pl.BlockSpec((bt, 128), lambda b: (b, 0)),
        compiler_params=pltpu.CompilerParams(
            dimension_semantics=("parallel",),
            vmem_limit_bytes=int(vmem_limit_bytes)),
        cost_estimate=cost,
    )(x_t,
      packed["t1"], packed["b1"], packed["s1e"], packed["s1o"],
      packed["t2"], packed["b2"], packed["s2e"], packed["s2o"],
      packed["w3"], packed["b3"], packed["w4"], packed["b4"],
      packed["w5"], packed["b5"])
    return out[:n, :10]


# --------------------------- pure-JAX reference -------------------------------


def net_reference(params, x):
    """Straight XLA implementation of the PyTorch module (for validation)."""
    dn = ("NCHW", "OIHW", "NCHW")
    y = jax.lax.conv_general_dilated(x, params["conv1_w"], (1, 1), "VALID",
                                     dimension_numbers=dn)
    y = jax.nn.relu(y + params["conv1_b"][None, :, None, None])
    y = jax.lax.reduce_window(y, -jnp.inf, jax.lax.max,
                              (1, 1, 2, 2), (1, 1, 2, 2), "VALID")
    y = jax.lax.conv_general_dilated(y, params["conv2_w"], (1, 1), "VALID",
                                     dimension_numbers=dn)
    y = jax.nn.relu(y + params["conv2_b"][None, :, None, None])
    y = jax.lax.reduce_window(y, -jnp.inf, jax.lax.max,
                              (1, 1, 2, 2), (1, 1, 2, 2), "VALID")
    y = y.reshape(y.shape[0], -1)                       # (N, 16*5*5), (c,h,w) order
    y = jax.nn.relu(y @ params["fc1_w"].T + params["fc1_b"])
    y = jax.nn.relu(y @ params["fc2_w"].T + params["fc2_b"])
    return y @ params["fc3_w"].T + params["fc3_b"]


# ------------------------------ parameters -----------------------------------


def init_params(key):
    """Deterministic synthetic parameters with PyTorch-default-style uniform init."""
    def uniform(key, shape, fan_in):
        bound = 1.0 / jnp.sqrt(jnp.float32(fan_in))
        return jax.random.uniform(key, shape, jnp.float32, -bound, bound)

    keys = jax.random.split(key, 10)
    p = {}
    p["conv1_w"] = uniform(keys[0], (6, 3, 5, 5), 3 * 5 * 5)
    p["conv1_b"] = uniform(keys[1], (6,), 3 * 5 * 5)
    p["conv2_w"] = uniform(keys[2], (16, 6, 5, 5), 6 * 5 * 5)
    p["conv2_b"] = uniform(keys[3], (16,), 6 * 5 * 5)
    p["fc1_w"] = uniform(keys[4], (120, 400), 400)
    p["fc1_b"] = uniform(keys[5], (120,), 400)
    p["fc2_w"] = uniform(keys[6], (84, 120), 120)
    p["fc2_b"] = uniform(keys[7], (84,), 120)
    p["fc3_w"] = uniform(keys[8], (10, 84), 84)
    p["fc3_b"] = uniform(keys[9], (10,), 84)
    return p


if __name__ == "__main__":
    key = jax.random.PRNGKey(0)
    k_param, k_x = jax.random.split(key)
    params = init_params(k_param)
    packed = prepare_params(params)          # one-time host-side weight packing
    # Spatial size must be 32x32 so that 16*5*5 matches fc1 (same as CIFAR-10).
    x = jax.random.normal(k_x, (2, 3, 32, 32), jnp.float32)  # NCHW
    logits = jax.jit(net_forward)(packed, x)
    jax.block_until_ready(logits)
    assert logits.shape == (2, 10) and logits.dtype == jnp.float32
    # Numerical check against the pure-JAX reference (bf16 MXU operands =>
    # small expected deviation; tolerances are ~5-10x above that noise).
    ref = jax.jit(net_reference)(params, x)
    np.testing.assert_allclose(np.asarray(logits), np.asarray(ref),
                               rtol=0.05, atol=0.05)
    print("KERNEL_OK")
</pallas_src>

<mosaic_0001>
module attributes {stable_mosaic.version = 11 : i64} {
  func.func @_lenet_fused_kernel(%arg0: i32, %arg1: memref<32x16x96xbf16, #tpu.memory_space<vmem>>, %arg2: memref<5x96x168xbf16, #tpu.memory_space<vmem>>, %arg3: memref<1x168xf32, #tpu.memory_space<vmem>>, %arg4: memref<168x84xbf16, #tpu.memory_space<vmem>>, %arg5: memref<168x84xbf16, #tpu.memory_space<vmem>>, %arg6: memref<5x84x160xbf16, #tpu.memory_space<vmem>>, %arg7: memref<1x160xf32, #tpu.memory_space<vmem>>, %arg8: memref<160x80xbf16, #tpu.memory_space<vmem>>, %arg9: memref<160x80xbf16, #tpu.memory_space<vmem>>, %arg10: memref<5x80x120xbf16, #tpu.memory_space<vmem>>, %arg11: memref<1x120xf32, #tpu.memory_space<vmem>>, %arg12: memref<120x84xbf16, #tpu.memory_space<vmem>>, %arg13: memref<1x84xf32, #tpu.memory_space<vmem>>, %arg14: memref<84x128xbf16, #tpu.memory_space<vmem>>, %arg15: memref<1x128xf32, #tpu.memory_space<vmem>>, %arg16: memref<16x128xf32, #tpu.memory_space<vmem>>) attributes {dimension_semantics = [#tpu.dimension_semantics<parallel>], iteration_bounds = array<i64: 1>, scalar_prefetch = 0 : i64, scratch_operands = 0 : i64, tpu.core_type = #tpu.core_type<tc>, window_params = [{transform_indices = @transform_0, window_bounds = array<i64: 32, 16, 96>}, {pipeline_mode = #tpu.pipeline_mode<synchronous>, transform_indices = @transform_1, window_bounds = array<i64: 5, 96, 168>}, {pipeline_mode = #tpu.pipeline_mode<synchronous>, transform_indices = @transform_2, window_bounds = array<i64: 1, 168>}, {pipeline_mode = #tpu.pipeline_mode<synchronous>, transform_indices = @transform_3, window_bounds = array<i64: 168, 84>}, {pipeline_mode = #tpu.pipeline_mode<synchronous>, transform_indices = @transform_4, window_bounds = array<i64: 168, 84>}, {pipeline_mode = #tpu.pipeline_mode<synchronous>, transform_indices = @transform_5, window_bounds = array<i64: 5, 84, 160>}, {pipeline_mode = #tpu.pipeline_mode<synchronous>, transform_indices = @transform_6, window_bounds = array<i64: 1, 160>}, {pipeline_mode = #tpu.pipeline_mode<synchronous>, transform_indices = @transform_7, window_bounds = array<i64: 160, 80>}, {pipeline_mode = #tpu.pipeline_mode<synchronous>, transform_indices = @transform_8, window_bounds = array<i64: 160, 80>}, {pipeline_mode = #tpu.pipeline_mode<synchronous>, transform_indices = @transform_9, window_bounds = array<i64: 5, 80, 120>}, {pipeline_mode = #tpu.pipeline_mode<synchronous>, transform_indices = @transform_10, window_bounds = array<i64: 1, 120>}, {pipeline_mode = #tpu.pipeline_mode<synchronous>, transform_indices = @transform_11, window_bounds = array<i64: 120, 84>}, {pipeline_mode = #tpu.pipeline_mode<synchronous>, transform_indices = @transform_12, window_bounds = array<i64: 1, 84>}, {pipeline_mode = #tpu.pipeline_mode<synchronous>, transform_indices = @transform_13, window_bounds = array<i64: 84, 128>}, {pipeline_mode = #tpu.pipeline_mode<synchronous>, transform_indices = @transform_14, window_bounds = array<i64: 1, 128>}, {transform_indices = @transform_15, window_bounds = array<i64: 16, 128>}]} {
    %c0 = arith.constant 0 : index
    %c0_0 = arith.constant 0 : index
    %c0_1 = arith.constant 0 : index
    %0 = vector.load %arg1[%c0, %c0_0, %c0_1] : memref<32x16x96xbf16, #tpu.memory_space<vmem>>, vector<32x16x96xbf16>
    %1 = vector.extract_strided_slice %0 {offsets = [0, 0, 0], sizes = [28, 16, 96], strides = [1, 1, 1]} : vector<32x16x96xbf16> to vector<28x16x96xbf16>
    %2 = vector.shape_cast %1 : vector<28x16x96xbf16> to vector<448x96xbf16>
    %c0_2 = arith.constant 0 : index
    %c0_3 = arith.constant 0 : index
    %c0_4 = arith.constant 0 : index
    %3 = vector.load %arg2[%c0_2, %c0_3, %c0_4] : memref<5x96x168xbf16, #tpu.memory_space<vmem>>, vector<1x96x168xbf16>
    %4 = vector.shape_cast %3 : vector<1x96x168xbf16> to vector<96x168xbf16>
    %cst = arith.constant dense<0.000000e+00> : vector<448x168xf32>
    %5 = tpu.matmul %2, %4, %cst {dimension_numbers = #tpu.dot_dimension_numbers<[1], [0], [0], [1], [0, 0, 1, 1], [], []>} : vector<448x96xbf16>, vector<96x168xbf16>, vector<448x168xf32> -> vector<448x168xf32>
    %6 = vector.extract_strided_slice %0 {offsets = [1, 0, 0], sizes = [28, 16, 96], strides = [1, 1, 1]} : vector<32x16x96xbf16> to vector<28x16x96xbf16>
    %7 = vector.shape_cast %6 : vector<28x16x96xbf16> to vector<448x96xbf16>
    %c1 = arith.constant 1 : index
    %c0_5 = arith.constant 0 : index
    %c0_6 = arith.constant 0 : index
    %8 = vector.load %arg2[%c1, %c0_5, %c0_6] : memref<5x96x168xbf16, #tpu.memory_space<vmem>>, vector<1x96x168xbf16>
    %9 = vector.shape_cast %8 : vector<1x96x168xbf16> to vector<96x168xbf16>
    %cst_7 = arith.constant dense<0.000000e+00> : vector<448x168xf32>
    %10 = tpu.matmul %7, %9, %cst_7 {dimension_numbers = #tpu.dot_dimension_numbers<[1], [0], [0], [1], [0, 0, 1, 1], [], []>} : vector<448x96xbf16>, vector<96x168xbf16>, vector<448x168xf32> -> vector<448x168xf32>
    %11 = arith.addf %5, %10 : vector<448x168xf32>
    %12 = vector.extract_strided_slice %0 {offsets = [2, 0, 0], sizes = [28, 16, 96], strides = [1, 1, 1]} : vector<32x16x96xbf16> to vector<28x16x96xbf16>
    %13 = vector.shape_cast %12 : vector<28x16x96xbf16> to vector<448x96xbf16>
    %c2 = arith.constant 2 : index
    %c0_8 = arith.constant 0 : index
    %c0_9 = arith.constant 0 : index
    %14 = vector.load %arg2[%c2, %c0_8, %c0_9] : memref<5x96x168xbf16, #tpu.memory_space<vmem>>, vector<1x96x168xbf16>
    %15 = vector.shape_cast %14 : vector<1x96x168xbf16> to vector<96x168xbf16>
    %cst_10 = arith.constant dense<0.000000e+00> : vector<448x168xf32>
    %16 = tpu.matmul %13, %15, %cst_10 {dimension_numbers = #tpu.dot_dimension_numbers<[1], [0], [0], [1], [0, 0, 1, 1], [], []>} : vector<448x96xbf16>, vector<96x168xbf16>, vector<448x168xf32> -> vector<448x168xf32>
    %17 = arith.addf %11, %16 : vector<448x168xf32>
    %18 = vector.extract_strided_slice %0 {offsets = [3, 0, 0], sizes = [28, 16, 96], strides = [1, 1, 1]} : vector<32x16x96xbf16> to vector<28x16x96xbf16>
    %19 = vector.shape_cast %18 : vector<28x16x96xbf16> to vector<448x96xbf16>
    %c3 = arith.constant 3 : index
    %c0_11 = arith.constant 0 : index
    %c0_12 = arith.constant 0 : index
    %20 = vector.load %arg2[%c3, %c0_11, %c0_12] : memref<5x96x168xbf16, #tpu.memory_space<vmem>>, vector<1x96x168xbf16>
    %21 = vector.shape_cast %20 : vector<1x96x168xbf16> to vector<96x168xbf16>
    %cst_13 = arith.constant dense<0.000000e+00> : vector<448x168xf32>
    %22 = tpu.matmul %19, %21, %cst_13 {dimension_numbers = #tpu.dot_dimension_numbers<[1], [0], [0], [1], [0, 0, 1, 1], [], []>} : vector<448x96xbf16>, vector<96x168xbf16>, vector<448x168xf32> -> vector<448x168xf32>
    %23 = arith.addf %17, %22 : vector<448x168xf32>
    %24 = vector.extract_strided_slice %0 {offsets = [4, 0, 0], sizes = [28, 16, 96], strides = [1, 1, 1]} : vector<32x16x96xbf16> to vector<28x16x96xbf16>
    %25 = vector.shape_cast %24 : vector<28x16x96xbf16> to vector<448x96xbf16>
    %c4 = arith.constant 4 : index
    %c0_14 = arith.constant 0 : index
    %c0_15 = arith.constant 0 : index
    %26 = vector.load %arg2[%c4, %c0_14, %c0_15] : memref<5x96x168xbf16, #tpu.memory_space<vmem>>, vector<1x96x168xbf16>
    %27 = vector.shape_cast %26 : vector<1x96x168xbf16> to vector<96x168xbf16>
    %cst_16 = arith.constant dense<0.000000e+00> : vector<448x168xf32>
    %28 = tpu.matmul %25, %27, %cst_16 {dimension_numbers = #tpu.dot_dimension_numbers<[1], [0], [0], [1], [0, 0, 1, 1], [], []>} : vector<448x96xbf16>, vector<96x168xbf16>, vector<448x168xf32> -> vector<448x168xf32>
    %29 = arith.addf %23, %28 : vector<448x168xf32>
    %c0_17 = arith.constant 0 : index
    %c0_18 = arith.constant 0 : index
    %30 = vector.load %arg3[%c0_17, %c0_18] : memref<1x168xf32, #tpu.memory_space<vmem>>, vector<1x168xf32>
    %31 = vector.broadcast %30 : vector<1x168xf32> to vector<448x168xf32>
    %32 = arith.addf %29, %31 : vector<448x168xf32>
    %cst_19 = arith.constant 0.000000e+00 : f32
    %33 = vector.broadcast %cst_19 : f32 to vector<448x168xf32>
    %34 = arith.maximumf %32, %33 : vector<448x168xf32>
    %35 = vector.shape_cast %34 : vector<448x168xf32> to vector<14x2x16x168xf32>
    %36 = vector.extract_strided_slice %35 {offsets = [0, 0, 0, 0], sizes = [14, 1, 16, 168], strides = [1, 1, 1, 1]} : vector<14x2x16x168xf32> to vector<14x1x16x168xf32>
    %37 = vector.shape_cast %36 : vector<14x1x16x168xf32> to vector<14x16x168xf32>
    %38 = vector.extract_strided_slice %35 {offsets = [0, 1, 0, 0], sizes = [14, 1, 16, 168], strides = [1, 1, 1, 1]} : vector<14x2x16x168xf32> to vector<14x1x16x168xf32>
    %39 = vector.shape_cast %38 : vector<14x1x16x168xf32> to vector<14x16x168xf32>
    %40 = arith.maximumf %37, %39 : vector<14x16x168xf32>
    %41 = vector.shape_cast %40 : vector<14x16x168xf32> to vector<224x168xf32>
    %42 = arith.truncf %41 : vector<224x168xf32> to vector<224x168xbf16>
    %c0_20 = arith.constant 0 : index
    %c0_21 = arith.constant 0 : index
    %43 = vector.load %arg4[%c0_20, %c0_21] : memref<168x84xbf16, #tpu.memory_space<vmem>>, vector<168x84xbf16>
    %cst_22 = arith.constant dense<0.000000e+00> : vector<224x84xf32>
    %44 = tpu.matmul %42, %43, %cst_22 {dimension_numbers = #tpu.dot_dimension_numbers<[1], [0], [0], [1], [0, 0, 1, 1], [], []>} : vector<224x168xbf16>, vector<168x84xbf16>, vector<224x84xf32> -> vector<224x84xf32>
    %c0_23 = arith.constant 0 : index
    %c0_24 = arith.constant 0 : index
    %45 = vector.load %arg5[%c0_23, %c0_24] : memref<168x84xbf16, #tpu.memory_space<vmem>>, vector<168x84xbf16>
    %cst_25 = arith.constant dense<0.000000e+00> : vector<224x84xf32>
    %46 = tpu.matmul %42, %45, %cst_25 {dimension_numbers = #tpu.dot_dimension_numbers<[1], [0], [0], [1], [0, 0, 1, 1], [], []>} : vector<224x168xbf16>, vector<168x84xbf16>, vector<224x84xf32> -> vector<224x84xf32>
    %47 = arith.maximumf %44, %46 : vector<224x84xf32>
    %48 = arith.truncf %47 : vector<224x84xf32> to vector<224x84xbf16>
    %49 = vector.shape_cast %48 : vector<224x84xbf16> to vector<14x16x84xbf16>
    %50 = vector.extract_strided_slice %49 {offsets = [0, 0, 0], sizes = [10, 16, 84], strides = [1, 1, 1]} : vector<14x16x84xbf16> to vector<10x16x84xbf16>
    %51 = vector.shape_cast %50 : vector<10x16x84xbf16> to vector<160x84xbf16>
    %c0_26 = arith.constant 0 : index
    %c0_27 = arith.constant 0 : index
    %c0_28 = arith.constant 0 : index
    %52 = vector.load %arg6[%c0_26, %c0_27, %c0_28] : memref<5x84x160xbf16, #tpu.memory_space<vmem>>, vector<1x84x160xbf16>
    %53 = vector.shape_cast %52 : vector<1x84x160xbf16> to vector<84x160xbf16>
    %cst_29 = arith.constant dense<0.000000e+00> : vector<160x160xf32>
    %54 = tpu.matmul %51, %53, %cst_29 {dimension_numbers = #tpu.dot_dimension_numbers<[1], [0], [0], [1], [0, 0, 1, 1], [], []>} : vector<160x84xbf16>, vector<84x160xbf16>, vector<160x160xf32> -> vector<160x160xf32>
    %55 = vector.extract_strided_slice %49 {offsets = [1, 0, 0], sizes = [10, 16, 84], strides = [1, 1, 1]} : vector<14x16x84xbf16> to vector<10x16x84xbf16>
    %56 = vector.shape_cast %55 : vector<10x16x84xbf16> to vector<160x84xbf16>
    %c1_30 = arith.constant 1 : index
    %c0_31 = arith.constant 0 : index
    %c0_32 = arith.constant 0 : index
    %57 = vector.load %arg6[%c1_30, %c0_31, %c0_32] : memref<5x84x160xbf16, #tpu.memory_space<vmem>>, vector<1x84x160xbf16>
    %58 = vector.shape_cast %57 : vector<1x84x160xbf16> to vector<84x160xbf16>
    %cst_33 = arith.constant dense<0.000000e+00> : vector<160x160xf32>
    %59 = tpu.matmul %56, %58, %cst_33 {dimension_numbers = #tpu.dot_dimension_numbers<[1], [0], [0], [1], [0, 0, 1, 1], [], []>} : vector<160x84xbf16>, vector<84x160xbf16>, vector<160x160xf32> -> vector<160x160xf32>
    %60 = arith.addf %54, %59 : vector<160x160xf32>
    %61 = vector.extract_strided_slice %49 {offsets = [2, 0, 0], sizes = [10, 16, 84], strides = [1, 1, 1]} : vector<14x16x84xbf16> to vector<10x16x84xbf16>
    %62 = vector.shape_cast %61 : vector<10x16x84xbf16> to vector<160x84xbf16>
    %c2_34 = arith.constant 2 : index
    %c0_35 = arith.constant 0 : index
    %c0_36 = arith.constant 0 : index
    %63 = vector.load %arg6[%c2_34, %c0_35, %c0_36] : memref<5x84x160xbf16, #tpu.memory_space<vmem>>, vector<1x84x160xbf16>
    %64 = vector.shape_cast %63 : vector<1x84x160xbf16> to vector<84x160xbf16>
    %cst_37 = arith.constant dense<0.000000e+00> : vector<160x160xf32>
    %65 = tpu.matmul %62, %64, %cst_37 {dimension_numbers = #tpu.dot_dimension_numbers<[1], [0], [0], [1], [0, 0, 1, 1], [], []>} : vector<160x84xbf16>, vector<84x160xbf16>, vector<160x160xf32> -> vector<160x160xf32>
    %66 = arith.addf %60, %65 : vector<160x160xf32>
    %67 = vector.extract_strided_slice %49 {offsets = [3, 0, 0], sizes = [10, 16, 84], strides = [1, 1, 1]} : vector<14x16x84xbf16> to vector<10x16x84xbf16>
    %68 = vector.shape_cast %67 : vector<10x16x84xbf16> to vector<160x84xbf16>
    %c3_38 = arith.constant 3 : index
    %c0_39 = arith.constant 0 : index
    %c0_40 = arith.constant 0 : index
    %69 = vector.load %arg6[%c3_38, %c0_39, %c0_40] : memref<5x84x160xbf16, #tpu.memory_space<vmem>>, vector<1x84x160xbf16>
    %70 = vector.shape_cast %69 : vector<1x84x160xbf16> to vector<84x160xbf16>
    %cst_41 = arith.constant dense<0.000000e+00> : vector<160x160xf32>
    %71 = tpu.matmul %68, %70, %cst_41 {dimension_numbers = #tpu.dot_dimension_numbers<[1], [0], [0], [1], [0, 0, 1, 1], [], []>} : vector<160x84xbf16>, vector<84x160xbf16>, vector<160x160xf32> -> vector<160x160xf32>
    %72 = arith.addf %66, %71 : vector<160x160xf32>
    %73 = vector.extract_strided_slice %49 {offsets = [4, 0, 0], sizes = [10, 16, 84], strides = [1, 1, 1]} : vector<14x16x84xbf16> to vector<10x16x84xbf16>
    %74 = vector.shape_cast %73 : vector<10x16x84xbf16> to vector<160x84xbf16>
    %c4_42 = arith.constant 4 : index
    %c0_43 = arith.constant 0 : index
    %c0_44 = arith.constant 0 : index
    %75 = vector.load %arg6[%c4_42, %c0_43, %c0_44] : memref<5x84x160xbf16, #tpu.memory_space<vmem>>, vector<1x84x160xbf16>
    %76 = vector.shape_cast %75 : vector<1x84x160xbf16> to vector<84x160xbf16>
    %cst_45 = arith.constant dense<0.000000e+00> : vector<160x160xf32>
    %77 = tpu.matmul %74, %76, %cst_45 {dimension_numbers = #tpu.dot_dimension_numbers<[1], [0], [0], [1], [0, 0, 1, 1], [], []>} : vector<160x84xbf16>, vector<84x160xbf16>, vector<160x160xf32> -> vector<160x160xf32>
    %78 = arith.addf %72, %77 : vector<160x160xf32>
    %c0_46 = arith.constant 0 : index
    %c0_47 = arith.constant 0 : index
    %79 = vector.load %arg7[%c0_46, %c0_47] : memref<1x160xf32, #tpu.memory_space<vmem>>, vector<1x160xf32>
    %80 = vector.broadcast %79 : vector<1x160xf32> to vector<160x160xf32>
    %81 = arith.addf %78, %80 : vector<160x160xf32>
    %cst_48 = arith.constant 0.000000e+00 : f32
    %82 = vector.broadcast %cst_48 : f32 to vector<160x160xf32>
    %83 = arith.maximumf %81, %82 : vector<160x160xf32>
    %84 = vector.shape_cast %83 : vector<160x160xf32> to vector<5x2x16x160xf32>
    %85 = vector.extract_strided_slice %84 {offsets = [0, 0, 0, 0], sizes = [5, 1, 16, 160], strides = [1, 1, 1, 1]} : vector<5x2x16x160xf32> to vector<5x1x16x160xf32>
    %86 = vector.shape_cast %85 : vector<5x1x16x160xf32> to vector<5x16x160xf32>
    %87 = vector.extract_strided_slice %84 {offsets = [0, 1, 0, 0], sizes = [5, 1, 16, 160], strides = [1, 1, 1, 1]} : vector<5x2x16x160xf32> to vector<5x1x16x160xf32>
    %88 = vector.shape_cast %87 : vector<5x1x16x160xf32> to vector<5x16x160xf32>
    %89 = arith.maximumf %86, %88 : vector<5x16x160xf32>
    %90 = vector.shape_cast %89 : vector<5x16x160xf32> to vector<80x160xf32>
    %91 = arith.truncf %90 : vector<80x160xf32> to vector<80x160xbf16>
    %c0_49 = arith.constant 0 : index
    %c0_50 = arith.constant 0 : index
    %92 = vector.load %arg8[%c0_49, %c0_50] : memref<160x80xbf16, #tpu.memory_space<vmem>>, vector<160x80xbf16>
    %cst_51 = arith.constant dense<0.000000e+00> : vector<80x80xf32>
    %93 = tpu.matmul %91, %92, %cst_51 {dimension_numbers = #tpu.dot_dimension_numbers<[1], [0], [0], [1], [0, 0, 1, 1], [], []>} : vector<80x160xbf16>, vector<160x80xbf16>, vector<80x80xf32> -> vector<80x80xf32>
    %c0_52 = arith.constant 0 : index
    %c0_53 = arith.constant 0 : index
    %94 = vector.load %arg9[%c0_52, %c0_53] : memref<160x80xbf16, #tpu.memory_space<vmem>>, vector<160x80xbf16>
    %cst_54 = arith.constant dense<0.000000e+00> : vector<80x80xf32>
    %95 = tpu.matmul %91, %94, %cst_54 {dimension_numbers = #tpu.dot_dimension_numbers<[1], [0], [0], [1], [0, 0, 1, 1], [], []>} : vector<80x160xbf16>, vector<160x80xbf16>, vector<80x80xf32> -> vector<80x80xf32>
    %96 = arith.maximumf %93, %95 : vector<80x80xf32>
    %97 = arith.truncf %96 : vector<80x80xf32> to vector<80x80xbf16>
    %98 = vector.shape_cast %97 : vector<80x80xbf16> to vector<5x16x80xbf16>
    %99 = vector.extract_strided_slice %98 {offsets = [0, 0, 0], sizes = [1, 16, 80], strides = [1, 1, 1]} : vector<5x16x80xbf16> to vector<1x16x80xbf16>
    %100 = vector.shape_cast %99 : vector<1x16x80xbf16> to vector<16x80xbf16>
    %c0_55 = arith.constant 0 : index
    %c0_56 = arith.constant 0 : index
    %c0_57 = arith.constant 0 : index
    %101 = vector.load %arg10[%c0_55, %c0_56, %c0_57] : memref<5x80x120xbf16, #tpu.memory_space<vmem>>, vector<1x80x120xbf16>
    %102 = vector.shape_cast %101 : vector<1x80x120xbf16> to vector<80x120xbf16>
    %cst_58 = arith.constant dense<0.000000e+00> : vector<16x120xf32>
    %103 = tpu.matmul %100, %102, %cst_58 {dimension_numbers = #tpu.dot_dimension_numbers<[1], [0], [0], [1], [0, 0, 1, 1], [], []>} : vector<16x80xbf16>, vector<80x120xbf16>, vector<16x120xf32> -> vector<16x120xf32>
    %104 = vector.extract_strided_slice %98 {offsets = [1, 0, 0], sizes = [1, 16, 80], strides = [1, 1, 1]} : vector<5x16x80xbf16> to vector<1x16x80xbf16>
    %105 = vector.shape_cast %104 : vector<1x16x80xbf16> to vector<16x80xbf16>
    %c1_59 = arith.constant 1 : index
    %c0_60 = arith.constant 0 : index
    %c0_61 = arith.constant 0 : index
    %106 = vector.load %arg10[%c1_59, %c0_60, %c0_61] : memref<5x80x120xbf16, #tpu.memory_space<vmem>>, vector<1x80x120xbf16>
    %107 = vector.shape_cast %106 : vector<1x80x120xbf16> to vector<80x120xbf16>
    %cst_62 = arith.constant dense<0.000000e+00> : vector<16x120xf32>
    %108 = tpu.matmul %105, %107, %cst_62 {dimension_numbers = #tpu.dot_dimension_numbers<[1], [0], [0], [1], [0, 0, 1, 1], [], []>} : vector<16x80xbf16>, vector<80x120xbf16>, vector<16x120xf32> -> vector<16x120xf32>
    %109 = arith.addf %103, %108 : vector<16x120xf32>
    %110 = vector.extract_strided_slice %98 {offsets = [2, 0, 0], sizes = [1, 16, 80], strides = [1, 1, 1]} : vector<5x16x80xbf16> to vector<1x16x80xbf16>
    %111 = vector.shape_cast %110 : vector<1x16x80xbf16> to vector<16x80xbf16>
    %c2_63 = arith.constant 2 : index
    %c0_64 = arith.constant 0 : index
    %c0_65 = arith.constant 0 : index
    %112 = vector.load %arg10[%c2_63, %c0_64, %c0_65] : memref<5x80x120xbf16, #tpu.memory_space<vmem>>, vector<1x80x120xbf16>
    %113 = vector.shape_cast %112 : vector<1x80x120xbf16> to vector<80x120xbf16>
    %cst_66 = arith.constant dense<0.000000e+00> : vector<16x120xf32>
    %114 = tpu.matmul %111, %113, %cst_66 {dimension_numbers = #tpu.dot_dimension_numbers<[1], [0], [0], [1], [0, 0, 1, 1], [], []>} : vector<16x80xbf16>, vector<80x120xbf16>, vector<16x120xf32> -> vector<16x120xf32>
    %115 = arith.addf %109, %114 : vector<16x120xf32>
    %116 = vector.extract_strided_slice %98 {offsets = [3, 0, 0], sizes = [1, 16, 80], strides = [1, 1, 1]} : vector<5x16x80xbf16> to vector<1x16x80xbf16>
    %117 = vector.shape_cast %116 : vector<1x16x80xbf16> to vector<16x80xbf16>
    %c3_67 = arith.constant 3 : index
    %c0_68 = arith.constant 0 : index
    %c0_69 = arith.constant 0 : index
    %118 = vector.load %arg10[%c3_67, %c0_68, %c0_69] : memref<5x80x120xbf16, #tpu.memory_space<vmem>>, vector<1x80x120xbf16>
    %119 = vector.shape_cast %118 : vector<1x80x120xbf16> to vector<80x120xbf16>
    %cst_70 = arith.constant dense<0.000000e+00> : vector<16x120xf32>
    %120 = tpu.matmul %117, %119, %cst_70 {dimension_numbers = #tpu.dot_dimension_numbers<[1], [0], [0], [1], [0, 0, 1, 1], [], []>} : vector<16x80xbf16>, vector<80x120xbf16>, vector<16x120xf32> -> vector<16x120xf32>
    %121 = arith.addf %115, %120 : vector<16x120xf32>
    %122 = vector.extract_strided_slice %98 {offsets = [4, 0, 0], sizes = [1, 16, 80], strides = [1, 1, 1]} : vector<5x16x80xbf16> to vector<1x16x80xbf16>
    %123 = vector.shape_cast %122 : vector<1x16x80xbf16> to vector<16x80xbf16>
    %c4_71 = arith.constant 4 : index
    %c0_72 = arith.constant 0 : index
    %c0_73 = arith.constant 0 : index
    %124 = vector.load %arg10[%c4_71, %c0_72, %c0_73] : memref<5x80x120xbf16, #tpu.memory_space<vmem>>, vector<1x80x120xbf16>
    %125 = vector.shape_cast %124 : vector<1x80x120xbf16> to vector<80x120xbf16>
    %cst_74 = arith.constant dense<0.000000e+00> : vector<16x120xf32>
    %126 = tpu.matmul %123, %125, %cst_74 {dimension_numbers = #tpu.dot_dimension_numbers<[1], [0], [0], [1], [0, 0, 1, 1], [], []>} : vector<16x80xbf16>, vector<80x120xbf16>, vector<16x120xf32> -> vector<16x120xf32>
    %127 = arith.addf %121, %126 : vector<16x120xf32>
    %c0_75 = arith.constant 0 : index
    %c0_76 = arith.constant 0 : index
    %128 = vector.load %arg11[%c0_75, %c0_76] : memref<1x120xf32, #tpu.memory_space<vmem>>, vector<1x120xf32>
    %129 = vector.broadcast %128 : vector<1x120xf32> to vector<16x120xf32>
    %130 = arith.addf %127, %129 : vector<16x120xf32>
    %cst_77 = arith.constant 0.000000e+00 : f32
    %131 = vector.broadcast %cst_77 : f32 to vector<16x120xf32>
    %132 = arith.maximumf %130, %131 : vector<16x120xf32>
    %133 = arith.truncf %132 : vector<16x120xf32> to vector<16x120xbf16>
    %c0_78 = arith.constant 0 : index
    %c0_79 = arith.constant 0 : index
    %134 = vector.load %arg12[%c0_78, %c0_79] : memref<120x84xbf16, #tpu.memory_space<vmem>>, vector<120x84xbf16>
    %cst_80 = arith.constant dense<0.000000e+00> : vector<16x84xf32>
    %135 = tpu.matmul %133, %134, %cst_80 {dimension_numbers = #tpu.dot_dimension_numbers<[1], [0], [0], [1], [0, 0, 1, 1], [], []>} : vector<16x120xbf16>, vector<120x84xbf16>, vector<16x84xf32> -> vector<16x84xf32>
    %c0_81 = arith.constant 0 : index
    %c0_82 = arith.constant 0 : index
    %136 = vector.load %arg13[%c0_81, %c0_82] : memref<1x84xf32, #tpu.memory_space<vmem>>, vector<1x84xf32>
    %137 = vector.broadcast %136 : vector<1x84xf32> to vector<16x84xf32>
    %138 = arith.addf %135, %137 : vector<16x84xf32>
    %cst_83 = arith.constant 0.000000e+00 : f32
    %139 = vector.broadcast %cst_83 : f32 to vector<16x84xf32>
    %140 = arith.maximumf %138, %139 : vector<16x84xf32>
    %141 = arith.truncf %140 : vector<16x84xf32> to vector<16x84xbf16>
    %c0_84 = arith.constant 0 : index
    %c0_85 = arith.constant 0 : index
    %142 = vector.load %arg14[%c0_84, %c0_85] : memref<84x128xbf16, #tpu.memory_space<vmem>>, vector<84x128xbf16>
    %cst_86 = arith.constant dense<0.000000e+00> : vector<16x128xf32>
    %143 = tpu.matmul %141, %142, %cst_86 {dimension_numbers = #tpu.dot_dimension_numbers<[1], [0], [0], [1], [0, 0, 1, 1], [], []>} : vector<16x84xbf16>, vector<84x128xbf16>, vector<16x128xf32> -> vector<16x128xf32>
    %c0_87 = arith.constant 0 : index
    %c0_88 = arith.constant 0 : index
    %144 = vector.load %arg15[%c0_87, %c0_88] : memref<1x128xf32, #tpu.memory_space<vmem>>, vector<1x128xf32>
    %145 = vector.broadcast %144 : vector<1x128xf32> to vector<16x128xf32>
    %146 = arith.addf %143, %145 : vector<16x128xf32>
    %c0_89 = arith.constant 0 : index
    %c0_90 = arith.constant 0 : index
    %147 = vector.load %arg16[%c0_89, %c0_90] : memref<16x128xf32, #tpu.memory_space<vmem>>, vector<16x128xf32>
    tpu.vector_store %arg16[%c0_89, %c0_90], %146 {strides = array<i32>} : memref<16x128xf32, #tpu.memory_space<vmem>>, vector<16x128xf32>,
    return
  }
  func.func @transform_0(%arg0: i32) -> (i32, i32, i32) {
    %c0_i32 = arith.constant 0 : i32
    %c0_i32_0 = arith.constant 0 : i32
    %c0_i32_1 = arith.constant 0 : i32
    return %c0_i32, %arg0, %c0_i32_0 : i32, i32, i32
  }
  func.func @transform_1(%arg0: i32) -> (i32, i32, i32) {
    %c0_i32 = arith.constant 0 : i32
    %c0_i32_0 = arith.constant 0 : i32
    %c0_i32_1 = arith.constant 0 : i32
    %c0_i32_2 = arith.constant 0 : i32
    return %c0_i32, %c0_i32_0, %c0_i32_1 : i32, i32, i32
  }
  func.func @transform_2(%arg0: i32) -> (i32, i32) {
    %c0_i32 = arith.constant 0 : i32
    %c0_i32_0 = arith.constant 0 : i32
    %c0_i32_1 = arith.constant 0 : i32
    return %c0_i32, %c0_i32_0 : i32, i32
  }
  func.func @transform_3(%arg0: i32) -> (i32, i32) {
    %c0_i32 = arith.constant 0 : i32
    %c0_i32_0 = arith.constant 0 : i32
    %c0_i32_1 = arith.constant 0 : i32
    return %c0_i32, %c0_i32_0 : i32, i32
  }
  func.func @transform_4(%arg0: i32) -> (i32, i32) {
    %c0_i32 = arith.constant 0 : i32
    %c0_i32_0 = arith.constant 0 : i32
    %c0_i32_1 = arith.constant 0 : i32
    return %c0_i32, %c0_i32_0 : i32, i32
  }
  func.func @transform_5(%arg0: i32) -> (i32, i32, i32) {
    %c0_i32 = arith.constant 0 : i32
    %c0_i32_0 = arith.constant 0 : i32
    %c0_i32_1 = arith.constant 0 : i32
    %c0_i32_2 = arith.constant 0 : i32
    return %c0_i32, %c0_i32_0, %c0_i32_1 : i32, i32, i32
  }
  func.func @transform_6(%arg0: i32) -> (i32, i32) {
    %c0_i32 = arith.constant 0 : i32
    %c0_i32_0 = arith.constant 0 : i32
    %c0_i32_1 = arith.constant 0 : i32
    return %c0_i32, %c0_i32_0 : i32, i32
  }
  func.func @transform_7(%arg0: i32) -> (i32, i32) {
    %c0_i32 = arith.constant 0 : i32
    %c0_i32_0 = arith.constant 0 : i32
    %c0_i32_1 = arith.constant 0 : i32
    return %c0_i32, %c0_i32_0 : i32, i32
  }
  func.func @transform_8(%arg0: i32) -> (i32, i32) {
    %c0_i32 = arith.constant 0 : i32
    %c0_i32_0 = arith.constant 0 : i32
    %c0_i32_1 = arith.constant 0 : i32
    return %c0_i32, %c0_i32_0 : i32, i32
  }
  func.func @transform_9(%arg0: i32) -> (i32, i32, i32) {
    %c0_i32 = arith.constant 0 : i32
    %c0_i32_0 = arith.constant 0 : i32
    %c0_i32_1 = arith.constant 0 : i32
    %c0_i32_2 = arith.constant 0 : i32
    return %c0_i32, %c0_i32_0, %c0_i32_1 : i32, i32, i32
  }
  func.func @transform_10(%arg0: i32) -> (i32, i32) {
    %c0_i32 = arith.constant 0 : i32
    %c0_i32_0 = arith.constant 0 : i32
    %c0_i32_1 = arith.constant 0 : i32
    return %c0_i32, %c0_i32_0 : i32, i32
  }
  func.func @transform_11(%arg0: i32) -> (i32, i32) {
    %c0_i32 = arith.constant 0 : i32
    %c0_i32_0 = arith.constant 0 : i32
    %c0_i32_1 = arith.constant 0 : i32
    return %c0_i32, %c0_i32_0 : i32, i32
  }
  func.func @transform_12(%arg0: i32) -> (i32, i32) {
    %c0_i32 = arith.constant 0 : i32
    %c0_i32_0 = arith.constant 0 : i32
    %c0_i32_1 = arith.constant 0 : i32
    return %c0_i32, %c0_i32_0 : i32, i32
  }
  func.func @transform_13(%arg0: i32) -> (i32, i32) {
    %c0_i32 = arith.constant 0 : i32
    %c0_i32_0 = arith.constant 0 : i32
    %c0_i32_1 = arith.constant 0 : i32
    return %c0_i32, %c0_i32_0 : i32, i32
  }
  func.func @transform_14(%arg0: i32) -> (i32, i32) {
    %c0_i32 = arith.constant 0 : i32
    %c0_i32_0 = arith.constant 0 : i32
    %c0_i32_1 = arith.constant 0 : i32
    return %c0_i32, %c0_i32_0 : i32, i32
  }
  func.func @transform_15(%arg0: i32) -> (i32, i32) {
    %c0_i32 = arith.constant 0 : i32
    %c0_i32_0 = arith.constant 0 : i32
    return %arg0, %c0_i32 : i32, i32
  }
}

</mosaic_0001>

<llo_original>
// kernel: net_forward.1
$region0: #{net_forward.1}
  #allocation0 [shape = 'u32[]', space=smem, size = 0x4, offset = 0x4, fixed_abs, tag = 'smem constant byte address 0x4 - core index']
  #allocation1 [shape = 'u32[144,128]{1,0:T(1,128)}', space=vmem, size = 0x12000, scoped, tag = 'internal scratch']
  %s0 = inlined_call_operand.vmem [shape: bf16[32,16,96], index: 0, kind: input, shape index: {}]
  %s1 = inlined_call_operand.vmem [shape: bf16[5,96,168], index: 1, kind: input, shape index: {}]
  %s2 = inlined_call_operand.vmem [shape: f32[1,168], index: 2, kind: input, shape index: {}]
  %s3 = inlined_call_operand.vmem [shape: bf16[168,84], index: 3, kind: input, shape index: {}]
  %s4 = inlined_call_operand.vmem [shape: bf16[168,84], index: 4, kind: input, shape index: {}]
  %s5 = inlined_call_operand.vmem [shape: bf16[5,84,160], index: 5, kind: input, shape index: {}]
  %s6 = inlined_call_operand.vmem [shape: f32[1,160], index: 6, kind: input, shape index: {}]
  %s7 = inlined_call_operand.vmem [shape: bf16[160,80], index: 7, kind: input, shape index: {}]
  %s8 = inlined_call_operand.vmem [shape: bf16[160,80], index: 8, kind: input, shape index: {}]
  %s9 = inlined_call_operand.vmem [shape: bf16[5,80,120], index: 9, kind: input, shape index: {}]
  %s10 = inlined_call_operand.vmem [shape: f32[1,120], index: 10, kind: input, shape index: {}]
  %s11 = inlined_call_operand.vmem [shape: bf16[120,84], index: 11, kind: input, shape index: {}]
  %s12 = inlined_call_operand.vmem [shape: f32[1,84], index: 12, kind: input, shape index: {}]
  %s13 = inlined_call_operand.vmem [shape: bf16[84,128], index: 13, kind: input, shape index: {}]
  %s14 = inlined_call_operand.vmem [shape: f32[1,128], index: 14, kind: input, shape index: {}]
  %s15 = inlined_call_operand.vmem [shape: f32[16,128], index: 15, kind: output, shape index: {}]
  %s16 = sld [smem:[#allocation0]]
  $region70: #{net_forward.1} parent=0
    _
  %s18 = ssub.s32 1, %s16
  %s19 = scalar_select 0, %s18, %s16
  // Predicated region
  $region2: #{net_forward.1} parent=0 // pred_check
    _
  $region3: #{net_forward.1} parent=0 // pred_check_branch
    %21 = sbr.rel (0) target = $region5
  $region4: #{net_forward.1} parent=0 // pred_region
    _
  $region5: #{net_forward.1} parent=0 // pred_fallthru
    _
  // Predicated region
  $region6: #{net_forward.1} parent=0 // pred_check
    _
  $region7: #{net_forward.1} parent=0 // pred_check_branch
    %23 = sbr.rel (0) target = $region9
  $region8: #{net_forward.1} parent=0 // pred_region
    _
  $region9: #{net_forward.1} parent=0 // pred_fallthru
    _
  // Predicated region
  $region10: #{net_forward.1} parent=0 // pred_check
    _
  $region11: #{net_forward.1} parent=0 // pred_check_branch
    %25 = sbr.rel (0) target = $region13
  $region12: #{net_forward.1} parent=0 // pred_region
    _
  $region13: #{net_forward.1} parent=0 // pred_fallthru
    _
  // Predicated region
  $region14: #{net_forward.1} parent=0 // pred_check
    _
  $region15: #{net_forward.1} parent=0 // pred_check_branch
    %27 = sbr.rel (0) target = $region17
  $region16: #{net_forward.1} parent=0 // pred_region
    _
  $region17: #{net_forward.1} parent=0 // pred_fallthru
    _
  // Predicated region
  $region18: #{net_forward.1} parent=0 // pred_check
    _
  $region19: #{net_forward.1} parent=0 // pred_check_branch
    %29 = sbr.rel (0) target = $region21
  $region20: #{net_forward.1} parent=0 // pred_region
    _
  $region21: #{net_forward.1} parent=0 // pred_fallthru
    _
  // Predicated region
  $region22: #{net_forward.1} parent=0 // pred_check
    _
  $region23: #{net_forward.1} parent=0 // pred_check_branch
    %31 = sbr.rel (0) target = $region25
  $region24: #{net_forward.1} parent=0 // pred_region
    _
  $region25: #{net_forward.1} parent=0 // pred_fallthru
    _
  // Predicated region
  $region26: #{net_forward.1} parent=0 // pred_check
    _
  $region27: #{net_forward.1} parent=0 // pred_check_branch
    %33 = sbr.rel (0) target = $region29
  $region28: #{net_forward.1} parent=0 // pred_region
    _
  $region29: #{net_forward.1} parent=0 // pred_fallthru
    _
  // Predicated region
  $region30: #{net_forward.1} parent=0 // pred_check
    _
  $region31: #{net_forward.1} parent=0 // pred_check_branch
    %35 = sbr.rel (0) target = $region33
  $region32: #{net_forward.1} parent=0 // pred_region
    _
  $region33: #{net_forward.1} parent=0 // pred_fallthru
    _
  // Predicated region
  $region34: #{net_forward.1} parent=0 // pred_check
    _
  $region35: #{net_forward.1} parent=0 // pred_check_branch
    %37 = sbr.rel (0) target = $region37
  $region36: #{net_forward.1} parent=0 // pred_region
    _
  $region37: #{net_forward.1} parent=0 // pred_fallthru
    _
  // Predicated region
  $region38: #{net_forward.1} parent=0 // pred_check
    _
  $region39: #{net_forward.1} parent=0 // pred_check_branch
    %39 = sbr.rel (0) target = $region41
  $region40: #{net_forward.1} parent=0 // pred_region
    _
  $region41: #{net_forward.1} parent=0 // pred_fallthru
    _
  // Predicated region
  $region42: #{net_forward.1} parent=0 // pred_check
    _
  $region43: #{net_forward.1} parent=0 // pred_check_branch
    %41 = sbr.rel (0) target = $region45
  $region44: #{net_forward.1} parent=0 // pred_region
    _
  $region45: #{net_forward.1} parent=0 // pred_fallthru
    _
  // Predicated region
  $region46: #{net_forward.1} parent=0 // pred_check
    _
  $region47: #{net_forward.1} parent=0 // pred_check_branch
    %43 = sbr.rel (0) target = $region49
  $region48: #{net_forward.1} parent=0 // pred_region
    _
  $region49: #{net_forward.1} parent=0 // pred_fallthru
    _
  // Predicated region
  $region50: #{net_forward.1} parent=0 // pred_check
    _
  $region51: #{net_forward.1} parent=0 // pred_check_branch
    %45 = sbr.rel (0) target = $region53
  $region52: #{net_forward.1} parent=0 // pred_region
    _
  $region53: #{net_forward.1} parent=0 // pred_fallthru
    _
  // Predicated region
  $region54: #{net_forward.1} parent=0 // pred_check
    _
  $region55: #{net_forward.1} parent=0 // pred_check_branch
    %47 = sbr.rel (0) target = $region57
  $region56: #{net_forward.1} parent=0 // pred_region
    _
  $region57: #{net_forward.1} parent=0 // pred_fallthru
    _
  // Predicated region
  $region58: #{net_forward.1} parent=0 // pred_check
    _
  $region59: #{net_forward.1} parent=0 // pred_check_branch
    %49 = sbr.rel (0) target = $region61
  $region60: #{net_forward.1} parent=0 // pred_region
    _
  $region61: #{net_forward.1} parent=0 // pred_fallthru
    _
  %v51 = vld [vmem:[%s0] sm:$0xf]
  %v52 = vld [vmem:[%s0 + $0x4] sm:$0xf]
  %v53 = vld [vmem:[%s0 + $0x8] sm:$0xf]
  %v54 = vld [vmem:[%s0 + $0xc] sm:$0xf]
  %v55 = vld [vmem:[%s0 + $0x10] sm:$0xf]
  %v56 = vld [vmem:[%s0 + $0x14] sm:$0xf]
  %v57 = vld [vmem:[%s0 + $0x18] sm:$0xf]
  %v58 = vld [vmem:[%s0 + $0x1c] sm:$0xf]
  %v59 = vld [vmem:[%s0 + $0x20] sm:$0xf]
  %v60 = vld [vmem:[%s0 + $0x24] sm:$0xf]
  %v61 = vld [vmem:[%s0 + $0x28] sm:$0xf]
  %v62 = vld [vmem:[%s0 + $0x2c] sm:$0xf]
  %v63 = vld [vmem:[%s0 + $0x30] sm:$0xf]
  %v64 = vld [vmem:[%s0 + $0x34] sm:$0xf]
  %v65 = vld [vmem:[%s0 + $0x38] sm:$0xf]
  %v66 = vld [vmem:[%s0 + $0x3c] sm:$0xf]
  %v67 = vld [vmem:[%s0 + $0x40] sm:$0xf]
  %v68 = vld [vmem:[%s0 + $0x44] sm:$0xf]
  %v69 = vld [vmem:[%s0 + $0x48] sm:$0xf]
  %v70 = vld [vmem:[%s0 + $0x4c] sm:$0xf]
  %v71 = vld [vmem:[%s0 + $0x50] sm:$0xf]
  %v72 = vld [vmem:[%s0 + $0x54] sm:$0xf]
  %v73 = vld [vmem:[%s0 + $0x58] sm:$0xf]
  %v74 = vld [vmem:[%s0 + $0x5c] sm:$0xf]
  %v75 = vld [vmem:[%s0 + $0x60] sm:$0xf]
  %v76 = vld [vmem:[%s0 + $0x64] sm:$0xf]
  %v77 = vld [vmem:[%s0 + $0x68] sm:$0xf]
  %v78 = vld [vmem:[%s0 + $0x6c] sm:$0xf]
  %v79 = vld [vmem:[%s0 + $0x70] sm:$0xf]
  %v80 = vld [vmem:[%s0 + $0x74] sm:$0xf]
  %v81 = vld [vmem:[%s0 + $0x78] sm:$0xf]
  %v82 = vld [vmem:[%s0 + $0x7c] sm:$0xf]
  %v83 = vld [vmem:[%s0 + $0x80] sm:$0xf]
  %v84 = vld [vmem:[%s0 + $0x84] sm:$0xf]
  %v85 = vld [vmem:[%s0 + $0x88] sm:$0xf]
  %v86 = vld [vmem:[%s0 + $0x8c] sm:$0xf]
  %v87 = vld [vmem:[%s0 + $0x90] sm:$0xf]
  %v88 = vld [vmem:[%s0 + $0x94] sm:$0xf]
  %v89 = vld [vmem:[%s0 + $0x98] sm:$0xf]
  %v90 = vld [vmem:[%s0 + $0x9c] sm:$0xf]
  %v91 = vld [vmem:[%s0 + $0xa0] sm:$0xf]
  %v92 = vld [vmem:[%s0 + $0xa4] sm:$0xf]
  %v93 = vld [vmem:[%s0 + $0xa8] sm:$0xf]
  %v94 = vld [vmem:[%s0 + $0xac] sm:$0xf]
  %v95 = vld [vmem:[%s0 + $0xb0] sm:$0xf]
  %v96 = vld [vmem:[%s0 + $0xb4] sm:$0xf]
  %v97 = vld [vmem:[%s0 + $0xb8] sm:$0xf]
  %v98 = vld [vmem:[%s0 + $0xbc] sm:$0xf]
  %v99 = vld [vmem:[%s0 + $0xc0] sm:$0xf]
  %v100 = vld [vmem:[%s0 + $0xc4] sm:$0xf]
  %v101 = vld [vmem:[%s0 + $0xc8] sm:$0xf]
  %v102 = vld [vmem:[%s0 + $0xcc] sm:$0xf]
  %v103 = vld [vmem:[%s0 + $0xd0] sm:$0xf]
  %v104 = vld [vmem:[%s0 + $0xd4] sm:$0xf]
  %v105 = vld [vmem:[%s0 + $0xd8] sm:$0xf]
  %v106 = vld [vmem:[%s0 + $0xdc] sm:$0xf]
  %v107 = vld [vmem:[%s0 + $0xe0] sm:$0xf]
  %v108 = vld [vmem:[%s0 + $0xe4] sm:$0xf]
  %v109 = vld [vmem:[%s0 + $0xe8] sm:$0xf]
  %v110 = vld [vmem:[%s0 + $0xec] sm:$0xf]
  %v111 = vld [vmem:[%s0 + $0xf0] sm:$0xf]
  %v112 = vld [vmem:[%s0 + $0xf4] sm:$0xf]
  %v113 = vld [vmem:[%s0 + $0xf8] sm:$0xf]
  %v114 = vld [vmem:[%s0 + $0xfc] sm:$0xf]
  %v115 = vld [vmem:[%s1] sm:$0xff]
  %v116 = vld [vmem:[%s1 + $0x8] sm:$0xff]
  %v117 = vld [vmem:[%s1 + $0x10] sm:$0xff]
  %v118 = vld [vmem:[%s1 + $0x18] sm:$0xff]
  %v119 = vld [vmem:[%s1 + $0x20] sm:$0xff]
  %v120 = vld [vmem:[%s1 + $0x28] sm:$0xff]
  %v121 = vld [vmem:[%s1 + $0x30] sm:$0xff]
  %v122 = vld [vmem:[%s1 + $0x38] sm:$0xff]
  %v123 = vld [vmem:[%s1 + $0x40] sm:$0xff]
  %v124 = vld [vmem:[%s1 + $0x48] sm:$0xff]
  %v125 = vld [vmem:[%s1 + $0x50] sm:$0xff]
  %v126 = vld [vmem:[%s1 + $0x58] sm:$0xff]
  %s127 = scalar_lea.vmem %s1, 96
  %v128 = vld [vmem:[%s127] sm:$0xff]
  %v129 = vld [vmem:[%s127 + $0x8] sm:$0xff]
  %v130 = vld [vmem:[%s127 + $0x10] sm:$0xff]
  %v131 = vld [vmem:[%s127 + $0x18] sm:$0xff]
  %v132 = vld [vmem:[%s127 + $0x20] sm:$0xff]
  %v133 = vld [vmem:[%s127 + $0x28] sm:$0xff]
  %v134 = vld [vmem:[%s127 + $0x30] sm:$0xff]
  %v135 = vld [vmem:[%s127 + $0x38] sm:$0xff]
  %v136 = vld [vmem:[%s127 + $0x40] sm:$0xff]
  %v137 = vld [vmem:[%s127 + $0x48] sm:$0xff]
  %v138 = vld [vmem:[%s127 + $0x50] sm:$0xff]
  %v139 = vld [vmem:[%s127 + $0x58] sm:$0xff]
  %v196 = vunpack.c.l.b16 %v53
  %v197 = vunpack.c.l.b16 %v54
  %v198 = vunpack.c.l.b16 %v55
  %v199 = vunpack.c.l.b16 %v56
  %v200 = vunpack.c.l.b16 %v57
  %v201 = vunpack.c.l.b16 %v58
  %v202 = vunpack.c.l.b16 %v59
  %v203 = vunpack.c.l.b16 %v60
  %v204 = vunpack.c.l.b16 %v61
  %v205 = vunpack.c.l.b16 %v62
  %v206 = vunpack.c.l.b16 %v63
  %v207 = vunpack.c.l.b16 %v64
  %v208 = vunpack.c.l.b16 %v65
  %v209 = vunpack.c.l.b16 %v66
  %v210 = vunpack.c.l.b16 %v67
  %v211 = vunpack.c.l.b16 %v68
  %v212 = vunpack.c.l.b16 %v69
  %v213 = vunpack.c.l.b16 %v70
  %v214 = vunpack.c.l.b16 %v71
  %v215 = vunpack.c.l.b16 %v72
  %v216 = vunpack.c.l.b16 %v73
  %v217 = vunpack.c.l.b16 %v74
  %v218 = vunpack.c.l.b16 %v75
  %v219 = vunpack.c.l.b16 %v76
  %v220 = vunpack.c.l.b16 %v77
  %v221 = vunpack.c.l.b16 %v78
  %v222 = vunpack.c.l.b16 %v79
  %v223 = vunpack.c.l.b16 %v80
  %v224 = vunpack.c.l.b16 %v81
  %v225 = vunpack.c.l.b16 %v82
  %v226 = vunpack.c.l.b16 %v83
  %v227 = vunpack.c.l.b16 %v84
  %v228 = vunpack.c.l.b16 %v85
  %v229 = vunpack.c.l.b16 %v86
  %v230 = vunpack.c.l.b16 %v87
  %v231 = vunpack.c.l.b16 %v88
  %v232 = vunpack.c.l.b16 %v89
  %v233 = vunpack.c.l.b16 %v90
  %v234 = vunpack.c.l.b16 %v91
  %v235 = vunpack.c.l.b16 %v92
  %v236 = vunpack.c.l.b16 %v93
  %v237 = vunpack.c.l.b16 %v94
  %v238 = vunpack.c.l.b16 %v95
  %v239 = vunpack.c.l.b16 %v96
  %v240 = vunpack.c.l.b16 %v97
  %v241 = vunpack.c.l.b16 %v98
  %v242 = vunpack.c.l.b16 %v99
  %v243 = vunpack.c.l.b16 %v100
  %v244 = vunpack.c.l.b16 %v101
  %v245 = vunpack.c.l.b16 %v102
  %v246 = vunpack.c.l.b16 %v103
  %v247 = vunpack.c.l.b16 %v104
  %v248 = vunpack.c.l.b16 %v105
  %v249 = vunpack.c.l.b16 %v106
  %v250 = vunpack.c.l.b16 %v107
  %v251 = vunpack.c.l.b16 %v108
  %v252 = vpack.c.b16 %v197, %v196
  %v253 = vpack.c.b16 %v199, %v198
  %v254 = vpack.c.b16 %v201, %v200
  %v255 = vpack.c.b16 %v203, %v202
  %v256 = vpack.c.b16 %v205, %v204
  %v257 = vpack.c.b16 %v207, %v206
  %v258 = vpack.c.b16 %v209, %v208
  %v259 = vpack.c.b16 %v211, %v210
  %v260 = vpack.c.b16 %v213, %v212
  %v261 = vpack.c.b16 %v215, %v214
  %v262 = vpack.c.b16 %v217, %v216
  %v263 = vpack.c.b16 %v219, %v218
  %v264 = vpack.c.b16 %v221, %v220
  %v265 = vpack.c.b16 %v223, %v222
  %v266 = vpack.c.b16 %v225, %v224
  %v267 = vpack.c.b16 %v227, %v226
  %v268 = vpack.c.b16 %v229, %v228
  %v269 = vpack.c.b16 %v231, %v230
  %v270 = vpack.c.b16 %v233, %v232
  %v271 = vpack.c.b16 %v235, %v234
  %v272 = vpack.c.b16 %v237, %v236
  %v273 = vpack.c.b16 %v239, %v238
  %v274 = vpack.c.b16 %v241, %v240
  %v275 = vpack.c.b16 %v243, %v242
  %v276 = vpack.c.b16 %v245, %v244
  %v277 = vpack.c.b16 %v247, %v246
  %v278 = vpack.c.b16 %v249, %v248
  %v279 = vpack.c.b16 %v251, %v250
  %v292 = vunpack.c.l.b16 %v128
  %v293 = vunpack.c.h.b16 %v128
  %v294 = vunpack.c.l.b16 %v129
  %v295 = vunpack.c.h.b16 %v129
  %v296 = vunpack.c.l.b16 %v130
  %v297 = vunpack.c.h.b16 %v130
  %v298 = vunpack.c.l.b16 %v131
  %v299 = vunpack.c.h.b16 %v131
  %v300 = vunpack.c.l.b16 %v132
  %v301 = vunpack.c.h.b16 %v132
  %v302 = vunpack.c.l.b16 %v133
  %v303 = vunpack.c.h.b16 %v133
  %v304 = vunpack.c.l.b16 %v134
  %v305 = vunpack.c.h.b16 %v134
  %v306 = vunpack.c.l.b16 %v135
  %v307 = vunpack.c.h.b16 %v135
  %v308 = vunpack.c.l.b16 %v136
  %v309 = vunpack.c.h.b16 %v136
  %v310 = vunpack.c.l.b16 %v137
  %v311 = vunpack.c.h.b16 %v137
  %v312 = vunpack.c.l.b16 %v138
  %v313 = vunpack.c.h.b16 %v138
  %v314 = vunpack.c.l.b16 %v139
  %v315 = vunpack.c.h.b16 %v139
  %v316 = vpack.c.b16 %v294, %v292
  %v317 = vpack.c.b16 %v295, %v293
  %v318 = vpack.c.b16 %v298, %v296
  %v319 = vpack.c.b16 %v299, %v297
  %v320 = vpack.c.b16 %v302, %v300
  %v321 = vpack.c.b16 %v303, %v301
  %v322 = vpack.c.b16 %v306, %v304
  %v323 = vpack.c.b16 %v307, %v305
  %v324 = vpack.c.b16 %v310, %v308
  %v325 = vpack.c.b16 %v311, %v309
  %v326 = vpack.c.b16 %v314, %v312
  %v327 = vpack.c.b16 %v315, %v313
  %vm340 = vcmask 785408
  %v342 = vsel %vm340, %v252, 0
  %v345 = vsel %vm340, %v253, 0
  %v348 = vsel %vm340, %v254, 0
  %v351 = vsel %vm340, %v255, 0
  %v354 = vsel %vm340, %v256, 0
  %v357 = vsel %vm340, %v257, 0
  %v360 = vsel %vm340, %v258, 0
  %v363 = vsel %vm340, %v259, 0
  %v366 = vsel %vm340, %v260, 0
  %v369 = vsel %vm340, %v261, 0
  %v372 = vsel %vm340, %v262, 0
  %v375 = vsel %vm340, %v263, 0
  %v378 = vsel %vm340, %v264, 0
  %v381 = vsel %vm340, %v265, 0
  %v384 = vsel %vm340, %v266, 0
  %v387 = vsel %vm340, %v267, 0
  %v390 = vsel %vm340, %v268, 0
  %v393 = vsel %vm340, %v269, 0
  %v396 = vsel %vm340, %v270, 0
  %v399 = vsel %vm340, %v271, 0
  %v402 = vsel %vm340, %v272, 0
  %v405 = vsel %vm340, %v273, 0
  %v408 = vsel %vm340, %v274, 0
  %v411 = vsel %vm340, %v275, 0
  %v414 = vsel %vm340, %v276, 0
  %v417 = vsel %vm340, %v277, 0
  %v420 = vsel %vm340, %v278, 0
  %v423 = vsel %vm340, %v279, 0
  %425 = vmatprep.subr.bf16.mxu0 0
  %426 = vmatpush1.bf16.msra.mxu0 0
  %427 = vmatprep.subr.bf16.mxu0 0
  %428 = vmatpush1.bf16.msra.mxu0 0
  %429 = vmatprep.subr.bf16.mxu0 %v327
  %430 = vmatpush1.bf16.msra.mxu0 %v326
  %431 = vmatprep.subr.bf16.mxu0 %v325
  %432 = vmatpush1.bf16.msra.mxu0 %v324
  %433 = vmatprep.subr.bf16.mxu0 %v323
  %434 = vmatpush1.bf16.msra.mxu0 %v322
  %435 = vmatprep.subr.bf16.mxu0 %v321
  %436 = vmatpush1.bf16.msra.mxu0 %v320
  %437 = vmatprep.subr.bf16.mxu0 %v319
  %438 = vmatpush1.bf16.msra.mxu0 %v318
  %439 = vmatprep.subr.bf16.mxu0 %v317
  %440 = vmatpush1.bf16.msra.mxu0 %v316
  %441 = vmatprep.subr.bf16.mxu0 0
  %442 = vmatpush2.bf16.msra.mxu0 0
  %443 = vmatprep.subr.bf16.mxu0 0
  %444 = vmatpush2.bf16.msra.mxu0 0
  %445 = vmatprep.subr.bf16.mxu0 0
  %446 = vmatpush2.bf16.msra.mxu0 0
  %447 = vmatprep.subr.bf16.mxu0 0
  %448 = vmatpush2.bf16.msra.mxu0 0
  %449 = vmatprep.subr.bf16.mxu0 0
  %450 = vmatpush2.bf16.msra.mxu0 0
  %451 = vmatprep.subr.bf16.mxu0 0
  %452 = vmatpush2.bf16.msra.mxu0 0
  %453 = vmatprep.subr.bf16.mxu0 0
  %454 = vmatpush2.bf16.msra.mxu0 0
  %455 = vmatprep.subr.bf16.mxu0 0
  %456 = vmatpush2.bf16.msra.mxu0 0
  %457 = vmatprep.mubr.bf16.mxu0 0
  %458 = vmatmul.mubr.bf16.gmra.mxu0 %v342
  %v459 = vpop.f32.mrf.mxu0
  %v460 = vadd.f32 0.0, %v459
  %v461 = vpop.f32.mrf.mxu0
  %v462 = vadd.f32 0.0, %v461
  %v463 = vpop.f32.mrf.mxu0
  %v464 = vadd.f32 0.0, %v463
  %v465 = vpop.f32.mrf.mxu0
  %v466 = vadd.f32 0.0, %v465
  %467 = vmatprep.mubr.bf16.mxu0 0
  %468 = vmatmul.mubr.bf16.gmra.mxu0 %v345
  %v469 = vpop.f32.mrf.mxu0
  %v470 = vadd.f32 0.0, %v469
  %v471 = vpop.f32.mrf.mxu0
  %v472 = vadd.f32 0.0, %v471
  %v473 = vpop.f32.mrf.mxu0
  %v474 = vadd.f32 0.0, %v473
  %v475 = vpop.f32.mrf.mxu0
  %v476 = vadd.f32 0.0, %v475
  %477 = vmatprep.mubr.bf16.mxu0 0
  %478 = vmatmul.mubr.bf16.gmra.mxu0 %v348
  %v479 = vpop.f32.mrf.mxu0
  %v480 = vadd.f32 0.0, %v479
  %v481 = vpop.f32.mrf.mxu0
  %v482 = vadd.f32 0.0, %v481
  %v483 = vpop.f32.mrf.mxu0
  %v484 = vadd.f32 0.0, %v483
  %v485 = vpop.f32.mrf.mxu0
  %v486 = vadd.f32 0.0, %v485
  %487 = vmatprep.mubr.bf16.mxu0 0
  %488 = vmatmul.mubr.bf16.gmra.mxu0 %v351
  %v489 = vpop.f32.mrf.mxu0
  %v490 = vadd.f32 0.0, %v489
  %v491 = vpop.f32.mrf.mxu0
  %v492 = vadd.f32 0.0, %v491
  %v493 = vpop.f32.mrf.mxu0
  %v494 = vadd.f32 0.0, %v493
  %v495 = vpop.f32.mrf.mxu0
  %v496 = vadd.f32 0.0, %v495
  %497 = vmatprep.mubr.bf16.mxu0 0
  %498 = vmatmul.mubr.bf16.gmra.mxu0 %v354
  %v499 = vpop.f32.mrf.mxu0
  %v500 = vadd.f32 0.0, %v499
  %v501 = vpop.f32.mrf.mxu0
  %v502 = vadd.f32 0.0, %v501
  %v503 = vpop.f32.mrf.mxu0
  %v504 = vadd.f32 0.0, %v503
  %v505 = vpop.f32.mrf.mxu0
  %v506 = vadd.f32 0.0, %v505
  %507 = vmatprep.mubr.bf16.mxu0 0
  %508 = vmatmul.mubr.bf16.gmra.mxu0 %v357
  %v509 = vpop.f32.mrf.mxu0
  %v510 = vadd.f32 0.0, %v509
  %v511 = vpop.f32.mrf.mxu0
  %v512 = vadd.f32 0.0, %v511
  %v513 = vpop.f32.mrf.mxu0
  %v514 = vadd.f32 0.0, %v513
  %v515 = vpop.f32.mrf.mxu0
  %v516 = vadd.f32 0.0, %v515
  %517 = vmatprep.mubr.bf16.mxu0 0
  %518 = vmatmul.mubr.bf16.gmra.mxu0 %v360
  %v519 = vpop.f32.mrf.mxu0
  %v520 = vadd.f32 0.0, %v519
  %v521 = vpop.f32.mrf.mxu0
  %v522 = vadd.f32 0.0, %v521
  %v523 = vpop.f32.mrf.mxu0
  %v524 = vadd.f32 0.0, %v523
  %v525 = vpop.f32.mrf.mxu0
  %v526 = vadd.f32 0.0, %v525
  %527 = vmatprep.mubr.bf16.mxu0 0
  %528 = vmatmul.mubr.bf16.gmra.mxu0 %v363
  %v529 = vpop.f32.mrf.mxu0
  %v530 = vadd.f32 0.0, %v529
  %v531 = vpop.f32.mrf.mxu0
  %v532 = vadd.f32 0.0, %v531
  %v533 = vpop.f32.mrf.mxu0
  %v534 = vadd.f32 0.0, %v533
  %v535 = vpop.f32.mrf.mxu0
  %v536 = vadd.f32 0.0, %v535
  %537 = vmatprep.mubr.bf16.mxu0 0
  %538 = vmatmul.mubr.bf16.gmra.mxu0 %v366
  %v539 = vpop.f32.mrf.mxu0
  %v540 = vadd.f32 0.0, %v539
  %v541 = vpop.f32.mrf.mxu0
  %v542 = vadd.f32 0.0, %v541
  %v543 = vpop.f32.mrf.mxu0
  %v544 = vadd.f32 0.0, %v543
  %v545 = vpop.f32.mrf.mxu0
  %v546 = vadd.f32 0.0, %v545
  %547 = vmatprep.mubr.bf16.mxu0 0
  %548 = vmatmul.mubr.bf16.gmra.mxu0 %v369
  %v549 = vpop.f32.mrf.mxu0
  %v550 = vadd.f32 0.0, %v549
  %v551 = vpop.f32.mrf.mxu0
  %v552 = vadd.f32 0.0, %v551
  %v553 = vpop.f32.mrf.mxu0
  %v554 = vadd.f32 0.0, %v553
  %v555 = vpop.f32.mrf.mxu0
  %v556 = vadd.f32 0.0, %v555
  %557 = vmatprep.mubr.bf16.mxu0 0
  %558 = vmatmul.mubr.bf16.gmra.mxu0 %v372
  %v559 = vpop.f32.mrf.mxu0
  %v560 = vadd.f32 0.0, %v559
  %v561 = vpop.f32.mrf.mxu0
  %v562 = vadd.f32 0.0, %v561
  %v563 = vpop.f32.mrf.mxu0
  %v564 = vadd.f32 0.0, %v563
  %v565 = vpop.f32.mrf.mxu0
  %v566 = vadd.f32 0.0, %v565
  %567 = vmatprep.mubr.bf16.mxu0 0
  %568 = vmatmul.mubr.bf16.gmra.mxu0 %v375
  %v569 = vpop.f32.mrf.mxu0
  %v570 = vadd.f32 0.0, %v569
  %v571 = vpop.f32.mrf.mxu0
  %v572 = vadd.f32 0.0, %v571
  %v573 = vpop.f32.mrf.mxu0
  %v574 = vadd.f32 0.0, %v573
  %v575 = vpop.f32.mrf.mxu0
  %v576 = vadd.f32 0.0, %v575
  %577 = vmatprep.mubr.bf16.mxu0 0
  %578 = vmatmul.mubr.bf16.gmra.mxu0 %v378
  %v579 = vpop.f32.mrf.mxu0
  %v580 = vadd.f32 0.0, %v579
  %v581 = vpop.f32.mrf.mxu0
  %v582 = vadd.f32 0.0, %v581
  %v583 = vpop.f32.mrf.mxu0
  %v584 = vadd.f32 0.0, %v583
  %v585 = vpop.f32.mrf.mxu0
  %v586 = vadd.f32 0.0, %v585
  %587 = vmatprep.mubr.bf16.mxu0 0
  %588 = vmatmul.mubr.bf16.gmra.mxu0 %v381
  %v589 = vpop.f32.mrf.mxu0
  %v590 = vadd.f32 0.0, %v589
  %v591 = vpop.f32.mrf.mxu0
  %v592 = vadd.f32 0.0, %v591
  %v593 = vpop.f32.mrf.mxu0
  %v594 = vadd.f32 0.0, %v593
  %v595 = vpop.f32.mrf.mxu0
  %v596 = vadd.f32 0.0, %v595
  %597 = vmatprep.mubr.bf16.mxu0 0
  %598 = vmatmul.mubr.bf16.gmra.mxu0 %v384
  %v599 = vpop.f32.mrf.mxu0
  %v600 = vadd.f32 0.0, %v599
  %v601 = vpop.f32.mrf.mxu0
  %v602 = vadd.f32 0.0, %v601
  %v603 = vpop.f32.mrf.mxu0
  %v604 = vadd.f32 0.0, %v603
  %v605 = vpop.f32.mrf.mxu0
  %v606 = vadd.f32 0.0, %v605
  %607 = vmatprep.mubr.bf16.mxu0 0
  %608 = vmatmul.mubr.bf16.gmra.mxu0 %v387
  %v609 = vpop.f32.mrf.mxu0
  %v610 = vadd.f32 0.0, %v609
  %v611 = vpop.f32.mrf.mxu0
  %v612 = vadd.f32 0.0, %v611
  %v613 = vpop.f32.mrf.mxu0
  %v614 = vadd.f32 0.0, %v613
  %v615 = vpop.f32.mrf.mxu0
  %v616 = vadd.f32 0.0, %v615
  %617 = vmatprep.mubr.bf16.mxu0 0
  %618 = vmatmul.mubr.bf16.gmra.mxu0 %v390
  %v619 = vpop.f32.mrf.mxu0
  %v620 = vadd.f32 0.0, %v619
  %v621 = vpop.f32.mrf.mxu0
  %v622 = vadd.f32 0.0, %v621
  %v623 = vpop.f32.mrf.mxu0
  %v624 = vadd.f32 0.0, %v623
  %v625 = vpop.f32.mrf.mxu0
  %v626 = vadd.f32 0.0, %v625
  %627 = vmatprep.mubr.bf16.mxu0 0
  %628 = vmatmul.mubr.bf16.gmra.mxu0 %v393
  %v629 = vpop.f32.mrf.mxu0
  %v630 = vadd.f32 0.0, %v629
  %v631 = vpop.f32.mrf.mxu0
  %v632 = vadd.f32 0.0, %v631
  %v633 = vpop.f32.mrf.mxu0
  %v634 = vadd.f32 0.0, %v633
  %v635 = vpop.f32.mrf.mxu0
  %v636 = vadd.f32 0.0, %v635
  %637 = vmatprep.mubr.bf16.mxu0 0
  %638 = vmatmul.mubr.bf16.gmra.mxu0 %v396
  %v639 = vpop.f32.mrf.mxu0
  %v640 = vadd.f32 0.0, %v639
  %v641 = vpop.f32.mrf.mxu0
  %v642 = vadd.f32 0.0, %v641
  %v643 = vpop.f32.mrf.mxu0
  %v644 = vadd.f32 0.0, %v643
  %v645 = vpop.f32.mrf.mxu0
  %v646 = vadd.f32 0.0, %v645
  %647 = vmatprep.mubr.bf16.mxu0 0
  %648 = vmatmul.mubr.bf16.gmra.mxu0 %v399
  %v649 = vpop.f32.mrf.mxu0
  %v650 = vadd.f32 0.0, %v649
  %v651 = vpop.f32.mrf.mxu0
  %v652 = vadd.f32 0.0, %v651
  %v653 = vpop.f32.mrf.mxu0
  %v654 = vadd.f32 0.0, %v653
  %v655 = vpop.f32.mrf.mxu0
  %v656 = vadd.f32 0.0, %v655
  %657 = vmatprep.mubr.bf16.mxu0 0
  %658 = vmatmul.mubr.bf16.gmra.mxu0 %v402
  %v659 = vpop.f32.mrf.mxu0
  %v660 = vadd.f32 0.0, %v659
  %v661 = vpop.f32.mrf.mxu0
  %v662 = vadd.f32 0.0, %v661
  %v663 = vpop.f32.mrf.mxu0
  %v664 = vadd.f32 0.0, %v663
  %v665 = vpop.f32.mrf.mxu0
  %v666 = vadd.f32 0.0, %v665
  %667 = vmatprep.mubr.bf16.mxu0 0
  %668 = vmatmul.mubr.bf16.gmra.mxu0 %v405
  %v669 = vpop.f32.mrf.mxu0
  %v670 = vadd.f32 0.0, %v669
  %v671 = vpop.f32.mrf.mxu0
  %v672 = vadd.f32 0.0, %v671
  %v673 = vpop.f32.mrf.mxu0
  %v674 = vadd.f32 0.0, %v673
  %v675 = vpop.f32.mrf.mxu0
  %v676 = vadd.f32 0.0, %v675
  %677 = vmatprep.mubr.bf16.mxu0 0
  %678 = vmatmul.mubr.bf16.gmra.mxu0 %v408
  %v679 = vpop.f32.mrf.mxu0
  %v680 = vadd.f32 0.0, %v679
  %v681 = vpop.f32.mrf.mxu0
  %v682 = vadd.f32 0.0, %v681
  %v683 = vpop.f32.mrf.mxu0
  %v684 = vadd.f32 0.0, %v683
  %v685 = vpop.f32.mrf.mxu0
  %v686 = vadd.f32 0.0, %v685
  %687 = vmatprep.mubr.bf16.mxu0 0
  %688 = vmatmul.mubr.bf16.gmra.mxu0 %v411
  %v689 = vpop.f32.mrf.mxu0
  %v690 = vadd.f32 0.0, %v689
  %v691 = vpop.f32.mrf.mxu0
  %v692 = vadd.f32 0.0, %v691
  %v693 = vpop.f32.mrf.mxu0
  %v694 = vadd.f32 0.0, %v693
  %v695 = vpop.f32.mrf.mxu0
  %v696 = vadd.f32 0.0, %v695
  %697 = vmatprep.mubr.bf16.mxu0 0
  %698 = vmatmul.mubr.bf16.gmra.mxu0 %v414
  %v699 = vpop.f32.mrf.mxu0
  %v700 = vadd.f32 0.0, %v699
  %v701 = vpop.f32.mrf.mxu0
  %v702 = vadd.f32 0.0, %v701
  %v703 = vpop.f32.mrf.mxu0
  %v704 = vadd.f32 0.0, %v703
  %v705 = vpop.f32.mrf.mxu0
  %v706 = vadd.f32 0.0, %v705
  %707 = vmatprep.mubr.bf16.mxu0 0
  %708 = vmatmul.mubr.bf16.gmra.mxu0 %v417
  %v709 = vpop.f32.mrf.mxu0
  %v710 = vadd.f32 0.0, %v709
  %v711 = vpop.f32.mrf.mxu0
  %v712 = vadd.f32 0.0, %v711
  %v713 = vpop.f32.mrf.mxu0
  %v714 = vadd.f32 0.0, %v713
  %v715 = vpop.f32.mrf.mxu0
  %v716 = vadd.f32 0.0, %v715
  %717 = vmatprep.mubr.bf16.mxu0 0
  %718 = vmatmul.mubr.bf16.gmra.mxu0 %v420
  %v719 = vpop.f32.mrf.mxu0
  %v720 = vadd.f32 0.0, %v719
  %v721 = vpop.f32.mrf.mxu0
  %v722 = vadd.f32 0.0, %v721
  %v723 = vpop.f32.mrf.mxu0
  %v724 = vadd.f32 0.0, %v723
  %v725 = vpop.f32.mrf.mxu0
  %v726 = vadd.f32 0.0, %v725
  %727 = vmatprep.mubr.bf16.mxu0 0
  %728 = vmatmul.mubr.bf16.gmra.mxu0 %v423
  %v729 = vpop.f32.mrf.mxu0
  %v730 = vadd.f32 0.0, %v729
  %v731 = vpop.f32.mrf.mxu0
  %v732 = vadd.f32 0.0, %v731
  %v733 = vpop.f32.mrf.mxu0
  %v734 = vadd.f32 0.0, %v733
  %v735 = vpop.f32.mrf.mxu0
  %v736 = vadd.f32 0.0, %v735
  %737 = vdwg.mxu0
  %v740 = vunpack.c.l.b16 %v51
  %v741 = vunpack.c.l.b16 %v52
  %v742 = vpack.c.b16 %v741, %v740
  %v755 = vunpack.c.l.b16 %v115
  %v756 = vunpack.c.h.b16 %v115
  %v757 = vunpack.c.l.b16 %v116
  %v758 = vunpack.c.h.b16 %v116
  %v759 = vunpack.c.l.b16 %v117
  %v760 = vunpack.c.h.b16 %v117
  %v761 = vunpack.c.l.b16 %v118
  %v762 = vunpack.c.h.b16 %v118
  %v763 = vunpack.c.l.b16 %v119
  %v764 = vunpack.c.h.b16 %v119
  %v765 = vunpack.c.l.b16 %v120
  %v766 = vunpack.c.h.b16 %v120
  %v767 = vunpack.c.l.b16 %v121
  %v768 = vunpack.c.h.b16 %v121
  %v769 = vunpack.c.l.b16 %v122
  %v770 = vunpack.c.h.b16 %v122
  %v771 = vunpack.c.l.b16 %v123
  %v772 = vunpack.c.h.b16 %v123
  %v773 = vunpack.c.l.b16 %v124
  %v774 = vunpack.c.h.b16 %v124
  %v775 = vunpack.c.l.b16 %v125
  %v776 = vunpack.c.h.b16 %v125
  %v777 = vunpack.c.l.b16 %v126
  %v778 = vunpack.c.h.b16 %v126
  %v779 = vpack.c.b16 %v757, %v755
  %v780 = vpack.c.b16 %v758, %v756
  %v781 = vpack.c.b16 %v761, %v759
  %v782 = vpack.c.b16 %v762, %v760
  %v783 = vpack.c.b16 %v765, %v763
  %v784 = vpack.c.b16 %v766, %v764
  %v785 = vpack.c.b16 %v769, %v767
  %v786 = vpack.c.b16 %v770, %v768
  %v787 = vpack.c.b16 %v773, %v771
  %v788 = vpack.c.b16 %v774, %v772
  %v789 = vpack.c.b16 %v777, %v775
  %v790 = vpack.c.b16 %v778, %v776
  %v804 = vsel %vm340, %v742, 0
  %806 = vmatprep.subr.bf16.mxu0 0
  %807 = vmatpush1.bf16.msra.mxu0 0
  %808 = vmatprep.subr.bf16.mxu0 0
  %809 = vmatpush1.bf16.msra.mxu0 0
  %810 = vmatprep.subr.bf16.mxu0 %v790
  %811 = vmatpush1.bf16.msra.mxu0 %v789
  %812 = vmatprep.subr.bf16.mxu0 %v788
  %813 = vmatpush1.bf16.msra.mxu0 %v787
  %814 = vmatprep.subr.bf16.mxu0 %v786
  %815 = vmatpush1.bf16.msra.mxu0 %v785
  %816 = vmatprep.subr.bf16.mxu0 %v784
  %817 = vmatpush1.bf16.msra.mxu0 %v783
  %818 = vmatprep.subr.bf16.mxu0 %v782
  %819 = vmatpush1.bf16.msra.mxu0 %v781
  %820 = vmatprep.subr.bf16.mxu0 %v780
  %821 = vmatpush1.bf16.msra.mxu0 %v779
  %822 = vmatprep.subr.bf16.mxu0 0
  %823 = vmatpush2.bf16.msra.mxu0 0
  %824 = vmatprep.subr.bf16.mxu0 0
  %825 = vmatpush2.bf16.msra.mxu0 0
  %826 = vmatprep.subr.bf16.mxu0 0
  %827 = vmatpush2.bf16.msra.mxu0 0
  %828 = vmatprep.subr.bf16.mxu0 0
  %829 = vmatpush2.bf16.msra.mxu0 0
  %830 = vmatprep.subr.bf16.mxu0 0
  %831 = vmatpush2.bf16.msra.mxu0 0
  %832 = vmatprep.subr.bf16.mxu0 0
  %833 = vmatpush2.bf16.msra.mxu0 0
  %834 = vmatprep.subr.bf16.mxu0 0
  %835 = vmatpush2.bf16.msra.mxu0 0
  %836 = vmatprep.subr.bf16.mxu0 0
  %837 = vmatpush2.bf16.msra.mxu0 0
  %838 = vmatprep.mubr.bf16.mxu0 0
  %839 = vmatmul.mubr.bf16.gmra.mxu0 %v804
  %v840 = vpop.f32.mrf.mxu0
  %v841 = vadd.f32 %v460, %v840
  %v842 = vpop.f32.mrf.mxu0
  %v843 = vadd.f32 %v462, %v842
  %v844 = vpop.f32.mrf.mxu0
  %v845 = vadd.f32 %v464, %v844
  %v846 = vpop.f32.mrf.mxu0
  %v847 = vadd.f32 %v466, %v846
  %848 = vmatprep.mubr.bf16.mxu0 0
  %849 = vmatmul.mubr.bf16.gmra.mxu0 %v342
  %v850 = vpop.f32.mrf.mxu0
  %v851 = vadd.f32 %v470, %v850
  %v852 = vpop.f32.mrf.mxu0
  %v853 = vadd.f32 %v472, %v852
  %v854 = vpop.f32.mrf.mxu0
  %v855 = vadd.f32 %v474, %v854
  %v856 = vpop.f32.mrf.mxu0
  %v857 = vadd.f32 %v476, %v856
  %858 = vmatprep.mubr.bf16.mxu0 0
  %859 = vmatmul.mubr.bf16.gmra.mxu0 %v345
  %v860 = vpop.f32.mrf.mxu0
  %v861 = vadd.f32 %v480, %v860
  %v862 = vpop.f32.mrf.mxu0
  %v863 = vadd.f32 %v482, %v862
  %v864 = vpop.f32.mrf.mxu0
  %v865 = vadd.f32 %v484, %v864
  %v866 = vpop.f32.mrf.mxu0
  %v867 = vadd.f32 %v486, %v866
  %868 = vmatprep.mubr.bf16.mxu0 0
  %869 = vmatmul.mubr.bf16.gmra.mxu0 %v348
  %v870 = vpop.f32.mrf.mxu0
  %v871 = vadd.f32 %v490, %v870
  %v872 = vpop.f32.mrf.mxu0
  %v873 = vadd.f32 %v492, %v872
  %v874 = vpop.f32.mrf.mxu0
  %v875 = vadd.f32 %v494, %v874
  %v876 = vpop.f32.mrf.mxu0
  %v877 = vadd.f32 %v496, %v876
  %878 = vmatprep.mubr.bf16.mxu0 0
  %879 = vmatmul.mubr.bf16.gmra.mxu0 %v351
  %v880 = vpop.f32.mrf.mxu0
  %v881 = vadd.f32 %v500, %v880
  %v882 = vpop.f32.mrf.mxu0
  %v883 = vadd.f32 %v502, %v882
  %v884 = vpop.f32.mrf.mxu0
  %v885 = vadd.f32 %v504, %v884
  %v886 = vpop.f32.mrf.mxu0
  %v887 = vadd.f32 %v506, %v886
  %888 = vmatprep.mubr.bf16.mxu0 0
  %889 = vmatmul.mubr.bf16.gmra.mxu0 %v354
  %v890 = vpop.f32.mrf.mxu0
  %v891 = vadd.f32 %v510, %v890
  %v892 = vpop.f32.mrf.mxu0
  %v893 = vadd.f32 %v512, %v892
  %v894 = vpop.f32.mrf.mxu0
  %v895 = vadd.f32 %v514, %v894
  %v896 = vpop.f32.mrf.mxu0
  %v897 = vadd.f32 %v516, %v896
  %898 = vmatprep.mubr.bf16.mxu0 0
  %899 = vmatmul.mubr.bf16.gmra.mxu0 %v357
  %v900 = vpop.f32.mrf.mxu0
  %v901 = vadd.f32 %v520, %v900
  %v902 = vpop.f32.mrf.mxu0
  %v903 = vadd.f32 %v522, %v902
  %v904 = vpop.f32.mrf.mxu0
  %v905 = vadd.f32 %v524, %v904
  %v906 = vpop.f32.mrf.mxu0
  %v907 = vadd.f32 %v526, %v906
  %908 = vmatprep.mubr.bf16.mxu0 0
  %909 = vmatmul.mubr.bf16.gmra.mxu0 %v360
  %v910 = vpop.f32.mrf.mxu0
  %v911 = vadd.f32 %v530, %v910
  %v912 = vpop.f32.mrf.mxu0
  %v913 = vadd.f32 %v532, %v912
  %v914 = vpop.f32.mrf.mxu0
  %v915 = vadd.f32 %v534, %v914
  %v916 = vpop.f32.mrf.mxu0
  %v917 = vadd.f32 %v536, %v916
  %918 = vmatprep.mubr.bf16.mxu0 0
  %919 = vmatmul.mubr.bf16.gmra.mxu0 %v363
  %v920 = vpop.f32.mrf.mxu0
  %v921 = vadd.f32 %v540, %v920
  %v922 = vpop.f32.mrf.mxu0
  %v923 = vadd.f32 %v542, %v922
  %v924 = vpop.f32.mrf.mxu0
  %v925 = vadd.f32 %v544, %v924
  %v926 = vpop.f32.mrf.mxu0
  %v927 = vadd.f32 %v546, %v926
  %928 = vmatprep.mubr.bf16.mxu0 0
  %929 = vmatmul.mubr.bf16.gmra.mxu0 %v366
  %v930 = vpop.f32.mrf.mxu0
  %v931 = vadd.f32 %v550, %v930
  %v932 = vpop.f32.mrf.mxu0
  %v933 = vadd.f32 %v552, %v932
  %v934 = vpop.f32.mrf.mxu0
  %v935 = vadd.f32 %v554, %v934
  %v936 = vpop.f32.mrf.mxu0
  %v937 = vadd.f32 %v556, %v936
  %938 = vmatprep.mubr.bf16.mxu0 0
  %939 = vmatmul.mubr.bf16.gmra.mxu0 %v369
  %v940 = vpop.f32.mrf.mxu0
  %v941 = vadd.f32 %v560, %v940
  %v942 = vpop.f32.mrf.mxu0
  %v943 = vadd.f32 %v562, %v942
  %v944 = vpop.f32.mrf.mxu0
  %v945 = vadd.f32 %v564, %v944
  %v946 = vpop.f32.mrf.mxu0
  %v947 = vadd.f32 %v566, %v946
  %948 = vmatprep.mubr.bf16.mxu0 0
  %949 = vmatmul.mubr.bf16.gmra.mxu0 %v372
  %v950 = vpop.f32.mrf.mxu0
  %v951 = vadd.f32 %v570, %v950
  %v952 = vpop.f32.mrf.mxu0
  %v953 = vadd.f32 %v572, %v952
  %v954 = vpop.f32.mrf.mxu0
  %v955 = vadd.f32 %v574, %v954
  %v956 = vpop.f32.mrf.mxu0
  %v957 = vadd.f32 %v576, %v956
  %958 = vmatprep.mubr.bf16.mxu0 0
  %959 = vmatmul.mubr.bf16.gmra.mxu0 %v375
  %v960 = vpop.f32.mrf.mxu0
  %v961 = vadd.f32 %v580, %v960
  %v962 = vpop.f32.mrf.mxu0
  %v963 = vadd.f32 %v582, %v962
  %v964 = vpop.f32.mrf.mxu0
  %v965 = vadd.f32 %v584, %v964
  %v966 = vpop.f32.mrf.mxu0
  %v967 = vadd.f32 %v586, %v966
  %968 = vmatprep.mubr.bf16.mxu0 0
  %969 = vmatmul.mubr.bf16.gmra.mxu0 %v378
  %v970 = vpop.f32.mrf.mxu0
  %v971 = vadd.f32 %v590, %v970
  %v972 = vpop.f32.mrf.mxu0
  %v973 = vadd.f32 %v592, %v972
  %v974 = vpop.f32.mrf.mxu0
  %v975 = vadd.f32 %v594, %v974
  %v976 = vpop.f32.mrf.mxu0
  %v977 = vadd.f32 %v596, %v976
  %978 = vmatprep.mubr.bf16.mxu0 0
  %979 = vmatmul.mubr.bf16.gmra.mxu0 %v381
  %v980 = vpop.f32.mrf.mxu0
  %v981 = vadd.f32 %v600, %v980
  %v982 = vpop.f32.mrf.mxu0
  %v983 = vadd.f32 %v602, %v982
  %v984 = vpop.f32.mrf.mxu0
  %v985 = vadd.f32 %v604, %v984
  %v986 = vpop.f32.mrf.mxu0
  %v987 = vadd.f32 %v606, %v986
  %988 = vmatprep.mubr.bf16.mxu0 0
  %989 = vmatmul.mubr.bf16.gmra.mxu0 %v384
  %v990 = vpop.f32.mrf.mxu0
  %v991 = vadd.f32 %v610, %v990
  %v992 = vpop.f32.mrf.mxu0
  %v993 = vadd.f32 %v612, %v992
  %v994 = vpop.f32.mrf.mxu0
  %v995 = vadd.f32 %v614, %v994
  %v996 = vpop.f32.mrf.mxu0
  %v997 = vadd.f32 %v616, %v996
  %998 = vmatprep.mubr.bf16.mxu0 0
  %999 = vmatmul.mubr.bf16.gmra.mxu0 %v387
  %v1000 = vpop.f32.mrf.mxu0
  %v1001 = vadd.f32 %v620, %v1000
  %v1002 = vpop.f32.mrf.mxu0
  %v1003 = vadd.f32 %v622, %v1002
  %v1004 = vpop.f32.mrf.mxu0
  %v1005 = vadd.f32 %v624, %v1004
  %v1006 = vpop.f32.mrf.mxu0
  %v1007 = vadd.f32 %v626, %v1006
  %1008 = vmatprep.mubr.bf16.mxu0 0
  %1009 = vmatmul.mubr.bf16.gmra.mxu0 %v390
  %v1010 = vpop.f32.mrf.mxu0
  %v1011 = vadd.f32 %v630, %v1010
  %v1012 = vpop.f32.mrf.mxu0
  %v1013 = vadd.f32 %v632, %v1012
  %v1014 = vpop.f32.mrf.mxu0
  %v1015 = vadd.f32 %v634, %v1014
  %v1016 = vpop.f32.mrf.mxu0
  %v1017 = vadd.f32 %v636, %v1016
  %1018 = vmatprep.mubr.bf16.mxu0 0
  %1019 = vmatmul.mubr.bf16.gmra.mxu0 %v393
  %v1020 = vpop.f32.mrf.mxu0
  %v1021 = vadd.f32 %v640, %v1020
  %v1022 = vpop.f32.mrf.mxu0
  %v1023 = vadd.f32 %v642, %v1022
  %v1024 = vpop.f32.mrf.mxu0
  %v1025 = vadd.f32 %v644, %v1024
  %v1026 = vpop.f32.mrf.mxu0
  %v1027 = vadd.f32 %v646, %v1026
  %1028 = vmatprep.mubr.bf16.mxu0 0
  %1029 = vmatmul.mubr.bf16.gmra.mxu0 %v396
  %v1030 = vpop.f32.mrf.mxu0
  %v1031 = vadd.f32 %v650, %v1030
  %v1032 = vpop.f32.mrf.mxu0
  %v1033 = vadd.f32 %v652, %v1032
  %v1034 = vpop.f32.mrf.mxu0
  %v1035 = vadd.f32 %v654, %v1034
  %v1036 = vpop.f32.mrf.mxu0
  %v1037 = vadd.f32 %v656, %v1036
  %1038 = vmatprep.mubr.bf16.mxu0 0
  %1039 = vmatmul.mubr.bf16.gmra.mxu0 %v399
  %v1040 = vpop.f32.mrf.mxu0
  %v1041 = vadd.f32 %v660, %v1040
  %v1042 = vpop.f32.mrf.mxu0
  %v1043 = vadd.f32 %v662, %v1042
  %v1044 = vpop.f32.mrf.mxu0
  %v1045 = vadd.f32 %v664, %v1044
  %v1046 = vpop.f32.mrf.mxu0
  %v1047 = vadd.f32 %v666, %v1046
  %1048 = vmatprep.mubr.bf16.mxu0 0
  %1049 = vmatmul.mubr.bf16.gmra.mxu0 %v402
  %v1050 = vpop.f32.mrf.mxu0
  %v1051 = vadd.f32 %v670, %v1050
  %v1052 = vpop.f32.mrf.mxu0
  %v1053 = vadd.f32 %v672, %v1052
  %v1054 = vpop.f32.mrf.mxu0
  %v1055 = vadd.f32 %v674, %v1054
  %v1056 = vpop.f32.mrf.mxu0
  %v1057 = vadd.f32 %v676, %v1056
  %1058 = vmatprep.mubr.bf16.mxu0 0
  %1059 = vmatmul.mubr.bf16.gmra.mxu0 %v405
  %v1060 = vpop.f32.mrf.mxu0
  %v1061 = vadd.f32 %v680, %v1060
  %v1062 = vpop.f32.mrf.mxu0
  %v1063 = vadd.f32 %v682, %v1062
  %v1064 = vpop.f32.mrf.mxu0
  %v1065 = vadd.f32 %v684, %v1064
  %v1066 = vpop.f32.mrf.mxu0
  %v1067 = vadd.f32 %v686, %v1066
  %1068 = vmatprep.mubr.bf16.mxu0 0
  %1069 = vmatmul.mubr.bf16.gmra.mxu0 %v408
  %v1070 = vpop.f32.mrf.mxu0
  %v1071 = vadd.f32 %v690, %v1070
  %v1072 = vpop.f32.mrf.mxu0
  %v1073 = vadd.f32 %v692, %v1072
  %v1074 = vpop.f32.mrf.mxu0
  %v1075 = vadd.f32 %v694, %v1074
  %v1076 = vpop.f32.mrf.mxu0
  %v1077 = vadd.f32 %v696, %v1076
  %1078 = vmatprep.mubr.bf16.mxu0 0
  %1079 = vmatmul.mubr.bf16.gmra.mxu0 %v411
  %v1080 = vpop.f32.mrf.mxu0
  %v1081 = vadd.f32 %v700, %v1080
  %v1082 = vpop.f32.mrf.mxu0
  %v1083 = vadd.f32 %v702, %v1082
  %v1084 = vpop.f32.mrf.mxu0
  %v1085 = vadd.f32 %v704, %v1084
  %v1086 = vpop.f32.mrf.mxu0
  %v1087 = vadd.f32 %v706, %v1086
  %1088 = vmatprep.mubr.bf16.mxu0 0
  %1089 = vmatmul.mubr.bf16.gmra.mxu0 %v414
  %v1090 = vpop.f32.mrf.mxu0
  %v1091 = vadd.f32 %v710, %v1090
  %v1092 = vpop.f32.mrf.mxu0
  %v1093 = vadd.f32 %v712, %v1092
  %v1094 = vpop.f32.mrf.mxu0
  %v1095 = vadd.f32 %v714, %v1094
  %v1096 = vpop.f32.mrf.mxu0
  %v1097 = vadd.f32 %v716, %v1096
  %1098 = vmatprep.mubr.bf16.mxu0 0
  %1099 = vmatmul.mubr.bf16.gmra.mxu0 %v417
  %v1100 = vpop.f32.mrf.mxu0
  %v1101 = vadd.f32 %v720, %v1100
  %v1102 = vpop.f32.mrf.mxu0
  %v1103 = vadd.f32 %v722, %v1102
  %v1104 = vpop.f32.mrf.mxu0
  %v1105 = vadd.f32 %v724, %v1104
  %v1106 = vpop.f32.mrf.mxu0
  %v1107 = vadd.f32 %v726, %v1106
  %1108 = vmatprep.mubr.bf16.mxu0 0
  %1109 = vmatmul.mubr.bf16.gmra.mxu0 %v420
  %v1110 = vpop.f32.mrf.mxu0
  %v1111 = vadd.f32 %v730, %v1110
  %v1112 = vpop.f32.mrf.mxu0
  %v1113 = vadd.f32 %v732, %v1112
  %v1114 = vpop.f32.mrf.mxu0
  %v1115 = vadd.f32 %v734, %v1114
  %v1116 = vpop.f32.mrf.mxu0
  %v1117 = vadd.f32 %v736, %v1116
  %1118 = vdwg.mxu0
  %s1119 = scalar_lea.vmem %s1, 192
  %v1120 = vld [vmem:[%s1119] sm:$0xff]
  %v1121 = vld [vmem:[%s1119 + $0x8] sm:$0xff]
  %v1122 = vld [vmem:[%s1119 + $0x10] sm:$0xff]
  %v1123 = vld [vmem:[%s1119 + $0x18] sm:$0xff]
  %v1124 = vld [vmem:[%s1119 + $0x20] sm:$0xff]
  %v1125 = vld [vmem:[%s1119 + $0x28] sm:$0xff]
  %v1126 = vld [vmem:[%s1119 + $0x30] sm:$0xff]
  %v1127 = vld [vmem:[%s1119 + $0x38] sm:$0xff]
  %v1128 = vld [vmem:[%s1119 + $0x40] sm:$0xff]
  %v1129 = vld [vmem:[%s1119 + $0x48] sm:$0xff]
  %v1130 = vld [vmem:[%s1119 + $0x50] sm:$0xff]
  %v1131 = vld [vmem:[%s1119 + $0x58] sm:$0xff]
  %v1134 = vunpack.c.l.b16 %v109
  %v1135 = vunpack.c.l.b16 %v110
  %v1136 = vpack.c.b16 %v1135, %v1134
  %v1149 = vunpack.c.l.b16 %v1120
  %v1150 = vunpack.c.h.b16 %v1120
  %v1151 = vunpack.c.l.b16 %v1121
  %v1152 = vunpack.c.h.b16 %v1121
  %v1153 = vunpack.c.l.b16 %v1122
  %v1154 = vunpack.c.h.b16 %v1122
  %v1155 = vunpack.c.l.b16 %v1123
  %v1156 = vunpack.c.h.b16 %v1123
  %v1157 = vunpack.c.l.b16 %v1124
  %v1158 = vunpack.c.h.b16 %v1124
  %v1159 = vunpack.c.l.b16 %v1125
  %v1160 = vunpack.c.h.b16 %v1125
  %v1161 = vunpack.c.l.b16 %v1126
  %v1162 = vunpack.c.h.b16 %v1126
  %v1163 = vunpack.c.l.b16 %v1127
  %v1164 = vunpack.c.h.b16 %v1127
  %v1165 = vunpack.c.l.b16 %v1128
  %v1166 = vunpack.c.h.b16 %v1128
  %v1167 = vunpack.c.l.b16 %v1129
  %v1168 = vunpack.c.h.b16 %v1129
  %v1169 = vunpack.c.l.b16 %v1130
  %v1170 = vunpack.c.h.b16 %v1130
  %v1171 = vunpack.c.l.b16 %v1131
  %v1172 = vunpack.c.h.b16 %v1131
  %v1173 = vpack.c.b16 %v1151, %v1149
  %v1174 = vpack.c.b16 %v1152, %v1150
  %v1175 = vpack.c.b16 %v1155, %v1153
  %v1176 = vpack.c.b16 %v1156, %v1154
  %v1177 = vpack.c.b16 %v1159, %v1157
  %v1178 = vpack.c.b16 %v1160, %v1158
  %v1179 = vpack.c.b16 %v1163, %v1161
  %v1180 = vpack.c.b16 %v1164, %v1162
  %v1181 = vpack.c.b16 %v1167, %v1165
  %v1182 = vpack.c.b16 %v1168, %v1166
  %v1183 = vpack.c.b16 %v1171, %v1169
  %v1184 = vpack.c.b16 %v1172, %v1170
  %v1198 = vsel %vm340, %v1136, 0
  %1200 = vmatprep.subr.bf16.mxu0 0
  %1201 = vmatpush1.bf16.msra.mxu0 0
  %1202 = vmatprep.subr.bf16.mxu0 0
  %1203 = vmatpush1.bf16.msra.mxu0 0
  %1204 = vmatprep.subr.bf16.mxu0 %v1184
  %1205 = vmatpush1.bf16.msra.mxu0 %v1183
  %1206 = vmatprep.subr.bf16.mxu0 %v1182
  %1207 = vmatpush1.bf16.msra.mxu0 %v1181
  %1208 = vmatprep.subr.bf16.mxu0 %v1180
  %1209 = vmatpush1.bf16.msra.mxu0 %v1179
  %1210 = vmatprep.subr.bf16.mxu0 %v1178
  %1211 = vmatpush1.bf16.msra.mxu0 %v1177
  %1212 = vmatprep.subr.bf16.mxu0 %v1176
  %1213 = vmatpush1.bf16.msra.mxu0 %v1175
  %1214 = vmatprep.subr.bf16.mxu0 %v1174
  %1215 = vmatpush1.bf16.msra.mxu0 %v1173
  %1216 = vmatprep.subr.bf16.mxu0 0
  %1217 = vmatpush2.bf16.msra.mxu0 0
  %1218 = vmatprep.subr.bf16.mxu0 0
  %1219 = vmatpush2.bf16.msra.mxu0 0
  %1220 = vmatprep.subr.bf16.mxu0 0
  %1221 = vmatpush2.bf16.msra.mxu0 0
  %1222 = vmatprep.subr.bf16.mxu0 0
  %1223 = vmatpush2.bf16.msra.mxu0 0
  %1224 = vmatprep.subr.bf16.mxu0 0
  %1225 = vmatpush2.bf16.msra.mxu0 0
  %1226 = vmatprep.subr.bf16.mxu0 0
  %1227 = vmatpush2.bf16.msra.mxu0 0
  %1228 = vmatprep.subr.bf16.mxu0 0
  %1229 = vmatpush2.bf16.msra.mxu0 0
  %1230 = vmatprep.subr.bf16.mxu0 0
  %1231 = vmatpush2.bf16.msra.mxu0 0
  %1232 = vmatprep.mubr.bf16.mxu0 0
  %1233 = vmatmul.mubr.bf16.gmra.mxu0 %v345
  %v1234 = vpop.f32.mrf.mxu0
  %v1235 = vadd.f32 0.0, %v1234
  %v1236 = vpop.f32.mrf.mxu0
  %v1237 = vadd.f32 0.0, %v1236
  %v1238 = vpop.f32.mrf.mxu0
  %v1239 = vadd.f32 0.0, %v1238
  %v1240 = vpop.f32.mrf.mxu0
  %v1241 = vadd.f32 0.0, %v1240
  %1242 = vmatprep.mubr.bf16.mxu0 0
  %1243 = vmatmul.mubr.bf16.gmra.mxu0 %v348
  %v1244 = vpop.f32.mrf.mxu0
  %v1245 = vadd.f32 0.0, %v1244
  %v1246 = vpop.f32.mrf.mxu0
  %v1247 = vadd.f32 0.0, %v1246
  %v1248 = vpop.f32.mrf.mxu0
  %v1249 = vadd.f32 0.0, %v1248
  %v1250 = vpop.f32.mrf.mxu0
  %v1251 = vadd.f32 0.0, %v1250
  %1252 = vmatprep.mubr.bf16.mxu0 0
  %1253 = vmatmul.mubr.bf16.gmra.mxu0 %v351
  %v1254 = vpop.f32.mrf.mxu0
  %v1255 = vadd.f32 0.0, %v1254
  %v1256 = vpop.f32.mrf.mxu0
  %v1257 = vadd.f32 0.0, %v1256
  %v1258 = vpop.f32.mrf.mxu0
  %v1259 = vadd.f32 0.0, %v1258
  %v1260 = vpop.f32.mrf.mxu0
  %v1261 = vadd.f32 0.0, %v1260
  %1262 = vmatprep.mubr.bf16.mxu0 0
  %1263 = vmatmul.mubr.bf16.gmra.mxu0 %v354
  %v1264 = vpop.f32.mrf.mxu0
  %v1265 = vadd.f32 0.0, %v1264
  %v1266 = vpop.f32.mrf.mxu0
  %v1267 = vadd.f32 0.0, %v1266
  %v1268 = vpop.f32.mrf.mxu0
  %v1269 = vadd.f32 0.0, %v1268
  %v1270 = vpop.f32.mrf.mxu0
  %v1271 = vadd.f32 0.0, %v1270
  %1272 = vmatprep.mubr.bf16.mxu0 0
  %1273 = vmatmul.mubr.bf16.gmra.mxu0 %v357
  %v1274 = vpop.f32.mrf.mxu0
  %v1275 = vadd.f32 0.0, %v1274
  %v1276 = vpop.f32.mrf.mxu0
  %v1277 = vadd.f32 0.0, %v1276
  %v1278 = vpop.f32.mrf.mxu0
  %v1279 = vadd.f32 0.0, %v1278
  %v1280 = vpop.f32.mrf.mxu0
  %v1281 = vadd.f32 0.0, %v1280
  %1282 = vmatprep.mubr.bf16.mxu0 0
  %1283 = vmatmul.mubr.bf16.gmra.mxu0 %v360
  %v1284 = vpop.f32.mrf.mxu0
  %v1285 = vadd.f32 0.0, %v1284
  %v1286 = vpop.f32.mrf.mxu0
  %v1287 = vadd.f32 0.0, %v1286
  %v1288 = vpop.f32.mrf.mxu0
  %v1289 = vadd.f32 0.0, %v1288
  %v1290 = vpop.f32.mrf.mxu0
  %v1291 = vadd.f32 0.0, %v1290
  %1292 = vmatprep.mubr.bf16.mxu0 0
  %1293 = vmatmul.mubr.bf16.gmra.mxu0 %v363
  %v1294 = vpop.f32.mrf.mxu0
  %v1295 = vadd.f32 0.0, %v1294
  %v1296 = vpop.f32.mrf.mxu0
  %v1297 = vadd.f32 0.0, %v1296
  %v1298 = vpop.f32.mrf.mxu0
  %v1299 = vadd.f32 0.0, %v1298
  %v1300 = vpop.f32.mrf.mxu0
  %v1301 = vadd.f32 0.0, %v1300
  %1302 = vmatprep.mubr.bf16.mxu0 0
  %1303 = vmatmul.mubr.bf16.gmra.mxu0 %v366
  %v1304 = vpop.f32.mrf.mxu0
  %v1305 = vadd.f32 0.0, %v1304
  %v1306 = vpop.f32.mrf.mxu0
  %v1307 = vadd.f32 0.0, %v1306
  %v1308 = vpop.f32.mrf.mxu0
  %v1309 = vadd.f32 0.0, %v1308
  %v1310 = vpop.f32.mrf.mxu0
  %v1311 = vadd.f32 0.0, %v1310
  %1312 = vmatprep.mubr.bf16.mxu0 0
  %1313 = vmatmul.mubr.bf16.gmra.mxu0 %v369
  %v1314 = vpop.f32.mrf.mxu0
  %v1315 = vadd.f32 0.0, %v1314
  %v1316 = vpop.f32.mrf.mxu0
  %v1317 = vadd.f32 0.0, %v1316
  %v1318 = vpop.f32.mrf.mxu0
  %v1319 = vadd.f32 0.0, %v1318
  %v1320 = vpop.f32.mrf.mxu0
  %v1321 = vadd.f32 0.0, %v1320
  %1322 = vmatprep.mubr.bf16.mxu0 0
  %1323 = vmatmul.mubr.bf16.gmra.mxu0 %v372
  %v1324 = vpop.f32.mrf.mxu0
  %v1325 = vadd.f32 0.0, %v1324
  %v1326 = vpop.f32.mrf.mxu0
  %v1327 = vadd.f32 0.0, %v1326
  %v1328 = vpop.f32.mrf.mxu0
  %v1329 = vadd.f32 0.0, %v1328
  %v1330 = vpop.f32.mrf.mxu0
  %v1331 = vadd.f32 0.0, %v1330
  %1332 = vmatprep.mubr.bf16.mxu0 0
  %1333 = vmatmul.mubr.bf16.gmra.mxu0 %v375
  %v1334 = vpop.f32.mrf.mxu0
  %v1335 = vadd.f32 0.0, %v1334
  %v1336 = vpop.f32.mrf.mxu0
  %v1337 = vadd.f32 0.0, %v1336
  %v1338 = vpop.f32.mrf.mxu0
  %v1339 = vadd.f32 0.0, %v1338
  %v1340 = vpop.f32.mrf.mxu0
  %v1341 = vadd.f32 0.0, %v1340
  %1342 = vmatprep.mubr.bf16.mxu0 0
  %1343 = vmatmul.mubr.bf16.gmra.mxu0 %v378
  %v1344 = vpop.f32.mrf.mxu0
  %v1345 = vadd.f32 0.0, %v1344
  %v1346 = vpop.f32.mrf.mxu0
  %v1347 = vadd.f32 0.0, %v1346
  %v1348 = vpop.f32.mrf.mxu0
  %v1349 = vadd.f32 0.0, %v1348
  %v1350 = vpop.f32.mrf.mxu0
  %v1351 = vadd.f32 0.0, %v1350
  %1352 = vmatprep.mubr.bf16.mxu0 0
  %1353 = vmatmul.mubr.bf16.gmra.mxu0 %v381
  %v1354 = vpop.f32.mrf.mxu0
  %v1355 = vadd.f32 0.0, %v1354
  %v1356 = vpop.f32.mrf.mxu0
  %v1357 = vadd.f32 0.0, %v1356
  %v1358 = vpop.f32.mrf.mxu0
  %v1359 = vadd.f32 0.0, %v1358
  %v1360 = vpop.f32.mrf.mxu0
  %v1361 = vadd.f32 0.0, %v1360
  %1362 = vmatprep.mubr.bf16.mxu0 0
  %1363 = vmatmul.mubr.bf16.gmra.mxu0 %v384
  %v1364 = vpop.f32.mrf.mxu0
  %v1365 = vadd.f32 0.0, %v1364
  %v1366 = vpop.f32.mrf.mxu0
  %v1367 = vadd.f32 0.0, %v1366
  %v1368 = vpop.f32.mrf.mxu0
  %v1369 = vadd.f32 0.0, %v1368
  %v1370 = vpop.f32.mrf.mxu0
  %v1371 = vadd.f32 0.0, %v1370
  %1372 = vmatprep.mubr.bf16.mxu0 0
  %1373 = vmatmul.mubr.bf16.gmra.mxu0 %v387
  %v1374 = vpop.f32.mrf.mxu0
  %v1375 = vadd.f32 0.0, %v1374
  %v1376 = vpop.f32.mrf.mxu0
  %v1377 = vadd.f32 0.0, %v1376
  %v1378 = vpop.f32.mrf.mxu0
  %v1379 = vadd.f32 0.0, %v1378
  %v1380 = vpop.f32.mrf.mxu0
  %v1381 = vadd.f32 0.0, %v1380
  %1382 = vmatprep.mubr.bf16.mxu0 0
  %1383 = vmatmul.mubr.bf16.gmra.mxu0 %v390
  %v1384 = vpop.f32.mrf.mxu0
  %v1385 = vadd.f32 0.0, %v1384
  %v1386 = vpop.f32.mrf.mxu0
  %v1387 = vadd.f32 0.0, %v1386
  %v1388 = vpop.f32.mrf.mxu0
  %v1389 = vadd.f32 0.0, %v1388
  %v1390 = vpop.f32.mrf.mxu0
  %v1391 = vadd.f32 0.0, %v1390
  %1392 = vmatprep.mubr.bf16.mxu0 0
  %1393 = vmatmul.mubr.bf16.gmra.mxu0 %v393
  %v1394 = vpop.f32.mrf.mxu0
  %v1395 = vadd.f32 0.0, %v1394
  %v1396 = vpop.f32.mrf.mxu0
  %v1397 = vadd.f32 0.0, %v1396
  %v1398 = vpop.f32.mrf.mxu0
  %v1399 = vadd.f32 0.0, %v1398
  %v1400 = vpop.f32.mrf.mxu0
  %v1401 = vadd.f32 0.0, %v1400
  %1402 = vmatprep.mubr.bf16.mxu0 0
  %1403 = vmatmul.mubr.bf16.gmra.mxu0 %v396
  %v1404 = vpop.f32.mrf.mxu0
  %v1405 = vadd.f32 0.0, %v1404
  %v1406 = vpop.f32.mrf.mxu0
  %v1407 = vadd.f32 0.0, %v1406
  %v1408 = vpop.f32.mrf.mxu0
  %v1409 = vadd.f32 0.0, %v1408
  %v1410 = vpop.f32.mrf.mxu0
  %v1411 = vadd.f32 0.0, %v1410
  %1412 = vmatprep.mubr.bf16.mxu0 0
  %1413 = vmatmul.mubr.bf16.gmra.mxu0 %v399
  %v1414 = vpop.f32.mrf.mxu0
  %v1415 = vadd.f32 0.0, %v1414
  %v1416 = vpop.f32.mrf.mxu0
  %v1417 = vadd.f32 0.0, %v1416
  %v1418 = vpop.f32.mrf.mxu0
  %v1419 = vadd.f32 0.0, %v1418
  %v1420 = vpop.f32.mrf.mxu0
  %v1421 = vadd.f32 0.0, %v1420
  %1422 = vmatprep.mubr.bf16.mxu0 0
  %1423 = vmatmul.mubr.bf16.gmra.mxu0 %v402
  %v1424 = vpop.f32.mrf.mxu0
  %v1425 = vadd.f32 0.0, %v1424
  %v1426 = vpop.f32.mrf.mxu0
  %v1427 = vadd.f32 0.0, %v1426
  %v1428 = vpop.f32.mrf.mxu0
  %v1429 = vadd.f32 0.0, %v1428
  %v1430 = vpop.f32.mrf.mxu0
  %v1431 = vadd.f32 0.0, %v1430
  %1432 = vmatprep.mubr.bf16.mxu0 0
  %1433 = vmatmul.mubr.bf16.gmra.mxu0 %v405
  %v1434 = vpop.f32.mrf.mxu0
  %v1435 = vadd.f32 0.0, %v1434
  %v1436 = vpop.f32.mrf.mxu0
  %v1437 = vadd.f32 0.0, %v1436
  %v1438 = vpop.f32.mrf.mxu0
  %v1439 = vadd.f32 0.0, %v1438
  %v1440 = vpop.f32.mrf.mxu0
  %v1441 = vadd.f32 0.0, %v1440
  %1442 = vmatprep.mubr.bf16.mxu0 0
  %1443 = vmatmul.mubr.bf16.gmra.mxu0 %v408
  %v1444 = vpop.f32.mrf.mxu0
  %v1445 = vadd.f32 0.0, %v1444
  %v1446 = vpop.f32.mrf.mxu0
  %v1447 = vadd.f32 0.0, %v1446
  %v1448 = vpop.f32.mrf.mxu0
  %v1449 = vadd.f32 0.0, %v1448
  %v1450 = vpop.f32.mrf.mxu0
  %v1451 = vadd.f32 0.0, %v1450
  %1452 = vmatprep.mubr.bf16.mxu0 0
  %1453 = vmatmul.mubr.bf16.gmra.mxu0 %v411
  %v1454 = vpop.f32.mrf.mxu0
  %v1455 = vadd.f32 0.0, %v1454
  %v1456 = vpop.f32.mrf.mxu0
  %v1457 = vadd.f32 0.0, %v1456
  %v1458 = vpop.f32.mrf.mxu0
  %v1459 = vadd.f32 0.0, %v1458
  %v1460 = vpop.f32.mrf.mxu0
  %v1461 = vadd.f32 0.0, %v1460
  %1462 = vmatprep.mubr.bf16.mxu0 0
  %1463 = vmatmul.mubr.bf16.gmra.mxu0 %v414
  %v1464 = vpop.f32.mrf.mxu0
  %v1465 = vadd.f32 0.0, %v1464
  %v1466 = vpop.f32.mrf.mxu0
  %v1467 = vadd.f32 0.0, %v1466
  %v1468 = vpop.f32.mrf.mxu0
  %v1469 = vadd.f32 0.0, %v1468
  %v1470 = vpop.f32.mrf.mxu0
  %v1471 = vadd.f32 0.0, %v1470
  %1472 = vmatprep.mubr.bf16.mxu0 0
  %1473 = vmatmul.mubr.bf16.gmra.mxu0 %v417
  %v1474 = vpop.f32.mrf.mxu0
  %v1475 = vadd.f32 0.0, %v1474
  %v1476 = vpop.f32.mrf.mxu0
  %v1477 = vadd.f32 0.0, %v1476
  %v1478 = vpop.f32.mrf.mxu0
  %v1479 = vadd.f32 0.0, %v1478
  %v1480 = vpop.f32.mrf.mxu0
  %v1481 = vadd.f32 0.0, %v1480
  %1482 = vmatprep.mubr.bf16.mxu0 0
  %1483 = vmatmul.mubr.bf16.gmra.mxu0 %v420
  %v1484 = vpop.f32.mrf.mxu0
  %v1485 = vadd.f32 0.0, %v1484
  %v1486 = vpop.f32.mrf.mxu0
  %v1487 = vadd.f32 0.0, %v1486
  %v1488 = vpop.f32.mrf.mxu0
  %v1489 = vadd.f32 0.0, %v1488
  %v1490 = vpop.f32.mrf.mxu0
  %v1491 = vadd.f32 0.0, %v1490
  %1492 = vmatprep.mubr.bf16.mxu0 0
  %1493 = vmatmul.mubr.bf16.gmra.mxu0 %v423
  %v1494 = vpop.f32.mrf.mxu0
  %v1495 = vadd.f32 0.0, %v1494
  %v1496 = vpop.f32.mrf.mxu0
  %v1497 = vadd.f32 0.0, %v1496
  %v1498 = vpop.f32.mrf.mxu0
  %v1499 = vadd.f32 0.0, %v1498
  %v1500 = vpop.f32.mrf.mxu0
  %v1501 = vadd.f32 0.0, %v1500
  %1502 = vmatprep.mubr.bf16.mxu0 0
  %1503 = vmatmul.mubr.bf16.gmra.mxu0 %v1198
  %v1504 = vpop.f32.mrf.mxu0
  %v1505 = vadd.f32 0.0, %v1504
  %v1506 = vpop.f32.mrf.mxu0
  %v1507 = vadd.f32 0.0, %v1506
  %v1508 = vpop.f32.mrf.mxu0
  %v1509 = vadd.f32 0.0, %v1508
  %v1510 = vpop.f32.mrf.mxu0
  %v1511 = vadd.f32 0.0, %v1510
  %1512 = vdwg.mxu0
  %v1513 = vadd.f32 %v841, %v1235
  %v1514 = vadd.f32 %v843, %v1237
  %v1515 = vadd.f32 %v845, %v1239
  %v1516 = vadd.f32 %v847, %v1241
  %v1517 = vadd.f32 %v851, %v1245
  %v1518 = vadd.f32 %v853, %v1247
  %v1519 = vadd.f32 %v855, %v1249
  %v1520 = vadd.f32 %v857, %v1251
  %v1521 = vadd.f32 %v861, %v1255
  %v1522 = vadd.f32 %v863, %v1257
  %v1523 = vadd.f32 %v865, %v1259
  %v1524 = vadd.f32 %v867, %v1261
  %v1525 = vadd.f32 %v871, %v1265
  %v1526 = vadd.f32 %v873, %v1267
  %v1527 = vadd.f32 %v875, %v1269
  %v1528 = vadd.f32 %v877, %v1271
  %v1529 = vadd.f32 %v881, %v1275
  %v1530 = vadd.f32 %v883, %v1277
  %v1531 = vadd.f32 %v885, %v1279
  %v1532 = vadd.f32 %v887, %v1281
  %v1533 = vadd.f32 %v891, %v1285
  %v1534 = vadd.f32 %v893, %v1287
  %v1535 = vadd.f32 %v895, %v1289
  %v1536 = vadd.f32 %v897, %v1291
  %v1537 = vadd.f32 %v901, %v1295
  %v1538 = vadd.f32 %v903, %v1297
  %v1539 = vadd.f32 %v905, %v1299
  %v1540 = vadd.f32 %v907, %v1301
  %v1541 = vadd.f32 %v911, %v1305
  %v1542 = vadd.f32 %v913, %v1307
  %v1543 = vadd.f32 %v915, %v1309
  %v1544 = vadd.f32 %v917, %v1311
  %v1545 = vadd.f32 %v921, %v1315
  %v1546 = vadd.f32 %v923, %v1317
  %v1547 = vadd.f32 %v925, %v1319
  %v1548 = vadd.f32 %v927, %v1321
  %v1549 = vadd.f32 %v931, %v1325
  %v1550 = vadd.f32 %v933, %v1327
  %v1551 = vadd.f32 %v935, %v1329
  %v1552 = vadd.f32 %v937, %v1331
  %v1553 = vadd.f32 %v941, %v1335
  %v1554 = vadd.f32 %v943, %v1337
  %v1555 = vadd.f32 %v945, %v1339
  %v1556 = vadd.f32 %v947, %v1341
  %v1557 = vadd.f32 %v951, %v1345
  %v1558 = vadd.f32 %v953, %v1347
  %v1559 = vadd.f32 %v955, %v1349
  %v1560 = vadd.f32 %v957, %v1351
  %v1561 = vadd.f32 %v961, %v1355
  %v1562 = vadd.f32 %v963, %v1357
  %v1563 = vadd.f32 %v965, %v1359
  %v1564 = vadd.f32 %v967, %v1361
  %v1565 = vadd.f32 %v971, %v1365
  %v1566 = vadd.f32 %v973, %v1367
  %v1567 = vadd.f32 %v975, %v1369
  %v1568 = vadd.f32 %v977, %v1371
  %v1569 = vadd.f32 %v981, %v1375
  %v1570 = vadd.f32 %v983, %v1377
  %v1571 = vadd.f32 %v985, %v1379
  %v1572 = vadd.f32 %v987, %v1381
  %v1573 = vadd.f32 %v991, %v1385
  %v1574 = vadd.f32 %v993, %v1387
  %v1575 = vadd.f32 %v995, %v1389
  %v1576 = vadd.f32 %v997, %v1391
  %v1577 = vadd.f32 %v1001, %v1395
  %v1578 = vadd.f32 %v1003, %v1397
  %v1579 = vadd.f32 %v1005, %v1399
  %v1580 = vadd.f32 %v1007, %v1401
  %v1581 = vadd.f32 %v1011, %v1405
  %v1582 = vadd.f32 %v1013, %v1407
  %v1583 = vadd.f32 %v1015, %v1409
  %v1584 = vadd.f32 %v1017, %v1411
  %v1585 = vadd.f32 %v1021, %v1415
  %v1586 = vadd.f32 %v1023, %v1417
  %v1587 = vadd.f32 %v1025, %v1419
  %v1588 = vadd.f32 %v1027, %v1421
  %v1589 = vadd.f32 %v1031, %v1425
  %v1590 = vadd.f32 %v1033, %v1427
  %v1591 = vadd.f32 %v1035, %v1429
  %v1592 = vadd.f32 %v1037, %v1431
  %v1593 = vadd.f32 %v1041, %v1435
  %v1594 = vadd.f32 %v1043, %v1437
  %v1595 = vadd.f32 %v1045, %v1439
  %v1596 = vadd.f32 %v1047, %v1441
  %v1597 = vadd.f32 %v1051, %v1445
  %v1598 = vadd.f32 %v1053, %v1447
  %v1599 = vadd.f32 %v1055, %v1449
  %v1600 = vadd.f32 %v1057, %v1451
  %v1601 = vadd.f32 %v1061, %v1455
  %v1602 = vadd.f32 %v1063, %v1457
  %v1603 = vadd.f32 %v1065, %v1459
  %v1604 = vadd.f32 %v1067, %v1461
  %v1605 = vadd.f32 %v1071, %v1465
  %v1606 = vadd.f32 %v1073, %v1467
  %v1607 = vadd.f32 %v1075, %v1469
  %v1608 = vadd.f32 %v1077, %v1471
  %v1609 = vadd.f32 %v1081, %v1475
  %v1610 = vadd.f32 %v1083, %v1477
  %v1611 = vadd.f32 %v1085, %v1479
  %v1612 = vadd.f32 %v1087, %v1481
  %v1613 = vadd.f32 %v1091, %v1485
  %v1614 = vadd.f32 %v1093, %v1487
  %v1615 = vadd.f32 %v1095, %v1489
  %v1616 = vadd.f32 %v1097, %v1491
  %v1617 = vadd.f32 %v1101, %v1495
  %v1618 = vadd.f32 %v1103, %v1497
  %v1619 = vadd.f32 %v1105, %v1499
  %v1620 = vadd.f32 %v1107, %v1501
  %v1621 = vadd.f32 %v1111, %v1505
  %v1622 = vadd.f32 %v1113, %v1507
  %v1623 = vadd.f32 %v1115, %v1509
  %v1624 = vadd.f32 %v1117, %v1511
  %s1625 = scalar_lea.vmem %s1, 288
  %v1626 = vld [vmem:[%s1625] sm:$0xff]
  %v1627 = vld [vmem:[%s1625 + $0x8] sm:$0xff]
  %v1628 = vld [vmem:[%s1625 + $0x10] sm:$0xff]
  %v1629 = vld [vmem:[%s1625 + $0x18] sm:$0xff]
  %v1630 = vld [vmem:[%s1625 + $0x20] sm:$0xff]
  %v1631 = vld [vmem:[%s1625 + $0x28] sm:$0xff]
  %v1632 = vld [vmem:[%s1625 + $0x30] sm:$0xff]
  %v1633 = vld [vmem:[%s1625 + $0x38] sm:$0xff]
  %v1634 = vld [vmem:[%s1625 + $0x40] sm:$0xff]
  %v1635 = vld [vmem:[%s1625 + $0x48] sm:$0xff]
  %v1636 = vld [vmem:[%s1625 + $0x50] sm:$0xff]
  %v1637 = vld [vmem:[%s1625 + $0x58] sm:$0xff]
  %v1640 = vunpack.c.l.b16 %v111
  %v1641 = vunpack.c.l.b16 %v112
  %v1642 = vpack.c.b16 %v1641, %v1640
  %v1655 = vunpack.c.l.b16 %v1626
  %v1656 = vunpack.c.h.b16 %v1626
  %v1657 = vunpack.c.l.b16 %v1627
  %v1658 = vunpack.c.h.b16 %v1627
  %v1659 = vunpack.c.l.b16 %v1628
  %v1660 = vunpack.c.h.b16 %v1628
  %v1661 = vunpack.c.l.b16 %v1629
  %v1662 = vunpack.c.h.b16 %v1629
  %v1663 = vunpack.c.l.b16 %v1630
  %v1664 = vunpack.c.h.b16 %v1630
  %v1665 = vunpack.c.l.b16 %v1631
  %v1666 = vunpack.c.h.b16 %v1631
  %v1667 = vunpack.c.l.b16 %v1632
  %v1668 = vunpack.c.h.b16 %v1632
  %v1669 = vunpack.c.l.b16 %v1633
  %v1670 = vunpack.c.h.b16 %v1633
  %v1671 = vunpack.c.l.b16 %v1634
  %v1672 = vunpack.c.h.b16 %v1634
  %v1673 = vunpack.c.l.b16 %v1635
  %v1674 = vunpack.c.h.b16 %v1635
  %v1675 = vunpack.c.l.b16 %v1636
  %v1676 = vunpack.c.h.b16 %v1636
  %v1677 = vunpack.c.l.b16 %v1637
  %v1678 = vunpack.c.h.b16 %v1637
  %v1679 = vpack.c.b16 %v1657, %v1655
  %v1680 = vpack.c.b16 %v1658, %v1656
  %v1681 = vpack.c.b16 %v1661, %v1659
  %v1682 = vpack.c.b16 %v1662, %v1660
  %v1683 = vpack.c.b16 %v1665, %v1663
  %v1684 = vpack.c.b16 %v1666, %v1664
  %v1685 = vpack.c.b16 %v1669, %v1667
  %v1686 = vpack.c.b16 %v1670, %v1668
  %v1687 = vpack.c.b16 %v1673, %v1671
  %v1688 = vpack.c.b16 %v1674, %v1672
  %v1689 = vpack.c.b16 %v1677, %v1675
  %v1690 = vpack.c.b16 %v1678, %v1676
  %v1704 = vsel %vm340, %v1642, 0
  %1706 = vmatprep.subr.bf16.mxu0 0
  %1707 = vmatpush1.bf16.msra.mxu0 0
  %1708 = vmatprep.subr.bf16.mxu0 0
  %1709 = vmatpush1.bf16.msra.mxu0 0
  %1710 = vmatprep.subr.bf16.mxu0 %v1690
  %1711 = vmatpush1.bf16.msra.mxu0 %v1689
  %1712 = vmatprep.subr.bf16.mxu0 %v1688
  %1713 = vmatpush1.bf16.msra.mxu0 %v1687
  %1714 = vmatprep.subr.bf16.mxu0 %v1686
  %1715 = vmatpush1.bf16.msra.mxu0 %v1685
  %1716 = vmatprep.subr.bf16.mxu0 %v1684
  %1717 = vmatpush1.bf16.msra.mxu0 %v1683
  %1718 = vmatprep.subr.bf16.mxu0 %v1682
  %1719 = vmatpush1.bf16.msra.mxu0 %v1681
  %1720 = vmatprep.subr.bf16.mxu0 %v1680
  %1721 = vmatpush1.bf16.msra.mxu0 %v1679
  %1722 = vmatprep.subr.bf16.mxu0 0
  %1723 = vmatpush2.bf16.msra.mxu0 0
  %1724 = vmatprep.subr.bf16.mxu0 0
  %1725 = vmatpush2.bf16.msra.mxu0 0
  %1726 = vmatprep.subr.bf16.mxu0 0
  %1727 = vmatpush2.bf16.msra.mxu0 0
  %1728 = vmatprep.subr.bf16.mxu0 0
  %1729 = vmatpush2.bf16.msra.mxu0 0
  %1730 = vmatprep.subr.bf16.mxu0 0
  %1731 = vmatpush2.bf16.msra.mxu0 0
  %1732 = vmatprep.subr.bf16.mxu0 0
  %1733 = vmatpush2.bf16.msra.mxu0 0
  %1734 = vmatprep.subr.bf16.mxu0 0
  %1735 = vmatpush2.bf16.msra.mxu0 0
  %1736 = vmatprep.subr.bf16.mxu0 0
  %1737 = vmatpush2.bf16.msra.mxu0 0
  %1738 = vmatprep.mubr.bf16.mxu0 0
  %1739 = vmatmul.mubr.bf16.gmra.mxu0 %v348
  %v1740 = vpop.f32.mrf.mxu0
  %v1741 = vadd.f32 0.0, %v1740
  %v1742 = vpop.f32.mrf.mxu0
  %v1743 = vadd.f32 0.0, %v1742
  %v1744 = vpop.f32.mrf.mxu0
  %v1745 = vadd.f32 0.0, %v1744
  %v1746 = vpop.f32.mrf.mxu0
  %v1747 = vadd.f32 0.0, %v1746
  %1748 = vmatprep.mubr.bf16.mxu0 0
  %1749 = vmatmul.mubr.bf16.gmra.mxu0 %v351
  %v1750 = vpop.f32.mrf.mxu0
  %v1751 = vadd.f32 0.0, %v1750
  %v1752 = vpop.f32.mrf.mxu0
  %v1753 = vadd.f32 0.0, %v1752
  %v1754 = vpop.f32.mrf.mxu0
  %v1755 = vadd.f32 0.0, %v1754
  %v1756 = vpop.f32.mrf.mxu0
  %v1757 = vadd.f32 0.0, %v1756
  %1758 = vmatprep.mubr.bf16.mxu0 0
  %1759 = vmatmul.mubr.bf16.gmra.mxu0 %v354
  %v1760 = vpop.f32.mrf.mxu0
  %v1761 = vadd.f32 0.0, %v1760
  %v1762 = vpop.f32.mrf.mxu0
  %v1763 = vadd.f32 0.0, %v1762
  %v1764 = vpop.f32.mrf.mxu0
  %v1765 = vadd.f32 0.0, %v1764
  %v1766 = vpop.f32.mrf.mxu0
  %v1767 = vadd.f32 0.0, %v1766
  %1768 = vmatprep.mubr.bf16.mxu0 0
  %1769 = vmatmul.mubr.bf16.gmra.mxu0 %v357
  %v1770 = vpop.f32.mrf.mxu0
  %v1771 = vadd.f32 0.0, %v1770
  %v1772 = vpop.f32.mrf.mxu0
  %v1773 = vadd.f32 0.0, %v1772
  %v1774 = vpop.f32.mrf.mxu0
  %v1775 = vadd.f32 0.0, %v1774
  %v1776 = vpop.f32.mrf.mxu0
  %v1777 = vadd.f32 0.0, %v1776
  %1778 = vmatprep.mubr.bf16.mxu0 0
  %1779 = vmatmul.mubr.bf16.gmra.mxu0 %v360
  %v1780 = vpop.f32.mrf.mxu0
  %v1781 = vadd.f32 0.0, %v1780
  %v1782 = vpop.f32.mrf.mxu0
  %v1783 = vadd.f32 0.0, %v1782
  %v1784 = vpop.f32.mrf.mxu0
  %v1785 = vadd.f32 0.0, %v1784
  %v1786 = vpop.f32.mrf.mxu0
  %v1787 = vadd.f32 0.0, %v1786
  %1788 = vmatprep.mubr.bf16.mxu0 0
  %1789 = vmatmul.mubr.bf16.gmra.mxu0 %v363
  %v1790 = vpop.f32.mrf.mxu0
  %v1791 = vadd.f32 0.0, %v1790
  %v1792 = vpop.f32.mrf.mxu0
  %v1793 = vadd.f32 0.0, %v1792
  %v1794 = vpop.f32.mrf.mxu0
  %v1795 = vadd.f32 0.0, %v1794
  %v1796 = vpop.f32.mrf.mxu0
  %v1797 = vadd.f32 0.0, %v1796
  %1798 = vmatprep.mubr.bf16.mxu0 0
  %1799 = vmatmul.mubr.bf16.gmra.mxu0 %v366
  %v1800 = vpop.f32.mrf.mxu0
  %v1801 = vadd.f32 0.0, %v1800
  %v1802 = vpop.f32.mrf.mxu0
  %v1803 = vadd.f32 0.0, %v1802
  %v1804 = vpop.f32.mrf.mxu0
  %v1805 = vadd.f32 0.0, %v1804
  %v1806 = vpop.f32.mrf.mxu0
  %v1807 = vadd.f32 0.0, %v1806
  %1808 = vmatprep.mubr.bf16.mxu0 0
  %1809 = vmatmul.mubr.bf16.gmra.mxu0 %v369
  %v1810 = vpop.f32.mrf.mxu0
  %v1811 = vadd.f32 0.0, %v1810
  %v1812 = vpop.f32.mrf.mxu0
  %v1813 = vadd.f32 0.0, %v1812
  %v1814 = vpop.f32.mrf.mxu0
  %v1815 = vadd.f32 0.0, %v1814
  %v1816 = vpop.f32.mrf.mxu0
  %v1817 = vadd.f32 0.0, %v1816
  %1818 = vmatprep.mubr.bf16.mxu0 0
  %1819 = vmatmul.mubr.bf16.gmra.mxu0 %v372
  %v1820 = vpop.f32.mrf.mxu0
  %v1821 = vadd.f32 0.0, %v1820
  %v1822 = vpop.f32.mrf.mxu0
  %v1823 = vadd.f32 0.0, %v1822
  %v1824 = vpop.f32.mrf.mxu0
  %v1825 = vadd.f32 0.0, %v1824
  %v1826 = vpop.f32.mrf.mxu0
  %v1827 = vadd.f32 0.0, %v1826
  %1828 = vmatprep.mubr.bf16.mxu0 0
  %1829 = vmatmul.mubr.bf16.gmra.mxu0 %v375
  %v1830 = vpop.f32.mrf.mxu0
  %v1831 = vadd.f32 0.0, %v1830
  %v1832 = vpop.f32.mrf.mxu0
  %v1833 = vadd.f32 0.0, %v1832
  %v1834 = vpop.f32.mrf.mxu0
  %v1835 = vadd.f32 0.0, %v1834
  %v1836 = vpop.f32.mrf.mxu0
  %v1837 = vadd.f32 0.0, %v1836
  %1838 = vmatprep.mubr.bf16.mxu0 0
  %1839 = vmatmul.mubr.bf16.gmra.mxu0 %v378
  %v1840 = vpop.f32.mrf.mxu0
  %v1841 = vadd.f32 0.0, %v1840
  %v1842 = vpop.f32.mrf.mxu0
  %v1843 = vadd.f32 0.0, %v1842
  %v1844 = vpop.f32.mrf.mxu0
  %v1845 = vadd.f32 0.0, %v1844
  %v1846 = vpop.f32.mrf.mxu0
  %v1847 = vadd.f32 0.0, %v1846
  %1848 = vmatprep.mubr.bf16.mxu0 0
  %1849 = vmatmul.mubr.bf16.gmra.mxu0 %v381
  %v1850 = vpop.f32.mrf.mxu0
  %v1851 = vadd.f32 0.0, %v1850
  %v1852 = vpop.f32.mrf.mxu0
  %v1853 = vadd.f32 0.0, %v1852
  %v1854 = vpop.f32.mrf.mxu0
  %v1855 = vadd.f32 0.0, %v1854
  %v1856 = vpop.f32.mrf.mxu0
  %v1857 = vadd.f32 0.0, %v1856
  %1858 = vmatprep.mubr.bf16.mxu0 0
  %1859 = vmatmul.mubr.bf16.gmra.mxu0 %v384
  %v1860 = vpop.f32.mrf.mxu0
  %v1861 = vadd.f32 0.0, %v1860
  %v1862 = vpop.f32.mrf.mxu0
  %v1863 = vadd.f32 0.0, %v1862
  %v1864 = vpop.f32.mrf.mxu0
  %v1865 = vadd.f32 0.0, %v1864
  %v1866 = vpop.f32.mrf.mxu0
  %v1867 = vadd.f32 0.0, %v1866
  %1868 = vmatprep.mubr.bf16.mxu0 0
  %1869 = vmatmul.mubr.bf16.gmra.mxu0 %v387
  %v1870 = vpop.f32.mrf.mxu0
  %v1871 = vadd.f32 0.0, %v1870
  %v1872 = vpop.f32.mrf.mxu0
  %v1873 = vadd.f32 0.0, %v1872
  %v1874 = vpop.f32.mrf.mxu0
  %v1875 = vadd.f32 0.0, %v1874
  %v1876 = vpop.f32.mrf.mxu0
  %v1877 = vadd.f32 0.0, %v1876
  %1878 = vmatprep.mubr.bf16.mxu0 0
  %1879 = vmatmul.mubr.bf16.gmra.mxu0 %v390
  %v1880 = vpop.f32.mrf.mxu0
  %v1881 = vadd.f32 0.0, %v1880
  %v1882 = vpop.f32.mrf.mxu0
  %v1883 = vadd.f32 0.0, %v1882
  %v1884 = vpop.f32.mrf.mxu0
  %v1885 = vadd.f32 0.0, %v1884
  %v1886 = vpop.f32.mrf.mxu0
  %v1887 = vadd.f32 0.0, %v1886
  %1888 = vmatprep.mubr.bf16.mxu0 0
  %1889 = vmatmul.mubr.bf16.gmra.mxu0 %v393
  %v1890 = vpop.f32.mrf.mxu0
  %v1891 = vadd.f32 0.0, %v1890
  %v1892 = vpop.f32.mrf.mxu0
  %v1893 = vadd.f32 0.0, %v1892
  %v1894 = vpop.f32.mrf.mxu0
  %v1895 = vadd.f32 0.0, %v1894
  %v1896 = vpop.f32.mrf.mxu0
  %v1897 = vadd.f32 0.0, %v1896
  %1898 = vmatprep.mubr.bf16.mxu0 0
  %1899 = vmatmul.mubr.bf16.gmra.mxu0 %v396
  %v1900 = vpop.f32.mrf.mxu0
  %v1901 = vadd.f32 0.0, %v1900
  %v1902 = vpop.f32.mrf.mxu0
  %v1903 = vadd.f32 0.0, %v1902
  %v1904 = vpop.f32.mrf.mxu0
  %v1905 = vadd.f32 0.0, %v1904
  %v1906 = vpop.f32.mrf.mxu0
  %v1907 = vadd.f32 0.0, %v1906
  %1908 = vmatprep.mubr.bf16.mxu0 0
  %1909 = vmatmul.mubr.bf16.gmra.mxu0 %v399
  %v1910 = vpop.f32.mrf.mxu0
  %v1911 = vadd.f32 0.0, %v1910
  %v1912 = vpop.f32.mrf.mxu0
  %v1913 = vadd.f32 0.0, %v1912
  %v1914 = vpop.f32.mrf.mxu0
  %v1915 = vadd.f32 0.0, %v1914
  %v1916 = vpop.f32.mrf.mxu0
  %v1917 = vadd.f32 0.0, %v1916
  %1918 = vmatprep.mubr.bf16.mxu0 0
  %1919 = vmatmul.mubr.bf16.gmra.mxu0 %v402
  %v1920 = vpop.f32.mrf.mxu0
  %v1921 = vadd.f32 0.0, %v1920
  %v1922 = vpop.f32.mrf.mxu0
  %v1923 = vadd.f32 0.0, %v1922
  %v1924 = vpop.f32.mrf.mxu0
  %v1925 = vadd.f32 0.0, %v1924
  %v1926 = vpop.f32.mrf.mxu0
  %v1927 = vadd.f32 0.0, %v1926
  %1928 = vmatprep.mubr.bf16.mxu0 0
  %1929 = vmatmul.mubr.bf16.gmra.mxu0 %v405
  %v1930 = vpop.f32.mrf.mxu0
  %v1931 = vadd.f32 0.0, %v1930
  %v1932 = vpop.f32.mrf.mxu0
  %v1933 = vadd.f32 0.0, %v1932
  %v1934 = vpop.f32.mrf.mxu0
  %v1935 = vadd.f32 0.0, %v1934
  %v1936 = vpop.f32.mrf.mxu0
  %v1937 = vadd.f32 0.0, %v1936
  %1938 = vmatprep.mubr.bf16.mxu0 0
  %1939 = vmatmul.mubr.bf16.gmra.mxu0 %v408
  %v1940 = vpop.f32.mrf.mxu0
  %v1941 = vadd.f32 0.0, %v1940
  %v1942 = vpop.f32.mrf.mxu0
  %v1943 = vadd.f32 0.0, %v1942
  %v1944 = vpop.f32.mrf.mxu0
  %v1945 = vadd.f32 0.0, %v1944
  %v1946 = vpop.f32.mrf.mxu0
  %v1947 = vadd.f32 0.0, %v1946
  %1948 = vmatprep.mubr.bf16.mxu0 0
  %1949 = vmatmul.mubr.bf16.gmra.mxu0 %v411
  %v1950 = vpop.f32.mrf.mxu0
  %v1951 = vadd.f32 0.0, %v1950
  %v1952 = vpop.f32.mrf.mxu0
  %v1953 = vadd.f32 0.0, %v1952
  %v1954 = vpop.f32.mrf.mxu0
  %v1955 = vadd.f32 0.0, %v1954
  %v1956 = vpop.f32.mrf.mxu0
  %v1957 = vadd.f32 0.0, %v1956
  %1958 = vmatprep.mubr.bf16.mxu0 0
  %1959 = vmatmul.mubr.bf16.gmra.mxu0 %v414
  %v1960 = vpop.f32.mrf.mxu0
  %v1961 = vadd.f32 0.0, %v1960
  %v1962 = vpop.f32.mrf.mxu0
  %v1963 = vadd.f32 0.0, %v1962
  %v1964 = vpop.f32.mrf.mxu0
  %v1965 = vadd.f32 0.0, %v1964
  %v1966 = vpop.f32.mrf.mxu0
  %v1967 = vadd.f32 0.0, %v1966
  %1968 = vmatprep.mubr.bf16.mxu0 0
  %1969 = vmatmul.mubr.bf16.gmra.mxu0 %v417
  %v1970 = vpop.f32.mrf.mxu0
  %v1971 = vadd.f32 0.0, %v1970
  %v1972 = vpop.f32.mrf.mxu0
  %v1973 = vadd.f32 0.0, %v1972
  %v1974 = vpop.f32.mrf.mxu0
  %v1975 = vadd.f32 0.0, %v1974
  %v1976 = vpop.f32.mrf.mxu0
  %v1977 = vadd.f32 0.0, %v1976
  %1978 = vmatprep.mubr.bf16.mxu0 0
  %1979 = vmatmul.mubr.bf16.gmra.mxu0 %v420
  %v1980 = vpop.f32.mrf.mxu0
  %v1981 = vadd.f32 0.0, %v1980
  %v1982 = vpop.f32.mrf.mxu0
  %v1983 = vadd.f32 0.0, %v1982
  %v1984 = vpop.f32.mrf.mxu0
  %v1985 = vadd.f32 0.0, %v1984
  %v1986 = vpop.f32.mrf.mxu0
  %v1987 = vadd.f32 0.0, %v1986
  %1988 = vmatprep.mubr.bf16.mxu0 0
  %1989 = vmatmul.mubr.bf16.gmra.mxu0 %v423
  %v1990 = vpop.f32.mrf.mxu0
  %v1991 = vadd.f32 0.0, %v1990
  %v1992 = vpop.f32.mrf.mxu0
  %v1993 = vadd.f32 0.0, %v1992
  %v1994 = vpop.f32.mrf.mxu0
  %v1995 = vadd.f32 0.0, %v1994
  %v1996 = vpop.f32.mrf.mxu0
  %v1997 = vadd.f32 0.0, %v1996
  %1998 = vmatprep.mubr.bf16.mxu0 0
  %1999 = vmatmul.mubr.bf16.gmra.mxu0 %v1198
  %v2000 = vpop.f32.mrf.mxu0
  %v2001 = vadd.f32 0.0, %v2000
  %v2002 = vpop.f32.mrf.mxu0
  %v2003 = vadd.f32 0.0, %v2002
  %v2004 = vpop.f32.mrf.mxu0
  %v2005 = vadd.f32 0.0, %v2004
  %v2006 = vpop.f32.mrf.mxu0
  %v2007 = vadd.f32 0.0, %v2006
  %2008 = vmatprep.mubr.bf16.mxu0 0
  %2009 = vmatmul.mubr.bf16.gmra.mxu0 %v1704
  %v2010 = vpop.f32.mrf.mxu0
  %v2011 = vadd.f32 0.0, %v2010
  %v2012 = vpop.f32.mrf.mxu0
  %v2013 = vadd.f32 0.0, %v2012
  %v2014 = vpop.f32.mrf.mxu0
  %v2015 = vadd.f32 0.0, %v2014
  %v2016 = vpop.f32.mrf.mxu0
  %v2017 = vadd.f32 0.0, %v2016
  %2018 = vdwg.mxu0
  %v2019 = vadd.f32 %v1513, %v1741
  %v2020 = vadd.f32 %v1514, %v1743
  %v2021 = vadd.f32 %v1515, %v1745
  %v2022 = vadd.f32 %v1516, %v1747
  %v2023 = vadd.f32 %v1517, %v1751
  %v2024 = vadd.f32 %v1518, %v1753
  %v2025 = vadd.f32 %v1519, %v1755
  %v2026 = vadd.f32 %v1520, %v1757
  %v2027 = vadd.f32 %v1521, %v1761
  %v2028 = vadd.f32 %v1522, %v1763
  %v2029 = vadd.f32 %v1523, %v1765
  %v2030 = vadd.f32 %v1524, %v1767
  %v2031 = vadd.f32 %v1525, %v1771
  %v2032 = vadd.f32 %v1526, %v1773
  %v2033 = vadd.f32 %v1527, %v1775
  %v2034 = vadd.f32 %v1528, %v1777
  %v2035 = vadd.f32 %v1529, %v1781
  %v2036 = vadd.f32 %v1530, %v1783
  %v2037 = vadd.f32 %v1531, %v1785
  %v2038 = vadd.f32 %v1532, %v1787
  %v2039 = vadd.f32 %v1533, %v1791
  %v2040 = vadd.f32 %v1534, %v1793
  %v2041 = vadd.f32 %v1535, %v1795
  %v2042 = vadd.f32 %v1536, %v1797
  %v2043 = vadd.f32 %v1537, %v1801
  %v2044 = vadd.f32 %v1538, %v1803
  %v2045 = vadd.f32 %v1539, %v1805
  %v2046 = vadd.f32 %v1540, %v1807
  %v2047 = vadd.f32 %v1541, %v1811
  %v2048 = vadd.f32 %v1542, %v1813
  %v2049 = vadd.f32 %v1543, %v1815
  %v2050 = vadd.f32 %v1544, %v1817
  %v2051 = vadd.f32 %v1545, %v1821
  %v2052 = vadd.f32 %v1546, %v1823
  %v2053 = vadd.f32 %v1547, %v1825
  %v2054 = vadd.f32 %v1548, %v1827
  %v2055 = vadd.f32 %v1549, %v1831
  %v2056 = vadd.f32 %v1550, %v1833
  %v2057 = vadd.f32 %v1551, %v1835
  %v2058 = vadd.f32 %v1552, %v1837
  %v2059 = vadd.f32 %v1553, %v1841
  %v2060 = vadd.f32 %v1554, %v1843
  %v2061 = vadd.f32 %v1555, %v1845
  %v2062 = vadd.f32 %v1556, %v1847
  %v2063 = vadd.f32 %v1557, %v1851
  %v2064 = vadd.f32 %v1558, %v1853
  %v2065 = vadd.f32 %v1559, %v1855
  %v2066 = vadd.f32 %v1560, %v1857
  %v2067 = vadd.f32 %v1561, %v1861
  %v2068 = vadd.f32 %v1562, %v1863
  %v2069 = vadd.f32 %v1563, %v1865
  %v2070 = vadd.f32 %v1564, %v1867
  %v2071 = vadd.f32 %v1565, %v1871
  %v2072 = vadd.f32 %v1566, %v1873
  %v2073 = vadd.f32 %v1567, %v1875
  %v2074 = vadd.f32 %v1568, %v1877
  %v2075 = vadd.f32 %v1569, %v1881
  %v2076 = vadd.f32 %v1570, %v1883
  %v2077 = vadd.f32 %v1571, %v1885
  %v2078 = vadd.f32 %v1572, %v1887
  %v2079 = vadd.f32 %v1573, %v1891
  %v2080 = vadd.f32 %v1574, %v1893
  %v2081 = vadd.f32 %v1575, %v1895
  %v2082 = vadd.f32 %v1576, %v1897
  %v2083 = vadd.f32 %v1577, %v1901
  %v2084 = vadd.f32 %v1578, %v1903
  %v2085 = vadd.f32 %v1579, %v1905
  %v2086 = vadd.f32 %v1580, %v1907
  %v2087 = vadd.f32 %v1581, %v1911
  %v2088 = vadd.f32 %v1582, %v1913
  %v2089 = vadd.f32 %v1583, %v1915
  %v2090 = vadd.f32 %v1584, %v1917
  %v2091 = vadd.f32 %v1585, %v1921
  %v2092 = vadd.f32 %v1586, %v1923
  %v2093 = vadd.f32 %v1587, %v1925
  %v2094 = vadd.f32 %v1588, %v1927
  %v2095 = vadd.f32 %v1589, %v1931
  %v2096 = vadd.f32 %v1590, %v1933
  %v2097 = vadd.f32 %v1591, %v1935
  %v2098 = vadd.f32 %v1592, %v1937
  %v2099 = vadd.f32 %v1593, %v1941
  %v2100 = vadd.f32 %v1594, %v1943
  %v2101 = vadd.f32 %v1595, %v1945
  %v2102 = vadd.f32 %v1596, %v1947
  %v2103 = vadd.f32 %v1597, %v1951
  %v2104 = vadd.f32 %v1598, %v1953
  %v2105 = vadd.f32 %v1599, %v1955
  %v2106 = vadd.f32 %v1600, %v1957
  %v2107 = vadd.f32 %v1601, %v1961
  %v2108 = vadd.f32 %v1602, %v1963
  %v2109 = vadd.f32 %v1603, %v1965
  %v2110 = vadd.f32 %v1604, %v1967
  %v2111 = vadd.f32 %v1605, %v1971
  %v2112 = vadd.f32 %v1606, %v1973
  %v2113 = vadd.f32 %v1607, %v1975
  %v2114 = vadd.f32 %v1608, %v1977
  %v2115 = vadd.f32 %v1609, %v1981
  %v2116 = vadd.f32 %v1610, %v1983
  %v2117 = vadd.f32 %v1611, %v1985
  %v2118 = vadd.f32 %v1612, %v1987
  %v2119 = vadd.f32 %v1613, %v1991
  %v2120 = vadd.f32 %v1614, %v1993
  %v2121 = vadd.f32 %v1615, %v1995
  %v2122 = vadd.f32 %v1616, %v1997
  %v2123 = vadd.f32 %v1617, %v2001
  %v2124 = vadd.f32 %v1618, %v2003
  %v2125 = vadd.f32 %v1619, %v2005
  %v2126 = vadd.f32 %v1620, %v2007
  %v2127 = vadd.f32 %v1621, %v2011
  %v2128 = vadd.f32 %v1622, %v2013
  %v2129 = vadd.f32 %v1623, %v2015
  %v2130 = vadd.f32 %v1624, %v2017
  %s2131 = scalar_lea.vmem %s1, 384
  %v2132 = vld [vmem:[%s2131] sm:$0xff]
  %v2133 = vld [vmem:[%s2131 + $0x8] sm:$0xff]
  %v2134 = vld [vmem:[%s2131 + $0x10] sm:$0xff]
  %v2135 = vld [vmem:[%s2131 + $0x18] sm:$0xff]
  %v2136 = vld [vmem:[%s2131 + $0x20] sm:$0xff]
  %v2137 = vld [vmem:[%s2131 + $0x28] sm:$0xff]
  %v2138 = vld [vmem:[%s2131 + $0x30] sm:$0xff]
  %v2139 = vld [vmem:[%s2131 + $0x38] sm:$0xff]
  %v2140 = vld [vmem:[%s2131 + $0x40] sm:$0xff]
  %v2141 = vld [vmem:[%s2131 + $0x48] sm:$0xff]
  %v2142 = vld [vmem:[%s2131 + $0x50] sm:$0xff]
  %v2143 = vld [vmem:[%s2131 + $0x58] sm:$0xff]
  %v2146 = vunpack.c.l.b16 %v113
  %v2147 = vunpack.c.l.b16 %v114
  %v2148 = vpack.c.b16 %v2147, %v2146
  %v2161 = vunpack.c.l.b16 %v2132
  %v2162 = vunpack.c.h.b16 %v2132
  %v2163 = vunpack.c.l.b16 %v2133
  %v2164 = vunpack.c.h.b16 %v2133
  %v2165 = vunpack.c.l.b16 %v2134
  %v2166 = vunpack.c.h.b16 %v2134
  %v2167 = vunpack.c.l.b16 %v2135
  %v2168 = vunpack.c.h.b16 %v2135
  %v2169 = vunpack.c.l.b16 %v2136
  %v2170 = vunpack.c.h.b16 %v2136
  %v2171 = vunpack.c.l.b16 %v2137
  %v2172 = vunpack.c.h.b16 %v2137
  %v2173 = vunpack.c.l.b16 %v2138
  %v2174 = vunpack.c.h.b16 %v2138
  %v2175 = vunpack.c.l.b16 %v2139
  %v2176 = vunpack.c.h.b16 %v2139
  %v2177 = vunpack.c.l.b16 %v2140
  %v2178 = vunpack.c.h.b16 %v2140
  %v2179 = vunpack.c.l.b16 %v2141
  %v2180 = vunpack.c.h.b16 %v2141
  %v2181 = vunpack.c.l.b16 %v2142
  %v2182 = vunpack.c.h.b16 %v2142
  %v2183 = vunpack.c.l.b16 %v2143
  %v2184 = vunpack.c.h.b16 %v2143
  %v2185 = vpack.c.b16 %v2163, %v2161
  %v2186 = vpack.c.b16 %v2164, %v2162
  %v2187 = vpack.c.b16 %v2167, %v2165
  %v2188 = vpack.c.b16 %v2168, %v2166
  %v2189 = vpack.c.b16 %v2171, %v2169
  %v2190 = vpack.c.b16 %v2172, %v2170
  %v2191 = vpack.c.b16 %v2175, %v2173
  %v2192 = vpack.c.b16 %v2176, %v2174
  %v2193 = vpack.c.b16 %v2179, %v2177
  %v2194 = vpack.c.b16 %v2180, %v2178
  %v2195 = vpack.c.b16 %v2183, %v2181
  %v2196 = vpack.c.b16 %v2184, %v2182
  %v2210 = vsel %vm340, %v2148, 0
  %2212 = vmatprep.subr.bf16.mxu0 0
  %2213 = vmatpush1.bf16.msra.mxu0 0
  %2214 = vmatprep.subr.bf16.mxu0 0
  %2215 = vmatpush1.bf16.msra.mxu0 0
  %2216 = vmatprep.subr.bf16.mxu0 %v2196
  %2217 = vmatpush1.bf16.msra.mxu0 %v2195
  %2218 = vmatprep.subr.bf16.mxu0 %v2194
  %2219 = vmatpush1.bf16.msra.mxu0 %v2193
  %2220 = vmatprep.subr.bf16.mxu0 %v2192
  %2221 = vmatpush1.bf16.msra.mxu0 %v2191
  %2222 = vmatprep.subr.bf16.mxu0 %v2190
  %2223 = vmatpush1.bf16.msra.mxu0 %v2189
  %2224 = vmatprep.subr.bf16.mxu0 %v2188
  %2225 = vmatpush1.bf16.msra.mxu0 %v2187
  %2226 = vmatprep.subr.bf16.mxu0 %v2186
  %2227 = vmatpush1.bf16.msra.mxu0 %v2185
  %2228 = vmatprep.subr.bf16.mxu0 0
  %2229 = vmatpush2.bf16.msra.mxu0 0
  %2230 = vmatprep.subr.bf16.mxu0 0
  %2231 = vmatpush2.bf16.msra.mxu0 0
  %2232 = vmatprep.subr.bf16.mxu0 0
  %2233 = vmatpush2.bf16.msra.mxu0 0
  %2234 = vmatprep.subr.bf16.mxu0 0
  %2235 = vmatpush2.bf16.msra.mxu0 0
  %2236 = vmatprep.subr.bf16.mxu0 0
  %2237 = vmatpush2.bf16.msra.mxu0 0
  %2238 = vmatprep.subr.bf16.mxu0 0
  %2239 = vmatpush2.bf16.msra.mxu0 0
  %2240 = vmatprep.subr.bf16.mxu0 0
  %2241 = vmatpush2.bf16.msra.mxu0 0
  %2242 = vmatprep.subr.bf16.mxu0 0
  %2243 = vmatpush2.bf16.msra.mxu0 0
  %2244 = vmatprep.mubr.bf16.mxu0 0
  %2245 = vmatmul.mubr.bf16.gmra.mxu0 %v351
  %v2246 = vpop.f32.mrf.mxu0
  %v2247 = vadd.f32 0.0, %v2246
  %v2248 = vpop.f32.mrf.mxu0
  %v2249 = vadd.f32 0.0, %v2248
  %v2250 = vpop.f32.mrf.mxu0
  %v2251 = vadd.f32 0.0, %v2250
  %v2252 = vpop.f32.mrf.mxu0
  %v2253 = vadd.f32 0.0, %v2252
  %2254 = vmatprep.mubr.bf16.mxu0 0
  %2255 = vmatmul.mubr.bf16.gmra.mxu0 %v354
  %v2256 = vpop.f32.mrf.mxu0
  %v2257 = vadd.f32 0.0, %v2256
  %v2258 = vpop.f32.mrf.mxu0
  %v2259 = vadd.f32 0.0, %v2258
  %v2260 = vpop.f32.mrf.mxu0
  %v2261 = vadd.f32 0.0, %v2260
  %v2262 = vpop.f32.mrf.mxu0
  %v2263 = vadd.f32 0.0, %v2262
  %2264 = vmatprep.mubr.bf16.mxu0 0
  %2265 = vmatmul.mubr.bf16.gmra.mxu0 %v357
  %v2266 = vpop.f32.mrf.mxu0
  %v2267 = vadd.f32 0.0, %v2266
  %v2268 = vpop.f32.mrf.mxu0
  %v2269 = vadd.f32 0.0, %v2268
  %v2270 = vpop.f32.mrf.mxu0
  %v2271 = vadd.f32 0.0, %v2270
  %v2272 = vpop.f32.mrf.mxu0
  %v2273 = vadd.f32 0.0, %v2272
  %2274 = vmatprep.mubr.bf16.mxu0 0
  %2275 = vmatmul.mubr.bf16.gmra.mxu0 %v360
  %v2276 = vpop.f32.mrf.mxu0
  %v2277 = vadd.f32 0.0, %v2276
  %v2278 = vpop.f32.mrf.mxu0
  %v2279 = vadd.f32 0.0, %v2278
  %v2280 = vpop.f32.mrf.mxu0
  %v2281 = vadd.f32 0.0, %v2280
  %v2282 = vpop.f32.mrf.mxu0
  %v2283 = vadd.f32 0.0, %v2282
  %2284 = vmatprep.mubr.bf16.mxu0 0
  %2285 = vmatmul.mubr.bf16.gmra.mxu0 %v363
  %v2286 = vpop.f32.mrf.mxu0
  %v2287 = vadd.f32 0.0, %v2286
  %v2288 = vpop.f32.mrf.mxu0
  %v2289 = vadd.f32 0.0, %v2288
  %v2290 = vpop.f32.mrf.mxu0
  %v2291 = vadd.f32 0.0, %v2290
  %v2292 = vpop.f32.mrf.mxu0
  %v2293 = vadd.f32 0.0, %v2292
  %2294 = vmatprep.mubr.bf16.mxu0 0
  %2295 = vmatmul.mubr.bf16.gmra.mxu0 %v366
  %v2296 = vpop.f32.mrf.mxu0
  %v2297 = vadd.f32 0.0, %v2296
  %v2298 = vpop.f32.mrf.mxu0
  %v2299 = vadd.f32 0.0, %v2298
  %v2300 = vpop.f32.mrf.mxu0
  %v2301 = vadd.f32 0.0, %v2300
  %v2302 = vpop.f32.mrf.mxu0
  %v2303 = vadd.f32 0.0, %v2302
  %2304 = vmatprep.mubr.bf16.mxu0 0
  %2305 = vmatmul.mubr.bf16.gmra.mxu0 %v369
  %v2306 = vpop.f32.mrf.mxu0
  %v2307 = vadd.f32 0.0, %v2306
  %v2308 = vpop.f32.mrf.mxu0
  %v2309 = vadd.f32 0.0, %v2308
  %v2310 = vpop.f32.mrf.mxu0
  %v2311 = vadd.f32 0.0, %v2310
  %v2312 = vpop.f32.mrf.mxu0
  %v2313 = vadd.f32 0.0, %v2312
  %2314 = vmatprep.mubr.bf16.mxu0 0
  %2315 = vmatmul.mubr.bf16.gmra.mxu0 %v372
  %v2316 = vpop.f32.mrf.mxu0
  %v2317 = vadd.f32 0.0, %v2316
  %v2318 = vpop.f32.mrf.mxu0
  %v2319 = vadd.f32 0.0, %v2318
  %v2320 = vpop.f32.mrf.mxu0
  %v2321 = vadd.f32 0.0, %v2320
  %v2322 = vpop.f32.mrf.mxu0
  %v2323 = vadd.f32 0.0, %v2322
  %2324 = vmatprep.mubr.bf16.mxu0 0
  %2325 = vmatmul.mubr.bf16.gmra.mxu0 %v375
  %v2326 = vpop.f32.mrf.mxu0
  %v2327 = vadd.f32 0.0, %v2326
  %v2328 = vpop.f32.mrf.mxu0
  %v2329 = vadd.f32 0.0, %v2328
  %v2330 = vpop.f32.mrf.mxu0
  %v2331 = vadd.f32 0.0, %v2330
  %v2332 = vpop.f32.mrf.mxu0
  %v2333 = vadd.f32 0.0, %v2332
  %2334 = vmatprep.mubr.bf16.mxu0 0
  %2335 = vmatmul.mubr.bf16.gmra.mxu0 %v378
  %v2336 = vpop.f32.mrf.mxu0
  %v2337 = vadd.f32 0.0, %v2336
  %v2338 = vpop.f32.mrf.mxu0
  %v2339 = vadd.f32 0.0, %v2338
  %v2340 = vpop.f32.mrf.mxu0
  %v2341 = vadd.f32 0.0, %v2340
  %v2342 = vpop.f32.mrf.mxu0
  %v2343 = vadd.f32 0.0, %v2342
  %2344 = vmatprep.mubr.bf16.mxu0 0
  %2345 = vmatmul.mubr.bf16.gmra.mxu0 %v381
  %v2346 = vpop.f32.mrf.mxu0
  %v2347 = vadd.f32 0.0, %v2346
  %v2348 = vpop.f32.mrf.mxu0
  %v2349 = vadd.f32 0.0, %v2348
  %v2350 = vpop.f32.mrf.mxu0
  %v2351 = vadd.f32 0.0, %v2350
  %v2352 = vpop.f32.mrf.mxu0
  %v2353 = vadd.f32 0.0, %v2352
  %2354 = vmatprep.mubr.bf16.mxu0 0
  %2355 = vmatmul.mubr.bf16.gmra.mxu0 %v384
  %v2356 = vpop.f32.mrf.mxu0
  %v2357 = vadd.f32 0.0, %v2356
  %v2358 = vpop.f32.mrf.mxu0
  %v2359 = vadd.f32 0.0, %v2358
  %v2360 = vpop.f32.mrf.mxu0
  %v2361 = vadd.f32 0.0, %v2360
  %v2362 = vpop.f32.mrf.mxu0
  %v2363 = vadd.f32 0.0, %v2362
  %2364 = vmatprep.mubr.bf16.mxu0 0
  %2365 = vmatmul.mubr.bf16.gmra.mxu0 %v387
  %v2366 = vpop.f32.mrf.mxu0
  %v2367 = vadd.f32 0.0, %v2366
  %v2368 = vpop.f32.mrf.mxu0
  %v2369 = vadd.f32 0.0, %v2368
  %v2370 = vpop.f32.mrf.mxu0
  %v2371 = vadd.f32 0.0, %v2370
  %v2372 = vpop.f32.mrf.mxu0
  %v2373 = vadd.f32 0.0, %v2372
  %2374 = vmatprep.mubr.bf16.mxu0 0
  %2375 = vmatmul.mubr.bf16.gmra.mxu0 %v390
  %v2376 = vpop.f32.mrf.mxu0
  %v2377 = vadd.f32 0.0, %v2376
  %v2378 = vpop.f32.mrf.mxu0
  %v2379 = vadd.f32 0.0, %v2378
  %v2380 = vpop.f32.mrf.mxu0
  %v2381 = vadd.f32 0.0, %v2380
  %v2382 = vpop.f32.mrf.mxu0
  %v2383 = vadd.f32 0.0, %v2382
  %2384 = vmatprep.mubr.bf16.mxu0 0
  %2385 = vmatmul.mubr.bf16.gmra.mxu0 %v393
  %v2386 = vpop.f32.mrf.mxu0
  %v2387 = vadd.f32 0.0, %v2386
  %v2388 = vpop.f32.mrf.mxu0
  %v2389 = vadd.f32 0.0, %v2388
  %v2390 = vpop.f32.mrf.mxu0
  %v2391 = vadd.f32 0.0, %v2390
  %v2392 = vpop.f32.mrf.mxu0
  %v2393 = vadd.f32 0.0, %v2392
  %2394 = vmatprep.mubr.bf16.mxu0 0
  %2395 = vmatmul.mubr.bf16.gmra.mxu0 %v396
  %v2396 = vpop.f32.mrf.mxu0
  %v2397 = vadd.f32 0.0, %v2396
  %v2398 = vpop.f32.mrf.mxu0
  %v2399 = vadd.f32 0.0, %v2398
  %v2400 = vpop.f32.mrf.mxu0
  %v2401 = vadd.f32 0.0, %v2400
  %v2402 = vpop.f32.mrf.mxu0
  %v2403 = vadd.f32 0.0, %v2402
  %2404 = vmatprep.mubr.bf16.mxu0 0
  %2405 = vmatmul.mubr.bf16.gmra.mxu0 %v399
  %v2406 = vpop.f32.mrf.mxu0
  %v2407 = vadd.f32 0.0, %v2406
  %v2408 = vpop.f32.mrf.mxu0
  %v2409 = vadd.f32 0.0, %v2408
  %v2410 = vpop.f32.mrf.mxu0
  %v2411 = vadd.f32 0.0, %v2410
  %v2412 = vpop.f32.mrf.mxu0
  %v2413 = vadd.f32 0.0, %v2412
  %2414 = vmatprep.mubr.bf16.mxu0 0
  %2415 = vmatmul.mubr.bf16.gmra.mxu0 %v402
  %v2416 = vpop.f32.mrf.mxu0
  %v2417 = vadd.f32 0.0, %v2416
  %v2418 = vpop.f32.mrf.mxu0
  %v2419 = vadd.f32 0.0, %v2418
  %v2420 = vpop.f32.mrf.mxu0
  %v2421 = vadd.f32 0.0, %v2420
  %v2422 = vpop.f32.mrf.mxu0
  %v2423 = vadd.f32 0.0, %v2422
  %2424 = vmatprep.mubr.bf16.mxu0 0
  %2425 = vmatmul.mubr.bf16.gmra.mxu0 %v405
  %v2426 = vpop.f32.mrf.mxu0
  %v2427 = vadd.f32 0.0, %v2426
  %v2428 = vpop.f32.mrf.mxu0
  %v2429 = vadd.f32 0.0, %v2428
  %v2430 = vpop.f32.mrf.mxu0
  %v2431 = vadd.f32 0.0, %v2430
  %v2432 = vpop.f32.mrf.mxu0
  %v2433 = vadd.f32 0.0, %v2432
  %2434 = vmatprep.mubr.bf16.mxu0 0
  %2435 = vmatmul.mubr.bf16.gmra.mxu0 %v408
  %v2436 = vpop.f32.mrf.mxu0
  %v2437 = vadd.f32 0.0, %v2436
  %v2438 = vpop.f32.mrf.mxu0
  %v2439 = vadd.f32 0.0, %v2438
  %v2440 = vpop.f32.mrf.mxu0
  %v2441 = vadd.f32 0.0, %v2440
  %v2442 = vpop.f32.mrf.mxu0
  %v2443 = vadd.f32 0.0, %v2442
  %2444 = vmatprep.mubr.bf16.mxu0 0
  %2445 = vmatmul.mubr.bf16.gmra.mxu0 %v411
  %v2446 = vpop.f32.mrf.mxu0
  %v2447 = vadd.f32 0.0, %v2446
  %v2448 = vpop.f32.mrf.mxu0
  %v2449 = vadd.f32 0.0, %v2448
  %v2450 = vpop.f32.mrf.mxu0
  %v2451 = vadd.f32 0.0, %v2450
  %v2452 = vpop.f32.mrf.mxu0
  %v2453 = vadd.f32 0.0, %v2452
  %2454 = vmatprep.mubr.bf16.mxu0 0
  %2455 = vmatmul.mubr.bf16.gmra.mxu0 %v414
  %v2456 = vpop.f32.mrf.mxu0
  %v2457 = vadd.f32 0.0, %v2456
  %v2458 = vpop.f32.mrf.mxu0
  %v2459 = vadd.f32 0.0, %v2458
  %v2460 = vpop.f32.mrf.mxu0
  %v2461 = vadd.f32 0.0, %v2460
  %v2462 = vpop.f32.mrf.mxu0
  %v2463 = vadd.f32 0.0, %v2462
  %2464 = vmatprep.mubr.bf16.mxu0 0
  %2465 = vmatmul.mubr.bf16.gmra.mxu0 %v417
  %v2466 = vpop.f32.mrf.mxu0
  %v2467 = vadd.f32 0.0, %v2466
  %v2468 = vpop.f32.mrf.mxu0
  %v2469 = vadd.f32 0.0, %v2468
  %v2470 = vpop.f32.mrf.mxu0
  %v2471 = vadd.f32 0.0, %v2470
  %v2472 = vpop.f32.mrf.mxu0
  %v2473 = vadd.f32 0.0, %v2472
  %2474 = vmatprep.mubr.bf16.mxu0 0
  %2475 = vmatmul.mubr.bf16.gmra.mxu0 %v420
  %v2476 = vpop.f32.mrf.mxu0
  %v2477 = vadd.f32 0.0, %v2476
  %v2478 = vpop.f32.mrf.mxu0
  %v2479 = vadd.f32 0.0, %v2478
  %v2480 = vpop.f32.mrf.mxu0
  %v2481 = vadd.f32 0.0, %v2480
  %v2482 = vpop.f32.mrf.mxu0
  %v2483 = vadd.f32 0.0, %v2482
  %2484 = vmatprep.mubr.bf16.mxu0 0
  %2485 = vmatmul.mubr.bf16.gmra.mxu0 %v423
  %v2486 = vpop.f32.mrf.mxu0
  %v2487 = vadd.f32 0.0, %v2486
  %v2488 = vpop.f32.mrf.mxu0
  %v2489 = vadd.f32 0.0, %v2488
  %v2490 = vpop.f32.mrf.mxu0
  %v2491 = vadd.f32 0.0, %v2490
  %v2492 = vpop.f32.mrf.mxu0
  %v2493 = vadd.f32 0.0, %v2492
  %2494 = vmatprep.mubr.bf16.mxu0 0
  %2495 = vmatmul.mubr.bf16.gmra.mxu0 %v1198
  %v2496 = vpop.f32.mrf.mxu0
  %v2497 = vadd.f32 0.0, %v2496
  %v2498 = vpop.f32.mrf.mxu0
  %v2499 = vadd.f32 0.0, %v2498
  %v2500 = vpop.f32.mrf.mxu0
  %v2501 = vadd.f32 0.0, %v2500
  %v2502 = vpop.f32.mrf.mxu0
  %v2503 = vadd.f32 0.0, %v2502
  %2504 = vmatprep.mubr.bf16.mxu0 0
  %2505 = vmatmul.mubr.bf16.gmra.mxu0 %v1704
  %v2506 = vpop.f32.mrf.mxu0
  %v2507 = vadd.f32 0.0, %v2506
  %v2508 = vpop.f32.mrf.mxu0
  %v2509 = vadd.f32 0.0, %v2508
  %v2510 = vpop.f32.mrf.mxu0
  %v2511 = vadd.f32 0.0, %v2510
  %v2512 = vpop.f32.mrf.mxu0
  %v2513 = vadd.f32 0.0, %v2512
  %2514 = vmatprep.mubr.bf16.mxu0 0
  %2515 = vmatmul.mubr.bf16.gmra.mxu0 %v2210
  %v2516 = vpop.f32.mrf.mxu0
  %v2517 = vadd.f32 0.0, %v2516
  %v2518 = vpop.f32.mrf.mxu0
  %v2519 = vadd.f32 0.0, %v2518
  %v2520 = vpop.f32.mrf.mxu0
  %v2521 = vadd.f32 0.0, %v2520
  %v2522 = vpop.f32.mrf.mxu0
  %v2523 = vadd.f32 0.0, %v2522
  %2524 = vdwg.mxu0
  %v2525 = vadd.f32 %v2019, %v2247
  %v2526 = vadd.f32 %v2020, %v2249
  %v2527 = vadd.f32 %v2021, %v2251
  %v2528 = vadd.f32 %v2022, %v2253
  %v2529 = vadd.f32 %v2023, %v2257
  %v2530 = vadd.f32 %v2024, %v2259
  %v2531 = vadd.f32 %v2025, %v2261
  %v2532 = vadd.f32 %v2026, %v2263
  %v2533 = vadd.f32 %v2027, %v2267
  %v2534 = vadd.f32 %v2028, %v2269
  %v2535 = vadd.f32 %v2029, %v2271
  %v2536 = vadd.f32 %v2030, %v2273
  %v2537 = vadd.f32 %v2031, %v2277
  %v2538 = vadd.f32 %v2032, %v2279
  %v2539 = vadd.f32 %v2033, %v2281
  %v2540 = vadd.f32 %v2034, %v2283
  %v2541 = vadd.f32 %v2035, %v2287
  %v2542 = vadd.f32 %v2036, %v2289
  %v2543 = vadd.f32 %v2037, %v2291
  %v2544 = vadd.f32 %v2038, %v2293
  %v2545 = vadd.f32 %v2039, %v2297
  %v2546 = vadd.f32 %v2040, %v2299
  %v2547 = vadd.f32 %v2041, %v2301
  %v2548 = vadd.f32 %v2042, %v2303
  %v2549 = vadd.f32 %v2043, %v2307
  %v2550 = vadd.f32 %v2044, %v2309
  %v2551 = vadd.f32 %v2045, %v2311
  %v2552 = vadd.f32 %v2046, %v2313
  %v2553 = vadd.f32 %v2047, %v2317
  %v2554 = vadd.f32 %v2048, %v2319
  %v2555 = vadd.f32 %v2049, %v2321
  %v2556 = vadd.f32 %v2050, %v2323
  %v2557 = vadd.f32 %v2051, %v2327
  %v2558 = vadd.f32 %v2052, %v2329
  %v2559 = vadd.f32 %v2053, %v2331
  %v2560 = vadd.f32 %v2054, %v2333
  %v2561 = vadd.f32 %v2055, %v2337
  %v2562 = vadd.f32 %v2056, %v2339
  %v2563 = vadd.f32 %v2057, %v2341
  %v2564 = vadd.f32 %v2058, %v2343
  %v2565 = vadd.f32 %v2059, %v2347
  %v2566 = vadd.f32 %v2060, %v2349
  %v2567 = vadd.f32 %v2061, %v2351
  %v2568 = vadd.f32 %v2062, %v2353
  %v2569 = vadd.f32 %v2063, %v2357
  %v2570 = vadd.f32 %v2064, %v2359
  %v2571 = vadd.f32 %v2065, %v2361
  %v2572 = vadd.f32 %v2066, %v2363
  %v2573 = vadd.f32 %v2067, %v2367
  %v2574 = vadd.f32 %v2068, %v2369
  %v2575 = vadd.f32 %v2069, %v2371
  %v2576 = vadd.f32 %v2070, %v2373
  %v2577 = vadd.f32 %v2071, %v2377
  %v2578 = vadd.f32 %v2072, %v2379
  %v2579 = vadd.f32 %v2073, %v2381
  %v2580 = vadd.f32 %v2074, %v2383
  %v2581 = vadd.f32 %v2075, %v2387
  %v2582 = vadd.f32 %v2076, %v2389
  %v2583 = vadd.f32 %v2077, %v2391
  %v2584 = vadd.f32 %v2078, %v2393
  %v2585 = vadd.f32 %v2079, %v2397
  %v2586 = vadd.f32 %v2080, %v2399
  %v2587 = vadd.f32 %v2081, %v2401
  %v2588 = vadd.f32 %v2082, %v2403
  %v2589 = vadd.f32 %v2083, %v2407
  %v2590 = vadd.f32 %v2084, %v2409
  %v2591 = vadd.f32 %v2085, %v2411
  %v2592 = vadd.f32 %v2086, %v2413
  %v2593 = vadd.f32 %v2087, %v2417
  %v2594 = vadd.f32 %v2088, %v2419
  %v2595 = vadd.f32 %v2089, %v2421
  %v2596 = vadd.f32 %v2090, %v2423
  %v2597 = vadd.f32 %v2091, %v2427
  %v2598 = vadd.f32 %v2092, %v2429
  %v2599 = vadd.f32 %v2093, %v2431
  %v2600 = vadd.f32 %v2094, %v2433
  %v2601 = vadd.f32 %v2095, %v2437
  %v2602 = vadd.f32 %v2096, %v2439
  %v2603 = vadd.f32 %v2097, %v2441
  %v2604 = vadd.f32 %v2098, %v2443
  %v2605 = vadd.f32 %v2099, %v2447
  %v2606 = vadd.f32 %v2100, %v2449
  %v2607 = vadd.f32 %v2101, %v2451
  %v2608 = vadd.f32 %v2102, %v2453
  %v2609 = vadd.f32 %v2103, %v2457
  %v2610 = vadd.f32 %v2104, %v2459
  %v2611 = vadd.f32 %v2105, %v2461
  %v2612 = vadd.f32 %v2106, %v2463
  %v2613 = vadd.f32 %v2107, %v2467
  %v2614 = vadd.f32 %v2108, %v2469
  %v2615 = vadd.f32 %v2109, %v2471
  %v2616 = vadd.f32 %v2110, %v2473
  %v2617 = vadd.f32 %v2111, %v2477
  %v2618 = vadd.f32 %v2112, %v2479
  %v2619 = vadd.f32 %v2113, %v2481
  %v2620 = vadd.f32 %v2114, %v2483
  %v2621 = vadd.f32 %v2115, %v2487
  %v2622 = vadd.f32 %v2116, %v2489
  %v2623 = vadd.f32 %v2117, %v2491
  %v2624 = vadd.f32 %v2118, %v2493
  %v2625 = vadd.f32 %v2119, %v2497
  %v2626 = vadd.f32 %v2120, %v2499
  %v2627 = vadd.f32 %v2121, %v2501
  %v2628 = vadd.f32 %v2122, %v2503
  %v2629 = vadd.f32 %v2123, %v2507
  %v2630 = vadd.f32 %v2124, %v2509
  %v2631 = vadd.f32 %v2125, %v2511
  %v2632 = vadd.f32 %v2126, %v2513
  %v2633 = vadd.f32 %v2127, %v2517
  %v2634 = vadd.f32 %v2128, %v2519
  %v2635 = vadd.f32 %v2129, %v2521
  %v2636 = vadd.f32 %v2130, %v2523
  %v2637 = vld [vmem:[%s2] sm:$0x3]
  %v2639 = vlaneseq
  %v2640 = vshrl.u32 %v2639, 7
  %v2641 = vsub.s32 0, %v2640
  %v2642 = vrot.slane %v2637, %v2641
  %v2643 = vlaneseq
  %v2644 = vshrl.u32 %v2643, 7
  %v2645 = vsub.s32 1, %v2644
  %v2646 = vrot.slane %v2637, %v2645
  %v2649 = vadd.f32 %v2525, %v2642
  %v2650 = vadd.f32 %v2526, %v2646
  %v2651 = vadd.f32 %v2527, %v2642
  %v2652 = vadd.f32 %v2528, %v2646
  %v2653 = vadd.f32 %v2529, %v2642
  %v2654 = vadd.f32 %v2530, %v2646
  %v2655 = vadd.f32 %v2531, %v2642
  %v2656 = vadd.f32 %v2532, %v2646
  %v2657 = vadd.f32 %v2533, %v2642
  %v2658 = vadd.f32 %v2534, %v2646
  %v2659 = vadd.f32 %v2535, %v2642
  %v2660 = vadd.f32 %v2536, %v2646
  %v2661 = vadd.f32 %v2537, %v2642
  %v2662 = vadd.f32 %v2538, %v2646
  %v2663 = vadd.f32 %v2539, %v2642
  %v2664 = vadd.f32 %v2540, %v2646
  %v2665 = vadd.f32 %v2541, %v2642
  %v2666 = vadd.f32 %v2542, %v2646
  %v2667 = vadd.f32 %v2543, %v2642
  %v2668 = vadd.f32 %v2544, %v2646
  %v2669 = vadd.f32 %v2545, %v2642
  %v2670 = vadd.f32 %v2546, %v2646
  %v2671 = vadd.f32 %v2547, %v2642
  %v2672 = vadd.f32 %v2548, %v2646
  %v2673 = vadd.f32 %v2549, %v2642
  %v2674 = vadd.f32 %v2550, %v2646
  %v2675 = vadd.f32 %v2551, %v2642
  %v2676 = vadd.f32 %v2552, %v2646
  %v2677 = vadd.f32 %v2553, %v2642
  %v2678 = vadd.f32 %v2554, %v2646
  %v2679 = vadd.f32 %v2555, %v2642
  %v2680 = vadd.f32 %v2556, %v2646
  %v2681 = vadd.f32 %v2557, %v2642
  %v2682 = vadd.f32 %v2558, %v2646
  %v2683 = vadd.f32 %v2559, %v2642
  %v2684 = vadd.f32 %v2560, %v2646
  %v2685 = vadd.f32 %v2561, %v2642
  %v2686 = vadd.f32 %v2562, %v2646
  %v2687 = vadd.f32 %v2563, %v2642
  %v2688 = vadd.f32 %v2564, %v2646
  %v2689 = vadd.f32 %v2565, %v2642
  %v2690 = vadd.f32 %v2566, %v2646
  %v2691 = vadd.f32 %v2567, %v2642
  %v2692 = vadd.f32 %v2568, %v2646
  %v2693 = vadd.f32 %v2569, %v2642
  %v2694 = vadd.f32 %v2570, %v2646
  %v2695 = vadd.f32 %v2571, %v2642
  %v2696 = vadd.f32 %v2572, %v2646
  %v2697 = vadd.f32 %v2573, %v2642
  %v2698 = vadd.f32 %v2574, %v2646
  %v2699 = vadd.f32 %v2575, %v2642
  %v2700 = vadd.f32 %v2576, %v2646
  %v2701 = vadd.f32 %v2577, %v2642
  %v2702 = vadd.f32 %v2578, %v2646
  %v2703 = vadd.f32 %v2579, %v2642
  %v2704 = vadd.f32 %v2580, %v2646
  %v2705 = vadd.f32 %v2581, %v2642
  %v2706 = vadd.f32 %v2582, %v2646
  %v2707 = vadd.f32 %v2583, %v2642
  %v2708 = vadd.f32 %v2584, %v2646
  %v2709 = vadd.f32 %v2585, %v2642
  %v2710 = vadd.f32 %v2586, %v2646
  %v2711 = vadd.f32 %v2587, %v2642
  %v2712 = vadd.f32 %v2588, %v2646
  %v2713 = vadd.f32 %v2589, %v2642
  %v2714 = vadd.f32 %v2590, %v2646
  %v2715 = vadd.f32 %v2591, %v2642
  %v2716 = vadd.f32 %v2592, %v2646
  %v2717 = vadd.f32 %v2593, %v2642
  %v2718 = vadd.f32 %v2594, %v2646
  %v2719 = vadd.f32 %v2595, %v2642
  %v2720 = vadd.f32 %v2596, %v2646
  %v2721 = vadd.f32 %v2597, %v2642
  %v2722 = vadd.f32 %v2598, %v2646
  %v2723 = vadd.f32 %v2599, %v2642
  %v2724 = vadd.f32 %v2600, %v2646
  %v2725 = vadd.f32 %v2601, %v2642
  %v2726 = vadd.f32 %v2602, %v2646
  %v2727 = vadd.f32 %v2603, %v2642
  %v2728 = vadd.f32 %v2604, %v2646
  %v2729 = vadd.f32 %v2605, %v2642
  %v2730 = vadd.f32 %v2606, %v2646
  %v2731 = vadd.f32 %v2607, %v2642
  %v2732 = vadd.f32 %v2608, %v2646
  %v2733 = vadd.f32 %v2609, %v2642
  %v2734 = vadd.f32 %v2610, %v2646
  %v2735 = vadd.f32 %v2611, %v2642
  %v2736 = vadd.f32 %v2612, %v2646
  %v2737 = vadd.f32 %v2613, %v2642
  %v2738 = vadd.f32 %v2614, %v2646
  %v2739 = vadd.f32 %v2615, %v2642
  %v2740 = vadd.f32 %v2616, %v2646
  %v2741 = vadd.f32 %v2617, %v2642
  %v2742 = vadd.f32 %v2618, %v2646
  %v2743 = vadd.f32 %v2619, %v2642
  %v2744 = vadd.f32 %v2620, %v2646
  %v2745 = vadd.f32 %v2621, %v2642
  %v2746 = vadd.f32 %v2622, %v2646
  %v2747 = vadd.f32 %v2623, %v2642
  %v2748 = vadd.f32 %v2624, %v2646
  %v2749 = vadd.f32 %v2625, %v2642
  %v2750 = vadd.f32 %v2626, %v2646
  %v2751 = vadd.f32 %v2627, %v2642
  %v2752 = vadd.f32 %v2628, %v2646
  %v2753 = vadd.f32 %v2629, %v2642
  %v2754 = vadd.f32 %v2630, %v2646
  %v2755 = vadd.f32 %v2631, %v2642
  %v2756 = vadd.f32 %v2632, %v2646
  %v2757 = vadd.f32 %v2633, %v2642
  %v2758 = vadd.f32 %v2634, %v2646
  %v2759 = vadd.f32 %v2635, %v2642
  %v2760 = vadd.f32 %v2636, %v2646
  %v2761 = vmax.f32 %v2649, 0.0
  %v2762 = vmax.f32 %v2650, 0.0
  %v2763 = vmax.f32 %v2651, 0.0
  %v2764 = vmax.f32 %v2652, 0.0
  %v2765 = vmax.f32 %v2653, 0.0
  %v2766 = vmax.f32 %v2654, 0.0
  %v2767 = vmax.f32 %v2655, 0.0
  %v2768 = vmax.f32 %v2656, 0.0
  %v2769 = vmax.f32 %v2657, 0.0
  %v2770 = vmax.f32 %v2658, 0.0
  %v2771 = vmax.f32 %v2659, 0.0
  %v2772 = vmax.f32 %v2660, 0.0
  %v2773 = vmax.f32 %v2661, 0.0
  %v2774 = vmax.f32 %v2662, 0.0
  %v2775 = vmax.f32 %v2663, 0.0
  %v2776 = vmax.f32 %v2664, 0.0
  %v2777 = vmax.f32 %v2665, 0.0
  %v2778 = vmax.f32 %v2666, 0.0
  %v2779 = vmax.f32 %v2667, 0.0
  %v2780 = vmax.f32 %v2668, 0.0
  %v2781 = vmax.f32 %v2669, 0.0
  %v2782 = vmax.f32 %v2670, 0.0
  %v2783 = vmax.f32 %v2671, 0.0
  %v2784 = vmax.f32 %v2672, 0.0
  %v2785 = vmax.f32 %v2673, 0.0
  %v2786 = vmax.f32 %v2674, 0.0
  %v2787 = vmax.f32 %v2675, 0.0
  %v2788 = vmax.f32 %v2676, 0.0
  %v2789 = vmax.f32 %v2677, 0.0
  %v2790 = vmax.f32 %v2678, 0.0
  %v2791 = vmax.f32 %v2679, 0.0
  %v2792 = vmax.f32 %v2680, 0.0
  %v2793 = vmax.f32 %v2681, 0.0
  %v2794 = vmax.f32 %v2682, 0.0
  %v2795 = vmax.f32 %v2683, 0.0
  %v2796 = vmax.f32 %v2684, 0.0
  %v2797 = vmax.f32 %v2685, 0.0
  %v2798 = vmax.f32 %v2686, 0.0
  %v2799 = vmax.f32 %v2687, 0.0
  %v2800 = vmax.f32 %v2688, 0.0
  %v2801 = vmax.f32 %v2689, 0.0
  %v2802 = vmax.f32 %v2690, 0.0
  %v2803 = vmax.f32 %v2691, 0.0
  %v2804 = vmax.f32 %v2692, 0.0
  %v2805 = vmax.f32 %v2693, 0.0
  %v2806 = vmax.f32 %v2694, 0.0
  %v2807 = vmax.f32 %v2695, 0.0
  %v2808 = vmax.f32 %v2696, 0.0
  %v2809 = vmax.f32 %v2697, 0.0
  %v2810 = vmax.f32 %v2698, 0.0
  %v2811 = vmax.f32 %v2699, 0.0
  %v2812 = vmax.f32 %v2700, 0.0
  %v2813 = vmax.f32 %v2701, 0.0
  %v2814 = vmax.f32 %v2702, 0.0
  %v2815 = vmax.f32 %v2703, 0.0
  %v2816 = vmax.f32 %v2704, 0.0
  %v2817 = vmax.f32 %v2705, 0.0
  %v2818 = vmax.f32 %v2706, 0.0
  %v2819 = vmax.f32 %v2707, 0.0
  %v2820 = vmax.f32 %v2708, 0.0
  %v2821 = vmax.f32 %v2709, 0.0
  %v2822 = vmax.f32 %v2710, 0.0
  %v2823 = vmax.f32 %v2711, 0.0
  %v2824 = vmax.f32 %v2712, 0.0
  %v2825 = vmax.f32 %v2713, 0.0
  %v2826 = vmax.f32 %v2714, 0.0
  %v2827 = vmax.f32 %v2715, 0.0
  %v2828 = vmax.f32 %v2716, 0.0
  %v2829 = vmax.f32 %v2717, 0.0
  %v2830 = vmax.f32 %v2718, 0.0
  %v2831 = vmax.f32 %v2719, 0.0
  %v2832 = vmax.f32 %v2720, 0.0
  %v2833 = vmax.f32 %v2721, 0.0
  %v2834 = vmax.f32 %v2722, 0.0
  %v2835 = vmax.f32 %v2723, 0.0
  %v2836 = vmax.f32 %v2724, 0.0
  %v2837 = vmax.f32 %v2725, 0.0
  %v2838 = vmax.f32 %v2726, 0.0
  %v2839 = vmax.f32 %v2727, 0.0
  %v2840 = vmax.f32 %v2728, 0.0
  %v2841 = vmax.f32 %v2729, 0.0
  %v2842 = vmax.f32 %v2730, 0.0
  %v2843 = vmax.f32 %v2731, 0.0
  %v2844 = vmax.f32 %v2732, 0.0
  %v2845 = vmax.f32 %v2733, 0.0
  %v2846 = vmax.f32 %v2734, 0.0
  %v2847 = vmax.f32 %v2735, 0.0
  %v2848 = vmax.f32 %v2736, 0.0
  %v2849 = vmax.f32 %v2737, 0.0
  %v2850 = vmax.f32 %v2738, 0.0
  %v2851 = vmax.f32 %v2739, 0.0
  %v2852 = vmax.f32 %v2740, 0.0
  %v2853 = vmax.f32 %v2741, 0.0
  %v2854 = vmax.f32 %v2742, 0.0
  %v2855 = vmax.f32 %v2743, 0.0
  %v2856 = vmax.f32 %v2744, 0.0
  %v2857 = vmax.f32 %v2745, 0.0
  %v2858 = vmax.f32 %v2746, 0.0
  %v2859 = vmax.f32 %v2747, 0.0
  %v2860 = vmax.f32 %v2748, 0.0
  %v2861 = vmax.f32 %v2749, 0.0
  %v2862 = vmax.f32 %v2750, 0.0
  %v2863 = vmax.f32 %v2751, 0.0
  %v2864 = vmax.f32 %v2752, 0.0
  %v2865 = vmax.f32 %v2753, 0.0
  %v2866 = vmax.f32 %v2754, 0.0
  %v2867 = vmax.f32 %v2755, 0.0
  %v2868 = vmax.f32 %v2756, 0.0
  %v2869 = vmax.f32 %v2757, 0.0
  %v2870 = vmax.f32 %v2758, 0.0
  %v2871 = vmax.f32 %v2759, 0.0
  %v2872 = vmax.f32 %v2760, 0.0
  %v2873 = vmax.f32 %v2761, %v2765
  %v2874 = vmax.f32 %v2762, %v2766
  %v2875 = vmax.f32 %v2763, %v2767
  %v2876 = vmax.f32 %v2764, %v2768
  %v2877 = vmax.f32 %v2769, %v2773
  %v2878 = vmax.f32 %v2770, %v2774
  %v2879 = vmax.f32 %v2771, %v2775
  %v2880 = vmax.f32 %v2772, %v2776
  %v2881 = vmax.f32 %v2777, %v2781
  %v2882 = vmax.f32 %v2778, %v2782
  %v2883 = vmax.f32 %v2779, %v2783
  %v2884 = vmax.f32 %v2780, %v2784
  %v2885 = vmax.f32 %v2785, %v2789
  %v2886 = vmax.f32 %v2786, %v2790
  %v2887 = vmax.f32 %v2787, %v2791
  %v2888 = vmax.f32 %v2788, %v2792
  %v2889 = vmax.f32 %v2793, %v2797
  %v2890 = vmax.f32 %v2794, %v2798
  %v2891 = vmax.f32 %v2795, %v2799
  %v2892 = vmax.f32 %v2796, %v2800
  %v2893 = vmax.f32 %v2801, %v2805
  %v2894 = vmax.f32 %v2802, %v2806
  %v2895 = vmax.f32 %v2803, %v2807
  %v2896 = vmax.f32 %v2804, %v2808
  %v2897 = vmax.f32 %v2809, %v2813
  %v2898 = vmax.f32 %v2810, %v2814
  %v2899 = vmax.f32 %v2811, %v2815
  %v2900 = vmax.f32 %v2812, %v2816
  %v2901 = vmax.f32 %v2817, %v2821
  %v2902 = vmax.f32 %v2818, %v2822
  %v2903 = vmax.f32 %v2819, %v2823
  %v2904 = vmax.f32 %v2820, %v2824
  %v2905 = vmax.f32 %v2825, %v2829
  %v2906 = vmax.f32 %v2826, %v2830
  %v2907 = vmax.f32 %v2827, %v2831
  %v2908 = vmax.f32 %v2828, %v2832
  %v2909 = vmax.f32 %v2833, %v2837
  %v2910 = vmax.f32 %v2834, %v2838
  %v2911 = vmax.f32 %v2835, %v2839
  %v2912 = vmax.f32 %v2836, %v2840
  %v2913 = vmax.f32 %v2841, %v2845
  %v2914 = vmax.f32 %v2842, %v2846
  %v2915 = vmax.f32 %v2843, %v2847
  %v2916 = vmax.f32 %v2844, %v2848
  %v2917 = vmax.f32 %v2849, %v2853
  %v2918 = vmax.f32 %v2850, %v2854
  %v2919 = vmax.f32 %v2851, %v2855
  %v2920 = vmax.f32 %v2852, %v2856
  %v2921 = vmax.f32 %v2857, %v2861
  %v2922 = vmax.f32 %v2858, %v2862
  %v2923 = vmax.f32 %v2859, %v2863
  %v2924 = vmax.f32 %v2860, %v2864
  %v2925 = vmax.f32 %v2865, %v2869
  %v2926 = vmax.f32 %v2866, %v2870
  %v2927 = vmax.f32 %v2867, %v2871
  %v2928 = vmax.f32 %v2868, %v2872
  %v2929 = vpack.c.bf16 %v2875, %v2873
  %v2930 = vpack.c.bf16 %v2876, %v2874
  %v2931 = vpack.c.bf16 %v2879, %v2877
  %v2932 = vpack.c.bf16 %v2880, %v2878
  %v2933 = vpack.c.bf16 %v2883, %v2881
  %v2934 = vpack.c.bf16 %v2884, %v2882
  %v2935 = vpack.c.bf16 %v2887, %v2885
  %v2936 = vpack.c.bf16 %v2888, %v2886
  %v2937 = vpack.c.bf16 %v2891, %v2889
  %v2938 = vpack.c.bf16 %v2892, %v2890
  %v2939 = vpack.c.bf16 %v2895, %v2893
  %v2940 = vpack.c.bf16 %v2896, %v2894
  %v2941 = vpack.c.bf16 %v2899, %v2897
  %v2942 = vpack.c.bf16 %v2900, %v2898
  %v2943 = vpack.c.bf16 %v2903, %v2901
  %v2944 = vpack.c.bf16 %v2904, %v2902
  %v2945 = vpack.c.bf16 %v2907, %v2905
  %v2946 = vpack.c.bf16 %v2908, %v2906
  %v2947 = vpack.c.bf16 %v2911, %v2909
  %v2948 = vpack.c.bf16 %v2912, %v2910
  %v2949 = vpack.c.bf16 %v2915, %v2913
  %v2950 = vpack.c.bf16 %v2916, %v2914
  %v2951 = vpack.c.bf16 %v2919, %v2917
  %v2952 = vpack.c.bf16 %v2920, %v2918
  %v2953 = vpack.c.bf16 %v2923, %v2921
  %v2954 = vpack.c.bf16 %v2924, %v2922
  %v2955 = vpack.c.bf16 %v2927, %v2925
  %v2956 = vpack.c.bf16 %v2928, %v2926
  %v2957 = vld [vmem:[%s3] sm:$0xf]
  %v2958 = vld [vmem:[%s3 + $0x4] sm:$0xf]
  %v2959 = vld [vmem:[%s3 + $0x8] sm:$0xf]
  %v2960 = vld [vmem:[%s3 + $0xc] sm:$0xf]
  %v2961 = vld [vmem:[%s3 + $0x10] sm:$0xf]
  %v2962 = vld [vmem:[%s3 + $0x14] sm:$0xf]
  %v2963 = vld [vmem:[%s3 + $0x18] sm:$0xf]
  %v2964 = vld [vmem:[%s3 + $0x1c] sm:$0xf]
  %v2965 = vld [vmem:[%s3 + $0x20] sm:$0xf]
  %v2966 = vld [vmem:[%s3 + $0x24] sm:$0xf]
  %v2967 = vld [vmem:[%s3 + $0x28] sm:$0xf]
  %v2968 = vld [vmem:[%s3 + $0x2c] sm:$0xf]
  %v2969 = vld [vmem:[%s3 + $0x30] sm:$0xf]
  %v2970 = vld [vmem:[%s3 + $0x34] sm:$0xf]
  %v2971 = vld [vmem:[%s3 + $0x38] sm:$0xf]
  %v2972 = vld [vmem:[%s3 + $0x3c] sm:$0xf]
  %v2973 = vld [vmem:[%s3 + $0x40] sm:$0xf]
  %v2974 = vld [vmem:[%s3 + $0x44] sm:$0xf]
  %v2975 = vld [vmem:[%s3 + $0x48] sm:$0xf]
  %v2976 = vld [vmem:[%s3 + $0x4c] sm:$0xf]
  %v2977 = vld [vmem:[%s3 + $0x50] sm:$0xf]
  %v2999 = vunpack.c.l.b16 %v2957
  %v3000 = vunpack.c.l.b16 %v2958
  %v3001 = vunpack.c.l.b16 %v2959
  %v3002 = vunpack.c.l.b16 %v2960
  %v3003 = vunpack.c.l.b16 %v2961
  %v3004 = vunpack.c.l.b16 %v2962
  %v3005 = vunpack.c.l.b16 %v2963
  %v3006 = vunpack.c.l.b16 %v2964
  %v3007 = vunpack.c.l.b16 %v2965
  %v3008 = vunpack.c.l.b16 %v2966
  %v3009 = vunpack.c.l.b16 %v2967
  %v3010 = vunpack.c.l.b16 %v2968
  %v3011 = vunpack.c.l.b16 %v2969
  %v3012 = vunpack.c.l.b16 %v2970
  %v3013 = vunpack.c.l.b16 %v2971
  %v3014 = vunpack.c.l.b16 %v2972
  %v3015 = vunpack.c.l.b16 %v2973
  %v3016 = vunpack.c.l.b16 %v2974
  %v3017 = vunpack.c.l.b16 %v2975
  %v3018 = vunpack.c.l.b16 %v2976
  %v3019 = vunpack.c.l.b16 %v2977
  %v3020 = vpack.c.b16 %v3000, %v2999
  %v3021 = vpack.c.b16 %v3002, %v3001
  %v3022 = vpack.c.b16 %v3004, %v3003
  %v3023 = vpack.c.b16 %v3006, %v3005
  %v3024 = vpack.c.b16 %v3008, %v3007
  %v3025 = vpack.c.b16 %v3010, %v3009
  %v3026 = vpack.c.b16 %v3012, %v3011
  %v3027 = vpack.c.b16 %v3014, %v3013
  %v3028 = vpack.c.b16 %v3016, %v3015
  %v3029 = vpack.c.b16 %v3018, %v3017
  %v3030 = vpack.c.b16 %v3019, %v3019
  %vm3041 = vcmask 326656
  %v3043 = vsel %vm3041, %v2930, 0
  %v3046 = vsel %vm3041, %v2932, 0
  %v3049 = vsel %vm3041, %v2934, 0
  %v3052 = vsel %vm3041, %v2936, 0
  %v3055 = vsel %vm3041, %v2938, 0
  %v3058 = vsel %vm3041, %v2940, 0
  %v3061 = vsel %vm3041, %v2942, 0
  %v3064 = vsel %vm3041, %v2944, 0
  %v3067 = vsel %vm3041, %v2946, 0
  %v3070 = vsel %vm3041, %v2948, 0
  %v3073 = vsel %vm3041, %v2950, 0
  %v3076 = vsel %vm3041, %v2952, 0
  %v3079 = vsel %vm3041, %v2954, 0
  %v3082 = vsel %vm3041, %v2956, 0
  %vm3084 = vcmask 1043456
  %v3086 = vsel %vm3084, %v3030, 0
  %3088 = vmatprep.subr.bf16.mxu0 0
  %3089 = vmatpush1.bf16.msra.mxu0 %v3027
  %3090 = vmatprep.subr.bf16.mxu0 0
  %3091 = vmatpush1.bf16.msra.mxu0 %v3026
  %3092 = vmatprep.subr.bf16.mxu0 0
  %3093 = vmatpush1.bf16.msra.mxu0 %v3025
  %3094 = vmatprep.subr.bf16.mxu0 0
  %3095 = vmatpush1.bf16.msra.mxu0 %v3024
  %3096 = vmatprep.subr.bf16.mxu0 0
  %3097 = vmatpush1.bf16.msra.mxu0 %v3023
  %3098 = vmatprep.subr.bf16.mxu0 0
  %3099 = vmatpush1.bf16.msra.mxu0 %v3022
  %3100 = vmatprep.subr.bf16.mxu0 0
  %3101 = vmatpush1.bf16.msra.mxu0 %v3021
  %3102 = vmatprep.subr.bf16.mxu0 0
  %3103 = vmatpush1.bf16.msra.mxu0 %v3020
  %3104 = vmatprep.subr.bf16.mxu0 0
  %3105 = vmatpush2.bf16.msra.mxu0 0
  %3106 = vmatprep.subr.bf16.mxu0 0
  %3107 = vmatpush2.bf16.msra.mxu0 0
  %3108 = vmatprep.subr.bf16.mxu0 0
  %3109 = vmatpush2.bf16.msra.mxu0 0
  %3110 = vmatprep.subr.bf16.mxu0 0
  %3111 = vmatpush2.bf16.msra.mxu0 0
  %3112 = vmatprep.subr.bf16.mxu0 0
  %3113 = vmatpush2.bf16.msra.mxu0 0
  %3114 = vmatprep.subr.bf16.mxu0 0
  %3115 = vmatpush2.bf16.msra.mxu0 %v3086
  %3116 = vmatprep.subr.bf16.mxu0 0
  %3117 = vmatpush2.bf16.msra.mxu0 %v3029
  %3118 = vmatprep.subr.bf16.mxu0 0
  %3119 = vmatpush2.bf16.msra.mxu0 %v3028
  %3120 = vmatprep.mubr.bf16.mxu0 %v3043
  %3121 = vmatmul.mubr.bf16.gmra.mxu0 %v2929
  %v3122 = vpop.f32.mrf.mxu0
  %v3123 = vadd.f32 0.0, %v3122
  %v3124 = vpop.f32.mrf.mxu0
  %v3125 = vpop.f32.mrf.mxu0
  %v3126 = vadd.f32 0.0, %v3125
  %v3127 = vpop.f32.mrf.mxu0
  %3128 = vmatprep.mubr.bf16.mxu0 %v3046
  %3129 = vmatmul.mubr.bf16.gmra.mxu0 %v2931
  %v3130 = vpop.f32.mrf.mxu0
  %v3131 = vadd.f32 0.0, %v3130
  %v3132 = vpop.f32.mrf.mxu0
  %v3133 = vpop.f32.mrf.mxu0
  %v3134 = vadd.f32 0.0, %v3133
  %v3135 = vpop.f32.mrf.mxu0
  %3136 = vmatprep.mubr.bf16.mxu0 %v3049
  %3137 = vmatmul.mubr.bf16.gmra.mxu0 %v2933
  %v3138 = vpop.f32.mrf.mxu0
  %v3139 = vadd.f32 0.0, %v3138
  %v3140 = vpop.f32.mrf.mxu0
  %v3141 = vpop.f32.mrf.mxu0
  %v3142 = vadd.f32 0.0, %v3141
  %v3143 = vpop.f32.mrf.mxu0
  %3144 = vmatprep.mubr.bf16.mxu0 %v3052
  %3145 = vmatmul.mubr.bf16.gmra.mxu0 %v2935
  %v3146 = vpop.f32.mrf.mxu0
  %v3147 = vadd.f32 0.0, %v3146
  %v3148 = vpop.f32.mrf.mxu0
  %v3149 = vpop.f32.mrf.mxu0
  %v3150 = vadd.f32 0.0, %v3149
  %v3151 = vpop.f32.mrf.mxu0
  %3152 = vmatprep.mubr.bf16.mxu0 %v3055
  %3153 = vmatmul.mubr.bf16.gmra.mxu0 %v2937
  %v3154 = vpop.f32.mrf.mxu0
  %v3155 = vadd.f32 0.0, %v3154
  %v3156 = vpop.f32.mrf.mxu0
  %v3157 = vpop.f32.mrf.mxu0
  %v3158 = vadd.f32 0.0, %v3157
  %v3159 = vpop.f32.mrf.mxu0
  %3160 = vmatprep.mubr.bf16.mxu0 %v3058
  %3161 = vmatmul.mubr.bf16.gmra.mxu0 %v2939
  %v3162 = vpop.f32.mrf.mxu0
  %v3163 = vadd.f32 0.0, %v3162
  %v3164 = vpop.f32.mrf.mxu0
  %v3165 = vpop.f32.mrf.mxu0
  %v3166 = vadd.f32 0.0, %v3165
  %v3167 = vpop.f32.mrf.mxu0
  %3168 = vmatprep.mubr.bf16.mxu0 %v3061
  %3169 = vmatmul.mubr.bf16.gmra.mxu0 %v2941
  %v3170 = vpop.f32.mrf.mxu0
  %v3171 = vadd.f32 0.0, %v3170
  %v3172 = vpop.f32.mrf.mxu0
  %v3173 = vpop.f32.mrf.mxu0
  %v3174 = vadd.f32 0.0, %v3173
  %v3175 = vpop.f32.mrf.mxu0
  %3176 = vmatprep.mubr.bf16.mxu0 %v3064
  %3177 = vmatmul.mubr.bf16.gmra.mxu0 %v2943
  %v3178 = vpop.f32.mrf.mxu0
  %v3179 = vadd.f32 0.0, %v3178
  %v3180 = vpop.f32.mrf.mxu0
  %v3181 = vpop.f32.mrf.mxu0
  %v3182 = vadd.f32 0.0, %v3181
  %v3183 = vpop.f32.mrf.mxu0
  %3184 = vmatprep.mubr.bf16.mxu0 %v3067
  %3185 = vmatmul.mubr.bf16.gmra.mxu0 %v2945
  %v3186 = vpop.f32.mrf.mxu0
  %v3187 = vadd.f32 0.0, %v3186
  %v3188 = vpop.f32.mrf.mxu0
  %v3189 = vpop.f32.mrf.mxu0
  %v3190 = vadd.f32 0.0, %v3189
  %v3191 = vpop.f32.mrf.mxu0
  %3192 = vmatprep.mubr.bf16.mxu0 %v3070
  %3193 = vmatmul.mubr.bf16.gmra.mxu0 %v2947
  %v3194 = vpop.f32.mrf.mxu0
  %v3195 = vadd.f32 0.0, %v3194
  %v3196 = vpop.f32.mrf.mxu0
  %v3197 = vpop.f32.mrf.mxu0
  %v3198 = vadd.f32 0.0, %v3197
  %v3199 = vpop.f32.mrf.mxu0
  %3200 = vmatprep.mubr.bf16.mxu0 %v3073
  %3201 = vmatmul.mubr.bf16.gmra.mxu0 %v2949
  %v3202 = vpop.f32.mrf.mxu0
  %v3203 = vadd.f32 0.0, %v3202
  %v3204 = vpop.f32.mrf.mxu0
  %v3205 = vpop.f32.mrf.mxu0
  %v3206 = vadd.f32 0.0, %v3205
  %v3207 = vpop.f32.mrf.mxu0
  %3208 = vmatprep.mubr.bf16.mxu0 %v3076
  %3209 = vmatmul.mubr.bf16.gmra.mxu0 %v2951
  %v3210 = vpop.f32.mrf.mxu0
  %v3211 = vadd.f32 0.0, %v3210
  %v3212 = vpop.f32.mrf.mxu0
  %v3213 = vpop.f32.mrf.mxu0
  %v3214 = vadd.f32 0.0, %v3213
  %v3215 = vpop.f32.mrf.mxu0
  %3216 = vmatprep.mubr.bf16.mxu0 %v3079
  %3217 = vmatmul.mubr.bf16.gmra.mxu0 %v2953
  %v3218 = vpop.f32.mrf.mxu0
  %v3219 = vadd.f32 0.0, %v3218
  %v3220 = vpop.f32.mrf.mxu0
  %v3221 = vpop.f32.mrf.mxu0
  %v3222 = vadd.f32 0.0, %v3221
  %v3223 = vpop.f32.mrf.mxu0
  %3224 = vmatprep.mubr.bf16.mxu0 %v3082
  %3225 = vmatmul.mubr.bf16.gmra.mxu0 %v2955
  %v3226 = vpop.f32.mrf.mxu0
  %v3227 = vadd.f32 0.0, %v3226
  %v3228 = vpop.f32.mrf.mxu0
  %v3229 = vpop.f32.mrf.mxu0
  %v3230 = vadd.f32 0.0, %v3229
  %v3231 = vpop.f32.mrf.mxu0
  %3232 = vdwg.mxu0
  %v3233 = vld [vmem:[%s4] sm:$0xf]
  %v3234 = vld [vmem:[%s4 + $0x4] sm:$0xf]
  %v3235 = vld [vmem:[%s4 + $0x8] sm:$0xf]
  %v3236 = vld [vmem:[%s4 + $0xc] sm:$0xf]
  %v3237 = vld [vmem:[%s4 + $0x10] sm:$0xf]
  %v3238 = vld [vmem:[%s4 + $0x14] sm:$0xf]
  %v3239 = vld [vmem:[%s4 + $0x18] sm:$0xf]
  %v3240 = vld [vmem:[%s4 + $0x1c] sm:$0xf]
  %v3241 = vld [vmem:[%s4 + $0x20] sm:$0xf]
  %v3242 = vld [vmem:[%s4 + $0x24] sm:$0xf]
  %v3243 = vld [vmem:[%s4 + $0x28] sm:$0xf]
  %v3244 = vld [vmem:[%s4 + $0x2c] sm:$0xf]
  %v3245 = vld [vmem:[%s4 + $0x30] sm:$0xf]
  %v3246 = vld [vmem:[%s4 + $0x34] sm:$0xf]
  %v3247 = vld [vmem:[%s4 + $0x38] sm:$0xf]
  %v3248 = vld [vmem:[%s4 + $0x3c] sm:$0xf]
  %v3249 = vld [vmem:[%s4 + $0x40] sm:$0xf]
  %v3250 = vld [vmem:[%s4 + $0x44] sm:$0xf]
  %v3251 = vld [vmem:[%s4 + $0x48] sm:$0xf]
  %v3252 = vld [vmem:[%s4 + $0x4c] sm:$0xf]
  %v3253 = vld [vmem:[%s4 + $0x50] sm:$0xf]
  %v3275 = vunpack.c.l.b16 %v3233
  %v3276 = vunpack.c.l.b16 %v3234
  %v3277 = vunpack.c.l.b16 %v3235
  %v3278 = vunpack.c.l.b16 %v3236
  %v3279 = vunpack.c.l.b16 %v3237
  %v3280 = vunpack.c.l.b16 %v3238
  %v3281 = vunpack.c.l.b16 %v3239
  %v3282 = vunpack.c.l.b16 %v3240
  %v3283 = vunpack.c.l.b16 %v3241
  %v3284 = vunpack.c.l.b16 %v3242
  %v3285 = vunpack.c.l.b16 %v3243
  %v3286 = vunpack.c.l.b16 %v3244
  %v3287 = vunpack.c.l.b16 %v3245
  %v3288 = vunpack.c.l.b16 %v3246
  %v3289 = vunpack.c.l.b16 %v3247
  %v3290 = vunpack.c.l.b16 %v3248
  %v3291 = vunpack.c.l.b16 %v3249
  %v3292 = vunpack.c.l.b16 %v3250
  %v3293 = vunpack.c.l.b16 %v3251
  %v3294 = vunpack.c.l.b16 %v3252
  %v3295 = vunpack.c.l.b16 %v3253
  %v3296 = vpack.c.b16 %v3276, %v3275
  %v3297 = vpack.c.b16 %v3278, %v3277
  %v3298 = vpack.c.b16 %v3280, %v3279
  %v3299 = vpack.c.b16 %v3282, %v3281
  %v3300 = vpack.c.b16 %v3284, %v3283
  %v3301 = vpack.c.b16 %v3286, %v3285
  %v3302 = vpack.c.b16 %v3288, %v3287
  %v3303 = vpack.c.b16 %v3290, %v3289
  %v3304 = vpack.c.b16 %v3292, %v3291
  %v3305 = vpack.c.b16 %v3294, %v3293
  %v3306 = vpack.c.b16 %v3295, %v3295
  %v3318 = vsel %vm3084, %v3306, 0
  %3320 = vmatprep.subr.bf16.mxu0 0
  %3321 = vmatpush1.bf16.msra.mxu0 %v3303
  %3322 = vmatprep.subr.bf16.mxu0 0
  %3323 = vmatpush1.bf16.msra.mxu0 %v3302
  %3324 = vmatprep.subr.bf16.mxu0 0
  %3325 = vmatpush1.bf16.msra.mxu0 %v3301
  %3326 = vmatprep.subr.bf16.mxu0 0
  %3327 = vmatpush1.bf16.msra.mxu0 %v3300
  %3328 = vmatprep.subr.bf16.mxu0 0
  %3329 = vmatpush1.bf16.msra.mxu0 %v3299
  %3330 = vmatprep.subr.bf16.mxu0 0
  %3331 = vmatpush1.bf16.msra.mxu0 %v3298
  %3332 = vmatprep.subr.bf16.mxu0 0
  %3333 = vmatpush1.bf16.msra.mxu0 %v3297
  %3334 = vmatprep.subr.bf16.mxu0 0
  %3335 = vmatpush1.bf16.msra.mxu0 %v3296
  %3336 = vmatprep.subr.bf16.mxu0 0
  %3337 = vmatpush2.bf16.msra.mxu0 0
  %3338 = vmatprep.subr.bf16.mxu0 0
  %3339 = vmatpush2.bf16.msra.mxu0 0
  %3340 = vmatprep.subr.bf16.mxu0 0
  %3341 = vmatpush2.bf16.msra.mxu0 0
  %3342 = vmatprep.subr.bf16.mxu0 0
  %3343 = vmatpush2.bf16.msra.mxu0 0
  %3344 = vmatprep.subr.bf16.mxu0 0
  %3345 = vmatpush2.bf16.msra.mxu0 0
  %3346 = vmatprep.subr.bf16.mxu0 0
  %3347 = vmatpush2.bf16.msra.mxu0 %v3318
  %3348 = vmatprep.subr.bf16.mxu0 0
  %3349 = vmatpush2.bf16.msra.mxu0 %v3305
  %3350 = vmatprep.subr.bf16.mxu0 0
  %3351 = vmatpush2.bf16.msra.mxu0 %v3304
  %3352 = vmatprep.mubr.bf16.mxu0 %v3043
  %3353 = vmatmul.mubr.bf16.gmra.mxu0 %v2929
  %v3354 = vpop.f32.mrf.mxu0
  %v3355 = vadd.f32 0.0, %v3354
  %v3356 = vpop.f32.mrf.mxu0
  %v3357 = vpop.f32.mrf.mxu0
  %v3358 = vadd.f32 0.0, %v3357
  %v3359 = vpop.f32.mrf.mxu0
  %3360 = vmatprep.mubr.bf16.mxu0 %v3046
  %3361 = vmatmul.mubr.bf16.gmra.mxu0 %v2931
  %v3362 = vpop.f32.mrf.mxu0
  %v3363 = vadd.f32 0.0, %v3362
  %v3364 = vpop.f32.mrf.mxu0
  %v3365 = vpop.f32.mrf.mxu0
  %v3366 = vadd.f32 0.0, %v3365
  %v3367 = vpop.f32.mrf.mxu0
  %3368 = vmatprep.mubr.bf16.mxu0 %v3049
  %3369 = vmatmul.mubr.bf16.gmra.mxu0 %v2933
  %v3370 = vpop.f32.mrf.mxu0
  %v3371 = vadd.f32 0.0, %v3370
  %v3372 = vpop.f32.mrf.mxu0
  %v3373 = vpop.f32.mrf.mxu0
  %v3374 = vadd.f32 0.0, %v3373
  %v3375 = vpop.f32.mrf.mxu0
  %3376 = vmatprep.mubr.bf16.mxu0 %v3052
  %3377 = vmatmul.mubr.bf16.gmra.mxu0 %v2935
  %v3378 = vpop.f32.mrf.mxu0
  %v3379 = vadd.f32 0.0, %v3378
  %v3380 = vpop.f32.mrf.mxu0
  %v3381 = vpop.f32.mrf.mxu0
  %v3382 = vadd.f32 0.0, %v3381
  %v3383 = vpop.f32.mrf.mxu0
  %3384 = vmatprep.mubr.bf16.mxu0 %v3055
  %3385 = vmatmul.mubr.bf16.gmra.mxu0 %v2937
  %v3386 = vpop.f32.mrf.mxu0
  %v3387 = vadd.f32 0.0, %v3386
  %v3388 = vpop.f32.mrf.mxu0
  %v3389 = vpop.f32.mrf.mxu0
  %v3390 = vadd.f32 0.0, %v3389
  %v3391 = vpop.f32.mrf.mxu0
  %3392 = vmatprep.mubr.bf16.mxu0 %v3058
  %3393 = vmatmul.mubr.bf16.gmra.mxu0 %v2939
  %v3394 = vpop.f32.mrf.mxu0
  %v3395 = vadd.f32 0.0, %v3394
  %v3396 = vpop.f32.mrf.mxu0
  %v3397 = vpop.f32.mrf.mxu0
  %v3398 = vadd.f32 0.0, %v3397
  %v3399 = vpop.f32.mrf.mxu0
  %3400 = vmatprep.mubr.bf16.mxu0 %v3061
  %3401 = vmatmul.mubr.bf16.gmra.mxu0 %v2941
  %v3402 = vpop.f32.mrf.mxu0
  %v3403 = vadd.f32 0.0, %v3402
  %v3404 = vpop.f32.mrf.mxu0
  %v3405 = vpop.f32.mrf.mxu0
  %v3406 = vadd.f32 0.0, %v3405
  %v3407 = vpop.f32.mrf.mxu0
  %3408 = vmatprep.mubr.bf16.mxu0 %v3064
  %3409 = vmatmul.mubr.bf16.gmra.mxu0 %v2943
  %v3410 = vpop.f32.mrf.mxu0
  %v3411 = vadd.f32 0.0, %v3410
  %v3412 = vpop.f32.mrf.mxu0
  %v3413 = vpop.f32.mrf.mxu0
  %v3414 = vadd.f32 0.0, %v3413
  %v3415 = vpop.f32.mrf.mxu0
  %3416 = vmatprep.mubr.bf16.mxu0 %v3067
  %3417 = vmatmul.mubr.bf16.gmra.mxu0 %v2945
  %v3418 = vpop.f32.mrf.mxu0
  %v3419 = vadd.f32 0.0, %v3418
  %v3420 = vpop.f32.mrf.mxu0
  %v3421 = vpop.f32.mrf.mxu0
  %v3422 = vadd.f32 0.0, %v3421
  %v3423 = vpop.f32.mrf.mxu0
  %3424 = vmatprep.mubr.bf16.mxu0 %v3070
  %3425 = vmatmul.mubr.bf16.gmra.mxu0 %v2947
  %v3426 = vpop.f32.mrf.mxu0
  %v3427 = vadd.f32 0.0, %v3426
  %v3428 = vpop.f32.mrf.mxu0
  %v3429 = vpop.f32.mrf.mxu0
  %v3430 = vadd.f32 0.0, %v3429
  %v3431 = vpop.f32.mrf.mxu0
  %3432 = vmatprep.mubr.bf16.mxu0 %v3073
  %3433 = vmatmul.mubr.bf16.gmra.mxu0 %v2949
  %v3434 = vpop.f32.mrf.mxu0
  %v3435 = vadd.f32 0.0, %v3434
  %v3436 = vpop.f32.mrf.mxu0
  %v3437 = vpop.f32.mrf.mxu0
  %v3438 = vadd.f32 0.0, %v3437
  %v3439 = vpop.f32.mrf.mxu0
  %3440 = vmatprep.mubr.bf16.mxu0 %v3076
  %3441 = vmatmul.mubr.bf16.gmra.mxu0 %v2951
  %v3442 = vpop.f32.mrf.mxu0
  %v3443 = vadd.f32 0.0, %v3442
  %v3444 = vpop.f32.mrf.mxu0
  %v3445 = vpop.f32.mrf.mxu0
  %v3446 = vadd.f32 0.0, %v3445
  %v3447 = vpop.f32.mrf.mxu0
  %3448 = vmatprep.mubr.bf16.mxu0 %v3079
  %3449 = vmatmul.mubr.bf16.gmra.mxu0 %v2953
  %v3450 = vpop.f32.mrf.mxu0
  %v3451 = vadd.f32 0.0, %v3450
  %v3452 = vpop.f32.mrf.mxu0
  %v3453 = vpop.f32.mrf.mxu0
  %v3454 = vadd.f32 0.0, %v3453
  %v3455 = vpop.f32.mrf.mxu0
  %3456 = vmatprep.mubr.bf16.mxu0 %v3082
  %3457 = vmatmul.mubr.bf16.gmra.mxu0 %v2955
  %v3458 = vpop.f32.mrf.mxu0
  %v3459 = vadd.f32 0.0, %v3458
  %v3460 = vpop.f32.mrf.mxu0
  %v3461 = vpop.f32.mrf.mxu0
  %v3462 = vadd.f32 0.0, %v3461
  %v3463 = vpop.f32.mrf.mxu0
  %3464 = vdwg.mxu0
  %v3465 = vmax.f32 %v3123, %v3355
  %v3466 = vmax.f32 %v3126, %v3358
  %v3467 = vmax.f32 %v3131, %v3363
  %v3468 = vmax.f32 %v3134, %v3366
  %v3469 = vmax.f32 %v3139, %v3371
  %v3470 = vmax.f32 %v3142, %v3374
  %v3471 = vmax.f32 %v3147, %v3379
  %v3472 = vmax.f32 %v3150, %v3382
  %v3473 = vmax.f32 %v3155, %v3387
  %v3474 = vmax.f32 %v3158, %v3390
  %v3475 = vmax.f32 %v3163, %v3395
  %v3476 = vmax.f32 %v3166, %v3398
  %v3477 = vmax.f32 %v3171, %v3403
  %v3478 = vmax.f32 %v3174, %v3406
  %v3479 = vmax.f32 %v3179, %v3411
  %v3480 = vmax.f32 %v3182, %v3414
  %v3481 = vmax.f32 %v3187, %v3419
  %v3482 = vmax.f32 %v3190, %v3422
  %v3483 = vmax.f32 %v3195, %v3427
  %v3484 = vmax.f32 %v3198, %v3430
  %v3485 = vmax.f32 %v3203, %v3435
  %v3486 = vmax.f32 %v3206, %v3438
  %v3487 = vmax.f32 %v3211, %v3443
  %v3488 = vmax.f32 %v3214, %v3446
  %v3489 = vmax.f32 %v3219, %v3451
  %v3490 = vmax.f32 %v3222, %v3454
  %v3491 = vmax.f32 %v3227, %v3459
  %v3492 = vmax.f32 %v3230, %v3462
  %v3493 = vpack.c.bf16 %v3466, %v3465
  %v3494 = vpack.c.bf16 %v3468, %v3467
  %v3495 = vpack.c.bf16 %v3470, %v3469
  %v3496 = vpack.c.bf16 %v3472, %v3471
  %v3497 = vpack.c.bf16 %v3474, %v3473
  %v3498 = vpack.c.bf16 %v3476, %v3475
  %v3499 = vpack.c.bf16 %v3478, %v3477
  %v3500 = vpack.c.bf16 %v3480, %v3479
  %v3501 = vpack.c.bf16 %v3482, %v3481
  %v3502 = vpack.c.bf16 %v3484, %v3483
  %v3503 = vpack.c.bf16 %v3486, %v3485
  %v3504 = vpack.c.bf16 %v3488, %v3487
  %v3505 = vpack.c.bf16 %v3490, %v3489
  %v3506 = vpack.c.bf16 %v3492, %v3491
  %v3507 = vld [vmem:[%s5] sm:$0xff]
  %v3508 = vld [vmem:[%s5 + $0x8] sm:$0xff]
  %v3509 = vld [vmem:[%s5 + $0x10] sm:$0xff]
  %v3510 = vld [vmem:[%s5 + $0x18] sm:$0xff]
  %v3511 = vld [vmem:[%s5 + $0x20] sm:$0xff]
  %v3512 = vld [vmem:[%s5 + $0x28] sm:$0xff]
  %v3513 = vld [vmem:[%s5 + $0x30] sm:$0xff]
  %v3514 = vld [vmem:[%s5 + $0x38] sm:$0xff]
  %v3515 = vld [vmem:[%s5 + $0x40] sm:$0xff]
  %v3516 = vld [vmem:[%s5 + $0x48] sm:$0xff]
  %v3517 = vld [vmem:[%s5 + $0x50] sm:$0x33]
  %s3518 = scalar_lea.vmem %s5, 88
  %v3519 = vld [vmem:[%s3518] sm:$0xff]
  %v3520 = vld [vmem:[%s3518 + $0x8] sm:$0xff]
  %v3521 = vld [vmem:[%s3518 + $0x10] sm:$0xff]
  %v3522 = vld [vmem:[%s3518 + $0x18] sm:$0xff]
  %v3523 = vld [vmem:[%s3518 + $0x20] sm:$0xff]
  %v3524 = vld [vmem:[%s3518 + $0x28] sm:$0xff]
  %v3525 = vld [vmem:[%s3518 + $0x30] sm:$0xff]
  %v3526 = vld [vmem:[%s3518 + $0x38] sm:$0xff]
  %v3527 = vld [vmem:[%s3518 + $0x40] sm:$0xff]
  %v3528 = vld [vmem:[%s3518 + $0x48] sm:$0xff]
  %v3529 = vld [vmem:[%s3518 + $0x50] sm:$0x33]
  %v3541 = vunpack.c.l.b16 %v3519
  %v3542 = vunpack.c.h.b16 %v3519
  %v3543 = vunpack.c.l.b16 %v3520
  %v3544 = vunpack.c.h.b16 %v3520
  %v3545 = vunpack.c.l.b16 %v3521
  %v3546 = vunpack.c.h.b16 %v3521
  %v3547 = vunpack.c.l.b16 %v3522
  %v3548 = vunpack.c.h.b16 %v3522
  %v3549 = vunpack.c.l.b16 %v3523
  %v3550 = vunpack.c.h.b16 %v3523
  %v3551 = vunpack.c.l.b16 %v3524
  %v3552 = vunpack.c.h.b16 %v3524
  %v3553 = vunpack.c.l.b16 %v3525
  %v3554 = vunpack.c.h.b16 %v3525
  %v3555 = vunpack.c.l.b16 %v3526
  %v3556 = vunpack.c.h.b16 %v3526
  %v3557 = vunpack.c.l.b16 %v3527
  %v3558 = vunpack.c.h.b16 %v3527
  %v3559 = vunpack.c.l.b16 %v3528
  %v3560 = vunpack.c.h.b16 %v3528
  %v3561 = vunpack.c.l.b16 %v3529
  %v3562 = vunpack.c.h.b16 %v3529
  %v3563 = vpack.c.b16 %v3543, %v3541
  %v3564 = vpack.c.b16 %v3544, %v3542
  %v3565 = vpack.c.b16 %v3547, %v3545
  %v3566 = vpack.c.b16 %v3548, %v3546
  %v3567 = vpack.c.b16 %v3551, %v3549
  %v3568 = vpack.c.b16 %v3552, %v3550
  %v3569 = vpack.c.b16 %v3555, %v3553
  %v3570 = vpack.c.b16 %v3556, %v3554
  %v3571 = vpack.c.b16 %v3559, %v3557
  %v3572 = vpack.c.b16 %v3560, %v3558
  %v3573 = vpack.c.b16 %v3561, %v3561
  %v3574 = vpack.c.b16 %v3562, %v3562
  %vm3585 = vcmask 687104
  %v3587 = vsel %vm3585, %v3494, 0
  %v3590 = vsel %vm3585, %v3495, 0
  %v3593 = vsel %vm3585, %v3496, 0
  %v3596 = vsel %vm3585, %v3497, 0
  %v3599 = vsel %vm3585, %v3498, 0
  %v3602 = vsel %vm3585, %v3499, 0
  %v3605 = vsel %vm3585, %v3500, 0
  %v3608 = vsel %vm3585, %v3501, 0
  %v3611 = vsel %vm3585, %v3502, 0
  %v3614 = vsel %vm3585, %v3503, 0
  %vm3616 = vcmask 1041408
  %v3618 = vsel %vm3616, %v3573, 0
  %v3621 = vsel %vm3616, %v3574, 0
  %3623 = vmatprep.subr.bf16.mxu0 0
  %3624 = vmatpush1.bf16.msra.mxu0 0
  %3625 = vmatprep.subr.bf16.mxu0 0
  %3626 = vmatpush1.bf16.msra.mxu0 0
  %3627 = vmatprep.subr.bf16.mxu0 %v3621
  %3628 = vmatpush1.bf16.msra.mxu0 %v3618
  %3629 = vmatprep.subr.bf16.mxu0 %v3572
  %3630 = vmatpush1.bf16.msra.mxu0 %v3571
  %3631 = vmatprep.subr.bf16.mxu0 %v3570
  %3632 = vmatpush1.bf16.msra.mxu0 %v3569
  %3633 = vmatprep.subr.bf16.mxu0 %v3568
  %3634 = vmatpush1.bf16.msra.mxu0 %v3567
  %3635 = vmatprep.subr.bf16.mxu0 %v3566
  %3636 = vmatpush1.bf16.msra.mxu0 %v3565
  %3637 = vmatprep.subr.bf16.mxu0 %v3564
  %3638 = vmatpush1.bf16.msra.mxu0 %v3563
  %3639 = vmatprep.subr.bf16.mxu0 0
  %3640 = vmatpush2.bf16.msra.mxu0 0
  %3641 = vmatprep.subr.bf16.mxu0 0
  %3642 = vmatpush2.bf16.msra.mxu0 0
  %3643 = vmatprep.subr.bf16.mxu0 0
  %3644 = vmatpush2.bf16.msra.mxu0 0
  %3645 = vmatprep.subr.bf16.mxu0 0
  %3646 = vmatpush2.bf16.msra.mxu0 0
  %3647 = vmatprep.subr.bf16.mxu0 0
  %3648 = vmatpush2.bf16.msra.mxu0 0
  %3649 = vmatprep.subr.bf16.mxu0 0
  %3650 = vmatpush2.bf16.msra.mxu0 0
  %3651 = vmatprep.subr.bf16.mxu0 0
  %3652 = vmatpush2.bf16.msra.mxu0 0
  %3653 = vmatprep.subr.bf16.mxu0 0
  %3654 = vmatpush2.bf16.msra.mxu0 0
  %3655 = vmatprep.mubr.bf16.mxu0 0
  %3656 = vmatmul.mubr.bf16.gmra.mxu0 %v3587
  %v3657 = vpop.f32.mrf.mxu0
  %v3658 = vadd.f32 0.0, %v3657
  %v3659 = vpop.f32.mrf.mxu0
  %v3660 = vadd.f32 0.0, %v3659
  %v3661 = vpop.f32.mrf.mxu0
  %v3662 = vadd.f32 0.0, %v3661
  %v3663 = vpop.f32.mrf.mxu0
  %v3664 = vadd.f32 0.0, %v3663
  %3665 = vmatprep.mubr.bf16.mxu0 0
  %3666 = vmatmul.mubr.bf16.gmra.mxu0 %v3590
  %v3667 = vpop.f32.mrf.mxu0
  %v3668 = vadd.f32 0.0, %v3667
  %v3669 = vpop.f32.mrf.mxu0
  %v3670 = vadd.f32 0.0, %v3669
  %v3671 = vpop.f32.mrf.mxu0
  %v3672 = vadd.f32 0.0, %v3671
  %v3673 = vpop.f32.mrf.mxu0
  %v3674 = vadd.f32 0.0, %v3673
  %3675 = vmatprep.mubr.bf16.mxu0 0
  %3676 = vmatmul.mubr.bf16.gmra.mxu0 %v3593
  %v3677 = vpop.f32.mrf.mxu0
  %v3678 = vadd.f32 0.0, %v3677
  %v3679 = vpop.f32.mrf.mxu0
  %v3680 = vadd.f32 0.0, %v3679
  %v3681 = vpop.f32.mrf.mxu0
  %v3682 = vadd.f32 0.0, %v3681
  %v3683 = vpop.f32.mrf.mxu0
  %v3684 = vadd.f32 0.0, %v3683
  %3685 = vmatprep.mubr.bf16.mxu0 0
  %3686 = vmatmul.mubr.bf16.gmra.mxu0 %v3596
  %v3687 = vpop.f32.mrf.mxu0
  %v3688 = vadd.f32 0.0, %v3687
  %v3689 = vpop.f32.mrf.mxu0
  %v3690 = vadd.f32 0.0, %v3689
  %v3691 = vpop.f32.mrf.mxu0
  %v3692 = vadd.f32 0.0, %v3691
  %v3693 = vpop.f32.mrf.mxu0
  %v3694 = vadd.f32 0.0, %v3693
  %3695 = vmatprep.mubr.bf16.mxu0 0
  %3696 = vmatmul.mubr.bf16.gmra.mxu0 %v3599
  %v3697 = vpop.f32.mrf.mxu0
  %v3698 = vadd.f32 0.0, %v3697
  %v3699 = vpop.f32.mrf.mxu0
  %v3700 = vadd.f32 0.0, %v3699
  %v3701 = vpop.f32.mrf.mxu0
  %v3702 = vadd.f32 0.0, %v3701
  %v3703 = vpop.f32.mrf.mxu0
  %v3704 = vadd.f32 0.0, %v3703
  %3705 = vmatprep.mubr.bf16.mxu0 0
  %3706 = vmatmul.mubr.bf16.gmra.mxu0 %v3602
  %v3707 = vpop.f32.mrf.mxu0
  %v3708 = vadd.f32 0.0, %v3707
  %v3709 = vpop.f32.mrf.mxu0
  %v3710 = vadd.f32 0.0, %v3709
  %v3711 = vpop.f32.mrf.mxu0
  %v3712 = vadd.f32 0.0, %v3711
  %v3713 = vpop.f32.mrf.mxu0
  %v3714 = vadd.f32 0.0, %v3713
  %3715 = vmatprep.mubr.bf16.mxu0 0
  %3716 = vmatmul.mubr.bf16.gmra.mxu0 %v3605
  %v3717 = vpop.f32.mrf.mxu0
  %v3718 = vadd.f32 0.0, %v3717
  %v3719 = vpop.f32.mrf.mxu0
  %v3720 = vadd.f32 0.0, %v3719
  %v3721 = vpop.f32.mrf.mxu0
  %v3722 = vadd.f32 0.0, %v3721
  %v3723 = vpop.f32.mrf.mxu0
  %v3724 = vadd.f32 0.0, %v3723
  %3725 = vmatprep.mubr.bf16.mxu0 0
  %3726 = vmatmul.mubr.bf16.gmra.mxu0 %v3608
  %v3727 = vpop.f32.mrf.mxu0
  %v3728 = vadd.f32 0.0, %v3727
  %v3729 = vpop.f32.mrf.mxu0
  %v3730 = vadd.f32 0.0, %v3729
  %v3731 = vpop.f32.mrf.mxu0
  %v3732 = vadd.f32 0.0, %v3731
  %v3733 = vpop.f32.mrf.mxu0
  %v3734 = vadd.f32 0.0, %v3733
  %3735 = vmatprep.mubr.bf16.mxu0 0
  %3736 = vmatmul.mubr.bf16.gmra.mxu0 %v3611
  %v3737 = vpop.f32.mrf.mxu0
  %v3738 = vadd.f32 0.0, %v3737
  %v3739 = vpop.f32.mrf.mxu0
  %v3740 = vadd.f32 0.0, %v3739
  %v3741 = vpop.f32.mrf.mxu0
  %v3742 = vadd.f32 0.0, %v3741
  %v3743 = vpop.f32.mrf.mxu0
  %v3744 = vadd.f32 0.0, %v3743
  %3745 = vmatprep.mubr.bf16.mxu0 0
  %3746 = vmatmul.mubr.bf16.gmra.mxu0 %v3614
  %v3747 = vpop.f32.mrf.mxu0
  %v3748 = vadd.f32 0.0, %v3747
  %v3749 = vpop.f32.mrf.mxu0
  %v3750 = vadd.f32 0.0, %v3749
  %v3751 = vpop.f32.mrf.mxu0
  %v3752 = vadd.f32 0.0, %v3751
  %v3753 = vpop.f32.mrf.mxu0
  %v3754 = vadd.f32 0.0, %v3753
  %3755 = vdwg.mxu0
  %v3767 = vunpack.c.l.b16 %v3507
  %v3768 = vunpack.c.h.b16 %v3507
  %v3769 = vunpack.c.l.b16 %v3508
  %v3770 = vunpack.c.h.b16 %v3508
  %v3771 = vunpack.c.l.b16 %v3509
  %v3772 = vunpack.c.h.b16 %v3509
  %v3773 = vunpack.c.l.b16 %v3510
  %v3774 = vunpack.c.h.b16 %v3510
  %v3775 = vunpack.c.l.b16 %v3511
  %v3776 = vunpack.c.h.b16 %v3511
  %v3777 = vunpack.c.l.b16 %v3512
  %v3778 = vunpack.c.h.b16 %v3512
  %v3779 = vunpack.c.l.b16 %v3513
  %v3780 = vunpack.c.h.b16 %v3513
  %v3781 = vunpack.c.l.b16 %v3514
  %v3782 = vunpack.c.h.b16 %v3514
  %v3783 = vunpack.c.l.b16 %v3515
  %v3784 = vunpack.c.h.b16 %v3515
  %v3785 = vunpack.c.l.b16 %v3516
  %v3786 = vunpack.c.h.b16 %v3516
  %v3787 = vunpack.c.l.b16 %v3517
  %v3788 = vunpack.c.h.b16 %v3517
  %v3789 = vpack.c.b16 %v3769, %v3767
  %v3790 = vpack.c.b16 %v3770, %v3768
  %v3791 = vpack.c.b16 %v3773, %v3771
  %v3792 = vpack.c.b16 %v3774, %v3772
  %v3793 = vpack.c.b16 %v3777, %v3775
  %v3794 = vpack.c.b16 %v3778, %v3776
  %v3795 = vpack.c.b16 %v3781, %v3779
  %v3796 = vpack.c.b16 %v3782, %v3780
  %v3797 = vpack.c.b16 %v3785, %v3783
  %v3798 = vpack.c.b16 %v3786, %v3784
  %v3799 = vpack.c.b16 %v3787, %v3787
  %v3800 = vpack.c.b16 %v3788, %v3788
  %v3812 = vsel %vm3585, %v3493, 0
  %v3815 = vsel %vm3616, %v3799, 0
  %v3818 = vsel %vm3616, %v3800, 0
  %3820 = vmatprep.subr.bf16.mxu0 0
  %3821 = vmatpush1.bf16.msra.mxu0 0
  %3822 = vmatprep.subr.bf16.mxu0 0
  %3823 = vmatpush1.bf16.msra.mxu0 0
  %3824 = vmatprep.subr.bf16.mxu0 %v3818
  %3825 = vmatpush1.bf16.msra.mxu0 %v3815
  %3826 = vmatprep.subr.bf16.mxu0 %v3798
  %3827 = vmatpush1.bf16.msra.mxu0 %v3797
  %3828 = vmatprep.subr.bf16.mxu0 %v3796
  %3829 = vmatpush1.bf16.msra.mxu0 %v3795
  %3830 = vmatprep.subr.bf16.mxu0 %v3794
  %3831 = vmatpush1.bf16.msra.mxu0 %v3793
  %3832 = vmatprep.subr.bf16.mxu0 %v3792
  %3833 = vmatpush1.bf16.msra.mxu0 %v3791
  %3834 = vmatprep.subr.bf16.mxu0 %v3790
  %3835 = vmatpush1.bf16.msra.mxu0 %v3789
  %3836 = vmatprep.subr.bf16.mxu0 0
  %3837 = vmatpush2.bf16.msra.mxu0 0
  %3838 = vmatprep.subr.bf16.mxu0 0
  %3839 = vmatpush2.bf16.msra.mxu0 0
  %3840 = vmatprep.subr.bf16.mxu0 0
  %3841 = vmatpush2.bf16.msra.mxu0 0
  %3842 = vmatprep.subr.bf16.mxu0 0
  %3843 = vmatpush2.bf16.msra.mxu0 0
  %3844 = vmatprep.subr.bf16.mxu0 0
  %3845 = vmatpush2.bf16.msra.mxu0 0
  %3846 = vmatprep.subr.bf16.mxu0 0
  %3847 = vmatpush2.bf16.msra.mxu0 0
  %3848 = vmatprep.subr.bf16.mxu0 0
  %3849 = vmatpush2.bf16.msra.mxu0 0
  %3850 = vmatprep.subr.bf16.mxu0 0
  %3851 = vmatpush2.bf16.msra.mxu0 0
  %3852 = vmatprep.mubr.bf16.mxu0 0
  %3853 = vmatmul.mubr.bf16.gmra.mxu0 %v3812
  %v3854 = vpop.f32.mrf.mxu0
  %v3855 = vadd.f32 %v3658, %v3854
  %v3856 = vpop.f32.mrf.mxu0
  %v3857 = vadd.f32 %v3660, %v3856
  %v3858 = vpop.f32.mrf.mxu0
  %v3859 = vadd.f32 %v3662, %v3858
  %v3860 = vpop.f32.mrf.mxu0
  %v3861 = vadd.f32 %v3664, %v3860
  %3862 = vmatprep.mubr.bf16.mxu0 0
  %3863 = vmatmul.mubr.bf16.gmra.mxu0 %v3587
  %v3864 = vpop.f32.mrf.mxu0
  %v3865 = vadd.f32 %v3668, %v3864
  %v3866 = vpop.f32.mrf.mxu0
  %v3867 = vadd.f32 %v3670, %v3866
  %v3868 = vpop.f32.mrf.mxu0
  %v3869 = vadd.f32 %v3672, %v3868
  %v3870 = vpop.f32.mrf.mxu0
  %v3871 = vadd.f32 %v3674, %v3870
  %3872 = vmatprep.mubr.bf16.mxu0 0
  %3873 = vmatmul.mubr.bf16.gmra.mxu0 %v3590
  %v3874 = vpop.f32.mrf.mxu0
  %v3875 = vadd.f32 %v3678, %v3874
  %v3876 = vpop.f32.mrf.mxu0
  %v3877 = vadd.f32 %v3680, %v3876
  %v3878 = vpop.f32.mrf.mxu0
  %v3879 = vadd.f32 %v3682, %v3878
  %v3880 = vpop.f32.mrf.mxu0
  %v3881 = vadd.f32 %v3684, %v3880
  %3882 = vmatprep.mubr.bf16.mxu0 0
  %3883 = vmatmul.mubr.bf16.gmra.mxu0 %v3593
  %v3884 = vpop.f32.mrf.mxu0
  %v3885 = vadd.f32 %v3688, %v3884
  %v3886 = vpop.f32.mrf.mxu0
  %v3887 = vadd.f32 %v3690, %v3886
  %v3888 = vpop.f32.mrf.mxu0
  %v3889 = vadd.f32 %v3692, %v3888
  %v3890 = vpop.f32.mrf.mxu0
  %v3891 = vadd.f32 %v3694, %v3890
  %3892 = vmatprep.mubr.bf16.mxu0 0
  %3893 = vmatmul.mubr.bf16.gmra.mxu0 %v3596
  %v3894 = vpop.f32.mrf.mxu0
  %v3895 = vadd.f32 %v3698, %v3894
  %v3896 = vpop.f32.mrf.mxu0
  %v3897 = vadd.f32 %v3700, %v3896
  %v3898 = vpop.f32.mrf.mxu0
  %v3899 = vadd.f32 %v3702, %v3898
  %v3900 = vpop.f32.mrf.mxu0
  %v3901 = vadd.f32 %v3704, %v3900
  %3902 = vmatprep.mubr.bf16.mxu0 0
  %3903 = vmatmul.mubr.bf16.gmra.mxu0 %v3599
  %v3904 = vpop.f32.mrf.mxu0
  %v3905 = vadd.f32 %v3708, %v3904
  %v3906 = vpop.f32.mrf.mxu0
  %v3907 = vadd.f32 %v3710, %v3906
  %v3908 = vpop.f32.mrf.mxu0
  %v3909 = vadd.f32 %v3712, %v3908
  %v3910 = vpop.f32.mrf.mxu0
  %v3911 = vadd.f32 %v3714, %v3910
  %3912 = vmatprep.mubr.bf16.mxu0 0
  %3913 = vmatmul.mubr.bf16.gmra.mxu0 %v3602
  %v3914 = vpop.f32.mrf.mxu0
  %v3915 = vadd.f32 %v3718, %v3914
  %v3916 = vpop.f32.mrf.mxu0
  %v3917 = vadd.f32 %v3720, %v3916
  %v3918 = vpop.f32.mrf.mxu0
  %v3919 = vadd.f32 %v3722, %v3918
  %v3920 = vpop.f32.mrf.mxu0
  %v3921 = vadd.f32 %v3724, %v3920
  %3922 = vmatprep.mubr.bf16.mxu0 0
  %3923 = vmatmul.mubr.bf16.gmra.mxu0 %v3605
  %v3924 = vpop.f32.mrf.mxu0
  %v3925 = vadd.f32 %v3728, %v3924
  %v3926 = vpop.f32.mrf.mxu0
  %v3927 = vadd.f32 %v3730, %v3926
  %v3928 = vpop.f32.mrf.mxu0
  %v3929 = vadd.f32 %v3732, %v3928
  %v3930 = vpop.f32.mrf.mxu0
  %v3931 = vadd.f32 %v3734, %v3930
  %3932 = vmatprep.mubr.bf16.mxu0 0
  %3933 = vmatmul.mubr.bf16.gmra.mxu0 %v3608
  %v3934 = vpop.f32.mrf.mxu0
  %v3935 = vadd.f32 %v3738, %v3934
  %v3936 = vpop.f32.mrf.mxu0
  %v3937 = vadd.f32 %v3740, %v3936
  %v3938 = vpop.f32.mrf.mxu0
  %v3939 = vadd.f32 %v3742, %v3938
  %v3940 = vpop.f32.mrf.mxu0
  %v3941 = vadd.f32 %v3744, %v3940
  %3942 = vmatprep.mubr.bf16.mxu0 0
  %3943 = vmatmul.mubr.bf16.gmra.mxu0 %v3611
  %v3944 = vpop.f32.mrf.mxu0
  %v3945 = vadd.f32 %v3748, %v3944
  %v3946 = vpop.f32.mrf.mxu0
  %v3947 = vadd.f32 %v3750, %v3946
  %v3948 = vpop.f32.mrf.mxu0
  %v3949 = vadd.f32 %v3752, %v3948
  %v3950 = vpop.f32.mrf.mxu0
  %v3951 = vadd.f32 %v3754, %v3950
  %3952 = vdwg.mxu0
  %s3953 = scalar_lea.vmem %s5, 176
  %v3954 = vld [vmem:[%s3953] sm:$0xff]
  %v3955 = vld [vmem:[%s3953 + $0x8] sm:$0xff]
  %v3956 = vld [vmem:[%s3953 + $0x10] sm:$0xff]
  %v3957 = vld [vmem:[%s3953 + $0x18] sm:$0xff]
  %v3958 = vld [vmem:[%s3953 + $0x20] sm:$0xff]
  %v3959 = vld [vmem:[%s3953 + $0x28] sm:$0xff]
  %v3960 = vld [vmem:[%s3953 + $0x30] sm:$0xff]
  %v3961 = vld [vmem:[%s3953 + $0x38] sm:$0xff]
  %v3962 = vld [vmem:[%s3953 + $0x40] sm:$0xff]
  %v3963 = vld [vmem:[%s3953 + $0x48] sm:$0xff]
  %v3964 = vld [vmem:[%s3953 + $0x50] sm:$0x33]
  %v3976 = vunpack.c.l.b16 %v3954
  %v3977 = vunpack.c.h.b16 %v3954
  %v3978 = vunpack.c.l.b16 %v3955
  %v3979 = vunpack.c.h.b16 %v3955
  %v3980 = vunpack.c.l.b16 %v3956
  %v3981 = vunpack.c.h.b16 %v3956
  %v3982 = vunpack.c.l.b16 %v3957
  %v3983 = vunpack.c.h.b16 %v3957
  %v3984 = vunpack.c.l.b16 %v3958
  %v3985 = vunpack.c.h.b16 %v3958
  %v3986 = vunpack.c.l.b16 %v3959
  %v3987 = vunpack.c.h.b16 %v3959
  %v3988 = vunpack.c.l.b16 %v3960
  %v3989 = vunpack.c.h.b16 %v3960
  %v3990 = vunpack.c.l.b16 %v3961
  %v3991 = vunpack.c.h.b16 %v3961
  %v3992 = vunpack.c.l.b16 %v3962
  %v3993 = vunpack.c.h.b16 %v3962
  %v3994 = vunpack.c.l.b16 %v3963
  %v3995 = vunpack.c.h.b16 %v3963
  %v3996 = vunpack.c.l.b16 %v3964
  %v3997 = vunpack.c.h.b16 %v3964
  %v3998 = vpack.c.b16 %v3978, %v3976
  %v3999 = vpack.c.b16 %v3979, %v3977
  %v4000 = vpack.c.b16 %v3982, %v3980
  %v4001 = vpack.c.b16 %v3983, %v3981
  %v4002 = vpack.c.b16 %v3986, %v3984
  %v4003 = vpack.c.b16 %v3987, %v3985
  %v4004 = vpack.c.b16 %v3990, %v3988
  %v4005 = vpack.c.b16 %v3991, %v3989
  %v4006 = vpack.c.b16 %v3994, %v3992
  %v4007 = vpack.c.b16 %v3995, %v3993
  %v4008 = vpack.c.b16 %v3996, %v3996
  %v4009 = vpack.c.b16 %v3997, %v3997
  %v4021 = vsel %vm3585, %v3504, 0
  %v4024 = vsel %vm3616, %v4008, 0
  %v4027 = vsel %vm3616, %v4009, 0
  %4029 = vmatprep.subr.bf16.mxu0 0
  %4030 = vmatpush1.bf16.msra.mxu0 0
  %4031 = vmatprep.subr.bf16.mxu0 0
  %4032 = vmatpush1.bf16.msra.mxu0 0
  %4033 = vmatprep.subr.bf16.mxu0 %v4027
  %4034 = vmatpush1.bf16.msra.mxu0 %v4024
  %4035 = vmatprep.subr.bf16.mxu0 %v4007
  %4036 = vmatpush1.bf16.msra.mxu0 %v4006
  %4037 = vmatprep.subr.bf16.mxu0 %v4005
  %4038 = vmatpush1.bf16.msra.mxu0 %v4004
  %4039 = vmatprep.subr.bf16.mxu0 %v4003
  %4040 = vmatpush1.bf16.msra.mxu0 %v4002
  %4041 = vmatprep.subr.bf16.mxu0 %v4001
  %4042 = vmatpush1.bf16.msra.mxu0 %v4000
  %4043 = vmatprep.subr.bf16.mxu0 %v3999
  %4044 = vmatpush1.bf16.msra.mxu0 %v3998
  %4045 = vmatprep.subr.bf16.mxu0 0
  %4046 = vmatpush2.bf16.msra.mxu0 0
  %4047 = vmatprep.subr.bf16.mxu0 0
  %4048 = vmatpush2.bf16.msra.mxu0 0
  %4049 = vmatprep.subr.bf16.mxu0 0
  %4050 = vmatpush2.bf16.msra.mxu0 0
  %4051 = vmatprep.subr.bf16.mxu0 0
  %4052 = vmatpush2.bf16.msra.mxu0 0
  %4053 = vmatprep.subr.bf16.mxu0 0
  %4054 = vmatpush2.bf16.msra.mxu0 0
  %4055 = vmatprep.subr.bf16.mxu0 0
  %4056 = vmatpush2.bf16.msra.mxu0 0
  %4057 = vmatprep.subr.bf16.mxu0 0
  %4058 = vmatpush2.bf16.msra.mxu0 0
  %4059 = vmatprep.subr.bf16.mxu0 0
  %4060 = vmatpush2.bf16.msra.mxu0 0
  %4061 = vmatprep.mubr.bf16.mxu0 0
  %4062 = vmatmul.mubr.bf16.gmra.mxu0 %v3590
  %v4063 = vpop.f32.mrf.mxu0
  %v4064 = vadd.f32 0.0, %v4063
  %v4065 = vpop.f32.mrf.mxu0
  %v4066 = vadd.f32 0.0, %v4065
  %v4067 = vpop.f32.mrf.mxu0
  %v4068 = vadd.f32 0.0, %v4067
  %v4069 = vpop.f32.mrf.mxu0
  %v4070 = vadd.f32 0.0, %v4069
  %4071 = vmatprep.mubr.bf16.mxu0 0
  %4072 = vmatmul.mubr.bf16.gmra.mxu0 %v3593
  %v4073 = vpop.f32.mrf.mxu0
  %v4074 = vadd.f32 0.0, %v4073
  %v4075 = vpop.f32.mrf.mxu0
  %v4076 = vadd.f32 0.0, %v4075
  %v4077 = vpop.f32.mrf.mxu0
  %v4078 = vadd.f32 0.0, %v4077
  %v4079 = vpop.f32.mrf.mxu0
  %v4080 = vadd.f32 0.0, %v4079
  %4081 = vmatprep.mubr.bf16.mxu0 0
  %4082 = vmatmul.mubr.bf16.gmra.mxu0 %v3596
  %v4083 = vpop.f32.mrf.mxu0
  %v4084 = vadd.f32 0.0, %v4083
  %v4085 = vpop.f32.mrf.mxu0
  %v4086 = vadd.f32 0.0, %v4085
  %v4087 = vpop.f32.mrf.mxu0
  %v4088 = vadd.f32 0.0, %v4087
  %v4089 = vpop.f32.mrf.mxu0
  %v4090 = vadd.f32 0.0, %v4089
  %4091 = vmatprep.mubr.bf16.mxu0 0
  %4092 = vmatmul.mubr.bf16.gmra.mxu0 %v3599
  %v4093 = vpop.f32.mrf.mxu0
  %v4094 = vadd.f32 0.0, %v4093
  %v4095 = vpop.f32.mrf.mxu0
  %v4096 = vadd.f32 0.0, %v4095
  %v4097 = vpop.f32.mrf.mxu0
  %v4098 = vadd.f32 0.0, %v4097
  %v4099 = vpop.f32.mrf.mxu0
  %v4100 = vadd.f32 0.0, %v4099
  %4101 = vmatprep.mubr.bf16.mxu0 0
  %4102 = vmatmul.mubr.bf16.gmra.mxu0 %v3602
  %v4103 = vpop.f32.mrf.mxu0
  %v4104 = vadd.f32 0.0, %v4103
  %v4105 = vpop.f32.mrf.mxu0
  %v4106 = vadd.f32 0.0, %v4105
  %v4107 = vpop.f32.mrf.mxu0
  %v4108 = vadd.f32 0.0, %v4107
  %v4109 = vpop.f32.mrf.mxu0
  %v4110 = vadd.f32 0.0, %v4109
  %4111 = vmatprep.mubr.bf16.mxu0 0
  %4112 = vmatmul.mubr.bf16.gmra.mxu0 %v3605
  %v4113 = vpop.f32.mrf.mxu0
  %v4114 = vadd.f32 0.0, %v4113
  %v4115 = vpop.f32.mrf.mxu0
  %v4116 = vadd.f32 0.0, %v4115
  %v4117 = vpop.f32.mrf.mxu0
  %v4118 = vadd.f32 0.0, %v4117
  %v4119 = vpop.f32.mrf.mxu0
  %v4120 = vadd.f32 0.0, %v4119
  %4121 = vmatprep.mubr.bf16.mxu0 0
  %4122 = vmatmul.mubr.bf16.gmra.mxu0 %v3608
  %v4123 = vpop.f32.mrf.mxu0
  %v4124 = vadd.f32 0.0, %v4123
  %v4125 = vpop.f32.mrf.mxu0
  %v4126 = vadd.f32 0.0, %v4125
  %v4127 = vpop.f32.mrf.mxu0
  %v4128 = vadd.f32 0.0, %v4127
  %v4129 = vpop.f32.mrf.mxu0
  %v4130 = vadd.f32 0.0, %v4129
  %4131 = vmatprep.mubr.bf16.mxu0 0
  %4132 = vmatmul.mubr.bf16.gmra.mxu0 %v3611
  %v4133 = vpop.f32.mrf.mxu0
  %v4134 = vadd.f32 0.0, %v4133
  %v4135 = vpop.f32.mrf.mxu0
  %v4136 = vadd.f32 0.0, %v4135
  %v4137 = vpop.f32.mrf.mxu0
  %v4138 = vadd.f32 0.0, %v4137
  %v4139 = vpop.f32.mrf.mxu0
  %v4140 = vadd.f32 0.0, %v4139
  %4141 = vmatprep.mubr.bf16.mxu0 0
  %4142 = vmatmul.mubr.bf16.gmra.mxu0 %v3614
  %v4143 = vpop.f32.mrf.mxu0
  %v4144 = vadd.f32 0.0, %v4143
  %v4145 = vpop.f32.mrf.mxu0
  %v4146 = vadd.f32 0.0, %v4145
  %v4147 = vpop.f32.mrf.mxu0
  %v4148 = vadd.f32 0.0, %v4147
  %v4149 = vpop.f32.mrf.mxu0
  %v4150 = vadd.f32 0.0, %v4149
  %4151 = vmatprep.mubr.bf16.mxu0 0
  %4152 = vmatmul.mubr.bf16.gmra.mxu0 %v4021
  %v4153 = vpop.f32.mrf.mxu0
  %v4154 = vadd.f32 0.0, %v4153
  %v4155 = vpop.f32.mrf.mxu0
  %v4156 = vadd.f32 0.0, %v4155
  %v4157 = vpop.f32.mrf.mxu0
  %v4158 = vadd.f32 0.0, %v4157
  %v4159 = vpop.f32.mrf.mxu0
  %v4160 = vadd.f32 0.0, %v4159
  %4161 = vdwg.mxu0
  %v4162 = vadd.f32 %v3855, %v4064
  %v4163 = vadd.f32 %v3857, %v4066
  %v4164 = vadd.f32 %v3859, %v4068
  %v4165 = vadd.f32 %v3861, %v4070
  %v4166 = vadd.f32 %v3865, %v4074
  %v4167 = vadd.f32 %v3867, %v4076
  %v4168 = vadd.f32 %v3869, %v4078
  %v4169 = vadd.f32 %v3871, %v4080
  %v4170 = vadd.f32 %v3875, %v4084
  %v4171 = vadd.f32 %v3877, %v4086
  %v4172 = vadd.f32 %v3879, %v4088
  %v4173 = vadd.f32 %v3881, %v4090
  %v4174 = vadd.f32 %v3885, %v4094
  %v4175 = vadd.f32 %v3887, %v4096
  %v4176 = vadd.f32 %v3889, %v4098
  %v4177 = vadd.f32 %v3891, %v4100
  %v4178 = vadd.f32 %v3895, %v4104
  %v4179 = vadd.f32 %v3897, %v4106
  %v4180 = vadd.f32 %v3899, %v4108
  %v4181 = vadd.f32 %v3901, %v4110
  %v4182 = vadd.f32 %v3905, %v4114
  %v4183 = vadd.f32 %v3907, %v4116
  %v4184 = vadd.f32 %v3909, %v4118
  %v4185 = vadd.f32 %v3911, %v4120
  %v4186 = vadd.f32 %v3915, %v4124
  %v4187 = vadd.f32 %v3917, %v4126
  %v4188 = vadd.f32 %v3919, %v4128
  %v4189 = vadd.f32 %v3921, %v4130
  %v4190 = vadd.f32 %v3925, %v4134
  %v4191 = vadd.f32 %v3927, %v4136
  %v4192 = vadd.f32 %v3929, %v4138
  %v4193 = vadd.f32 %v3931, %v4140
  %v4194 = vadd.f32 %v3935, %v4144
  %v4195 = vadd.f32 %v3937, %v4146
  %v4196 = vadd.f32 %v3939, %v4148
  %v4197 = vadd.f32 %v3941, %v4150
  %v4198 = vadd.f32 %v3945, %v4154
  %v4199 = vadd.f32 %v3947, %v4156
  %v4200 = vadd.f32 %v3949, %v4158
  %v4201 = vadd.f32 %v3951, %v4160
  %s4202 = scalar_lea.vmem %s5, 264
  %v4203 = vld [vmem:[%s4202] sm:$0xff]
  %v4204 = vld [vmem:[%s4202 + $0x8] sm:$0xff]
  %v4205 = vld [vmem:[%s4202 + $0x10] sm:$0xff]
  %v4206 = vld [vmem:[%s4202 + $0x18] sm:$0xff]
  %v4207 = vld [vmem:[%s4202 + $0x20] sm:$0xff]
  %v4208 = vld [vmem:[%s4202 + $0x28] sm:$0xff]
  %v4209 = vld [vmem:[%s4202 + $0x30] sm:$0xff]
  %v4210 = vld [vmem:[%s4202 + $0x38] sm:$0xff]
  %v4211 = vld [vmem:[%s4202 + $0x40] sm:$0xff]
  %v4212 = vld [vmem:[%s4202 + $0x48] sm:$0xff]
  %v4213 = vld [vmem:[%s4202 + $0x50] sm:$0x33]
  %v4225 = vunpack.c.l.b16 %v4203
  %v4226 = vunpack.c.h.b16 %v4203
  %v4227 = vunpack.c.l.b16 %v4204
  %v4228 = vunpack.c.h.b16 %v4204
  %v4229 = vunpack.c.l.b16 %v4205
  %v4230 = vunpack.c.h.b16 %v4205
  %v4231 = vunpack.c.l.b16 %v4206
  %v4232 = vunpack.c.h.b16 %v4206
  %v4233 = vunpack.c.l.b16 %v4207
  %v4234 = vunpack.c.h.b16 %v4207
  %v4235 = vunpack.c.l.b16 %v4208
  %v4236 = vunpack.c.h.b16 %v4208
  %v4237 = vunpack.c.l.b16 %v4209
  %v4238 = vunpack.c.h.b16 %v4209
  %v4239 = vunpack.c.l.b16 %v4210
  %v4240 = vunpack.c.h.b16 %v4210
  %v4241 = vunpack.c.l.b16 %v4211
  %v4242 = vunpack.c.h.b16 %v4211
  %v4243 = vunpack.c.l.b16 %v4212
  %v4244 = vunpack.c.h.b16 %v4212
  %v4245 = vunpack.c.l.b16 %v4213
  %v4246 = vunpack.c.h.b16 %v4213
  %v4247 = vpack.c.b16 %v4227, %v4225
  %v4248 = vpack.c.b16 %v4228, %v4226
  %v4249 = vpack.c.b16 %v4231, %v4229
  %v4250 = vpack.c.b16 %v4232, %v4230
  %v4251 = vpack.c.b16 %v4235, %v4233
  %v4252 = vpack.c.b16 %v4236, %v4234
  %v4253 = vpack.c.b16 %v4239, %v4237
  %v4254 = vpack.c.b16 %v4240, %v4238
  %v4255 = vpack.c.b16 %v4243, %v4241
  %v4256 = vpack.c.b16 %v4244, %v4242
  %v4257 = vpack.c.b16 %v4245, %v4245
  %v4258 = vpack.c.b16 %v4246, %v4246
  %v4270 = vsel %vm3585, %v3505, 0
  %v4273 = vsel %vm3616, %v4257, 0
  %v4276 = vsel %vm3616, %v4258, 0
  %4278 = vmatprep.subr.bf16.mxu0 0
  %4279 = vmatpush1.bf16.msra.mxu0 0
  %4280 = vmatprep.subr.bf16.mxu0 0
  %4281 = vmatpush1.bf16.msra.mxu0 0
  %4282 = vmatprep.subr.bf16.mxu0 %v4276
  %4283 = vmatpush1.bf16.msra.mxu0 %v4273
  %4284 = vmatprep.subr.bf16.mxu0 %v4256
  %4285 = vmatpush1.bf16.msra.mxu0 %v4255
  %4286 = vmatprep.subr.bf16.mxu0 %v4254
  %4287 = vmatpush1.bf16.msra.mxu0 %v4253
  %4288 = vmatprep.subr.bf16.mxu0 %v4252
  %4289 = vmatpush1.bf16.msra.mxu0 %v4251
  %4290 = vmatprep.subr.bf16.mxu0 %v4250
  %4291 = vmatpush1.bf16.msra.mxu0 %v4249
  %4292 = vmatprep.subr.bf16.mxu0 %v4248
  %4293 = vmatpush1.bf16.msra.mxu0 %v4247
  %4294 = vmatprep.subr.bf16.mxu0 0
  %4295 = vmatpush2.bf16.msra.mxu0 0
  %4296 = vmatprep.subr.bf16.mxu0 0
  %4297 = vmatpush2.bf16.msra.mxu0 0
  %4298 = vmatprep.subr.bf16.mxu0 0
  %4299 = vmatpush2.bf16.msra.mxu0 0
  %4300 = vmatprep.subr.bf16.mxu0 0
  %4301 = vmatpush2.bf16.msra.mxu0 0
  %4302 = vmatprep.subr.bf16.mxu0 0
  %4303 = vmatpush2.bf16.msra.mxu0 0
  %4304 = vmatprep.subr.bf16.mxu0 0
  %4305 = vmatpush2.bf16.msra.mxu0 0
  %4306 = vmatprep.subr.bf16.mxu0 0
  %4307 = vmatpush2.bf16.msra.mxu0 0
  %4308 = vmatprep.subr.bf16.mxu0 0
  %4309 = vmatpush2.bf16.msra.mxu0 0
  %4310 = vmatprep.mubr.bf16.mxu0 0
  %4311 = vmatmul.mubr.bf16.gmra.mxu0 %v3593
  %v4312 = vpop.f32.mrf.mxu0
  %v4313 = vadd.f32 0.0, %v4312
  %v4314 = vpop.f32.mrf.mxu0
  %v4315 = vadd.f32 0.0, %v4314
  %v4316 = vpop.f32.mrf.mxu0
  %v4317 = vadd.f32 0.0, %v4316
  %v4318 = vpop.f32.mrf.mxu0
  %v4319 = vadd.f32 0.0, %v4318
  %4320 = vmatprep.mubr.bf16.mxu0 0
  %4321 = vmatmul.mubr.bf16.gmra.mxu0 %v3596
  %v4322 = vpop.f32.mrf.mxu0
  %v4323 = vadd.f32 0.0, %v4322
  %v4324 = vpop.f32.mrf.mxu0
  %v4325 = vadd.f32 0.0, %v4324
  %v4326 = vpop.f32.mrf.mxu0
  %v4327 = vadd.f32 0.0, %v4326
  %v4328 = vpop.f32.mrf.mxu0
  %v4329 = vadd.f32 0.0, %v4328
  %4330 = vmatprep.mubr.bf16.mxu0 0
  %4331 = vmatmul.mubr.bf16.gmra.mxu0 %v3599
  %v4332 = vpop.f32.mrf.mxu0
  %v4333 = vadd.f32 0.0, %v4332
  %v4334 = vpop.f32.mrf.mxu0
  %v4335 = vadd.f32 0.0, %v4334
  %v4336 = vpop.f32.mrf.mxu0
  %v4337 = vadd.f32 0.0, %v4336
  %v4338 = vpop.f32.mrf.mxu0
  %v4339 = vadd.f32 0.0, %v4338
  %4340 = vmatprep.mubr.bf16.mxu0 0
  %4341 = vmatmul.mubr.bf16.gmra.mxu0 %v3602
  %v4342 = vpop.f32.mrf.mxu0
  %v4343 = vadd.f32 0.0, %v4342
  %v4344 = vpop.f32.mrf.mxu0
  %v4345 = vadd.f32 0.0, %v4344
  %v4346 = vpop.f32.mrf.mxu0
  %v4347 = vadd.f32 0.0, %v4346
  %v4348 = vpop.f32.mrf.mxu0
  %v4349 = vadd.f32 0.0, %v4348
  %4350 = vmatprep.mubr.bf16.mxu0 0
  %4351 = vmatmul.mubr.bf16.gmra.mxu0 %v3605
  %v4352 = vpop.f32.mrf.mxu0
  %v4353 = vadd.f32 0.0, %v4352
  %v4354 = vpop.f32.mrf.mxu0
  %v4355 = vadd.f32 0.0, %v4354
  %v4356 = vpop.f32.mrf.mxu0
  %v4357 = vadd.f32 0.0, %v4356
  %v4358 = vpop.f32.mrf.mxu0
  %v4359 = vadd.f32 0.0, %v4358
  %4360 = vmatprep.mubr.bf16.mxu0 0
  %4361 = vmatmul.mubr.bf16.gmra.mxu0 %v3608
  %v4362 = vpop.f32.mrf.mxu0
  %v4363 = vadd.f32 0.0, %v4362
  %v4364 = vpop.f32.mrf.mxu0
  %v4365 = vadd.f32 0.0, %v4364
  %v4366 = vpop.f32.mrf.mxu0
  %v4367 = vadd.f32 0.0, %v4366
  %v4368 = vpop.f32.mrf.mxu0
  %v4369 = vadd.f32 0.0, %v4368
  %4370 = vmatprep.mubr.bf16.mxu0 0
  %4371 = vmatmul.mubr.bf16.gmra.mxu0 %v3611
  %v4372 = vpop.f32.mrf.mxu0
  %v4373 = vadd.f32 0.0, %v4372
  %v4374 = vpop.f32.mrf.mxu0
  %v4375 = vadd.f32 0.0, %v4374
  %v4376 = vpop.f32.mrf.mxu0
  %v4377 = vadd.f32 0.0, %v4376
  %v4378 = vpop.f32.mrf.mxu0
  %v4379 = vadd.f32 0.0, %v4378
  %4380 = vmatprep.mubr.bf16.mxu0 0
  %4381 = vmatmul.mubr.bf16.gmra.mxu0 %v3614
  %v4382 = vpop.f32.mrf.mxu0
  %v4383 = vadd.f32 0.0, %v4382
  %v4384 = vpop.f32.mrf.mxu0
  %v4385 = vadd.f32 0.0, %v4384
  %v4386 = vpop.f32.mrf.mxu0
  %v4387 = vadd.f32 0.0, %v4386
  %v4388 = vpop.f32.mrf.mxu0
  %v4389 = vadd.f32 0.0, %v4388
  %4390 = vmatprep.mubr.bf16.mxu0 0
  %4391 = vmatmul.mubr.bf16.gmra.mxu0 %v4021
  %v4392 = vpop.f32.mrf.mxu0
  %v4393 = vadd.f32 0.0, %v4392
  %v4394 = vpop.f32.mrf.mxu0
  %v4395 = vadd.f32 0.0, %v4394
  %v4396 = vpop.f32.mrf.mxu0
  %v4397 = vadd.f32 0.0, %v4396
  %v4398 = vpop.f32.mrf.mxu0
  %v4399 = vadd.f32 0.0, %v4398
  %4400 = vmatprep.mubr.bf16.mxu0 0
  %4401 = vmatmul.mubr.bf16.gmra.mxu0 %v4270
  %v4402 = vpop.f32.mrf.mxu0
  %v4403 = vadd.f32 0.0, %v4402
  %v4404 = vpop.f32.mrf.mxu0
  %v4405 = vadd.f32 0.0, %v4404
  %v4406 = vpop.f32.mrf.mxu0
  %v4407 = vadd.f32 0.0, %v4406
  %v4408 = vpop.f32.mrf.mxu0
  %v4409 = vadd.f32 0.0, %v4408
  %4410 = vdwg.mxu0
  %v4411 = vadd.f32 %v4162, %v4313
  %v4412 = vadd.f32 %v4163, %v4315
  %v4413 = vadd.f32 %v4164, %v4317
  %v4414 = vadd.f32 %v4165, %v4319
  %v4415 = vadd.f32 %v4166, %v4323
  %v4416 = vadd.f32 %v4167, %v4325
  %v4417 = vadd.f32 %v4168, %v4327
  %v4418 = vadd.f32 %v4169, %v4329
  %v4419 = vadd.f32 %v4170, %v4333
  %v4420 = vadd.f32 %v4171, %v4335
  %v4421 = vadd.f32 %v4172, %v4337
  %v4422 = vadd.f32 %v4173, %v4339
  %v4423 = vadd.f32 %v4174, %v4343
  %v4424 = vadd.f32 %v4175, %v4345
  %v4425 = vadd.f32 %v4176, %v4347
  %v4426 = vadd.f32 %v4177, %v4349
  %v4427 = vadd.f32 %v4178, %v4353
  %v4428 = vadd.f32 %v4179, %v4355
  %v4429 = vadd.f32 %v4180, %v4357
  %v4430 = vadd.f32 %v4181, %v4359
  %v4431 = vadd.f32 %v4182, %v4363
  %v4432 = vadd.f32 %v4183, %v4365
  %v4433 = vadd.f32 %v4184, %v4367
  %v4434 = vadd.f32 %v4185, %v4369
  %v4435 = vadd.f32 %v4186, %v4373
  %v4436 = vadd.f32 %v4187, %v4375
  %v4437 = vadd.f32 %v4188, %v4377
  %v4438 = vadd.f32 %v4189, %v4379
  %v4439 = vadd.f32 %v4190, %v4383
  %v4440 = vadd.f32 %v4191, %v4385
  %v4441 = vadd.f32 %v4192, %v4387
  %v4442 = vadd.f32 %v4193, %v4389
  %v4443 = vadd.f32 %v4194, %v4393
  %v4444 = vadd.f32 %v4195, %v4395
  %v4445 = vadd.f32 %v4196, %v4397
  %v4446 = vadd.f32 %v4197, %v4399
  %v4447 = vadd.f32 %v4198, %v4403
  %v4448 = vadd.f32 %v4199, %v4405
  %v4449 = vadd.f32 %v4200, %v4407
  %v4450 = vadd.f32 %v4201, %v4409
  %s4451 = scalar_lea.vmem %s5, 352
  %v4452 = vld [vmem:[%s4451] sm:$0xff]
  %v4453 = vld [vmem:[%s4451 + $0x8] sm:$0xff]
  %v4454 = vld [vmem:[%s4451 + $0x10] sm:$0xff]
  %v4455 = vld [vmem:[%s4451 + $0x18] sm:$0xff]
  %v4456 = vld [vmem:[%s4451 + $0x20] sm:$0xff]
  %v4457 = vld [vmem:[%s4451 + $0x28] sm:$0xff]
  %v4458 = vld [vmem:[%s4451 + $0x30] sm:$0xff]
  %v4459 = vld [vmem:[%s4451 + $0x38] sm:$0xff]
  %v4460 = vld [vmem:[%s4451 + $0x40] sm:$0xff]
  %v4461 = vld [vmem:[%s4451 + $0x48] sm:$0xff]
  %v4462 = vld [vmem:[%s4451 + $0x50] sm:$0x33]
  %v4474 = vunpack.c.l.b16 %v4452
  %v4475 = vunpack.c.h.b16 %v4452
  %v4476 = vunpack.c.l.b16 %v4453
  %v4477 = vunpack.c.h.b16 %v4453
  %v4478 = vunpack.c.l.b16 %v4454
  %v4479 = vunpack.c.h.b16 %v4454
  %v4480 = vunpack.c.l.b16 %v4455
  %v4481 = vunpack.c.h.b16 %v4455
  %v4482 = vunpack.c.l.b16 %v4456
  %v4483 = vunpack.c.h.b16 %v4456
  %v4484 = vunpack.c.l.b16 %v4457
  %v4485 = vunpack.c.h.b16 %v4457
  %v4486 = vunpack.c.l.b16 %v4458
  %v4487 = vunpack.c.h.b16 %v4458
  %v4488 = vunpack.c.l.b16 %v4459
  %v4489 = vunpack.c.h.b16 %v4459
  %v4490 = vunpack.c.l.b16 %v4460
  %v4491 = vunpack.c.h.b16 %v4460
  %v4492 = vunpack.c.l.b16 %v4461
  %v4493 = vunpack.c.h.b16 %v4461
  %v4494 = vunpack.c.l.b16 %v4462
  %v4495 = vunpack.c.h.b16 %v4462
  %v4496 = vpack.c.b16 %v4476, %v4474
  %v4497 = vpack.c.b16 %v4477, %v4475
  %v4498 = vpack.c.b16 %v4480, %v4478
  %v4499 = vpack.c.b16 %v4481, %v4479
  %v4500 = vpack.c.b16 %v4484, %v4482
  %v4501 = vpack.c.b16 %v4485, %v4483
  %v4502 = vpack.c.b16 %v4488, %v4486
  %v4503 = vpack.c.b16 %v4489, %v4487
  %v4504 = vpack.c.b16 %v4492, %v4490
  %v4505 = vpack.c.b16 %v4493, %v4491
  %v4506 = vpack.c.b16 %v4494, %v4494
  %v4507 = vpack.c.b16 %v4495, %v4495
  %v4519 = vsel %vm3585, %v3506, 0
  %v4522 = vsel %vm3616, %v4506, 0
  %v4525 = vsel %vm3616, %v4507, 0
  %4527 = vmatprep.subr.bf16.mxu0 0
  %4528 = vmatpush1.bf16.msra.mxu0 0
  %4529 = vmatprep.subr.bf16.mxu0 0
  %4530 = vmatpush1.bf16.msra.mxu0 0
  %4531 = vmatprep.subr.bf16.mxu0 %v4525
  %4532 = vmatpush1.bf16.msra.mxu0 %v4522
  %4533 = vmatprep.subr.bf16.mxu0 %v4505
  %4534 = vmatpush1.bf16.msra.mxu0 %v4504
  %4535 = vmatprep.subr.bf16.mxu0 %v4503
  %4536 = vmatpush1.bf16.msra.mxu0 %v4502
  %4537 = vmatprep.subr.bf16.mxu0 %v4501
  %4538 = vmatpush1.bf16.msra.mxu0 %v4500
  %4539 = vmatprep.subr.bf16.mxu0 %v4499
  %4540 = vmatpush1.bf16.msra.mxu0 %v4498
  %4541 = vmatprep.subr.bf16.mxu0 %v4497
  %4542 = vmatpush1.bf16.msra.mxu0 %v4496
  %4543 = vmatprep.subr.bf16.mxu0 0
  %4544 = vmatpush2.bf16.msra.mxu0 0
  %4545 = vmatprep.subr.bf16.mxu0 0
  %4546 = vmatpush2.bf16.msra.mxu0 0
  %4547 = vmatprep.subr.bf16.mxu0 0
  %4548 = vmatpush2.bf16.msra.mxu0 0
  %4549 = vmatprep.subr.bf16.mxu0 0
  %4550 = vmatpush2.bf16.msra.mxu0 0
  %4551 = vmatprep.subr.bf16.mxu0 0
  %4552 = vmatpush2.bf16.msra.mxu0 0
  %4553 = vmatprep.subr.bf16.mxu0 0
  %4554 = vmatpush2.bf16.msra.mxu0 0
  %4555 = vmatprep.subr.bf16.mxu0 0
  %4556 = vmatpush2.bf16.msra.mxu0 0
  %4557 = vmatprep.subr.bf16.mxu0 0
  %4558 = vmatpush2.bf16.msra.mxu0 0
  %4559 = vmatprep.mubr.bf16.mxu0 0
  %4560 = vmatmul.mubr.bf16.gmra.mxu0 %v3596
  %v4561 = vpop.f32.mrf.mxu0
  %v4562 = vadd.f32 0.0, %v4561
  %v4563 = vpop.f32.mrf.mxu0
  %v4564 = vadd.f32 0.0, %v4563
  %v4565 = vpop.f32.mrf.mxu0
  %v4566 = vadd.f32 0.0, %v4565
  %v4567 = vpop.f32.mrf.mxu0
  %v4568 = vadd.f32 0.0, %v4567
  %4569 = vmatprep.mubr.bf16.mxu0 0
  %4570 = vmatmul.mubr.bf16.gmra.mxu0 %v3599
  %v4571 = vpop.f32.mrf.mxu0
  %v4572 = vadd.f32 0.0, %v4571
  %v4573 = vpop.f32.mrf.mxu0
  %v4574 = vadd.f32 0.0, %v4573
  %v4575 = vpop.f32.mrf.mxu0
  %v4576 = vadd.f32 0.0, %v4575
  %v4577 = vpop.f32.mrf.mxu0
  %v4578 = vadd.f32 0.0, %v4577
  %4579 = vmatprep.mubr.bf16.mxu0 0
  %4580 = vmatmul.mubr.bf16.gmra.mxu0 %v3602
  %v4581 = vpop.f32.mrf.mxu0
  %v4582 = vadd.f32 0.0, %v4581
  %v4583 = vpop.f32.mrf.mxu0
  %v4584 = vadd.f32 0.0, %v4583
  %v4585 = vpop.f32.mrf.mxu0
  %v4586 = vadd.f32 0.0, %v4585
  %v4587 = vpop.f32.mrf.mxu0
  %v4588 = vadd.f32 0.0, %v4587
  %4589 = vmatprep.mubr.bf16.mxu0 0
  %4590 = vmatmul.mubr.bf16.gmra.mxu0 %v3605
  %v4591 = vpop.f32.mrf.mxu0
  %v4592 = vadd.f32 0.0, %v4591
  %v4593 = vpop.f32.mrf.mxu0
  %v4594 = vadd.f32 0.0, %v4593
  %v4595 = vpop.f32.mrf.mxu0
  %v4596 = vadd.f32 0.0, %v4595
  %v4597 = vpop.f32.mrf.mxu0
  %v4598 = vadd.f32 0.0, %v4597
  %4599 = vmatprep.mubr.bf16.mxu0 0
  %4600 = vmatmul.mubr.bf16.gmra.mxu0 %v3608
  %v4601 = vpop.f32.mrf.mxu0
  %v4602 = vadd.f32 0.0, %v4601
  %v4603 = vpop.f32.mrf.mxu0
  %v4604 = vadd.f32 0.0, %v4603
  %v4605 = vpop.f32.mrf.mxu0
  %v4606 = vadd.f32 0.0, %v4605
  %v4607 = vpop.f32.mrf.mxu0
  %v4608 = vadd.f32 0.0, %v4607
  %4609 = vmatprep.mubr.bf16.mxu0 0
  %4610 = vmatmul.mubr.bf16.gmra.mxu0 %v3611
  %v4611 = vpop.f32.mrf.mxu0
  %v4612 = vadd.f32 0.0, %v4611
  %v4613 = vpop.f32.mrf.mxu0
  %v4614 = vadd.f32 0.0, %v4613
  %v4615 = vpop.f32.mrf.mxu0
  %v4616 = vadd.f32 0.0, %v4615
  %v4617 = vpop.f32.mrf.mxu0
  %v4618 = vadd.f32 0.0, %v4617
  %4619 = vmatprep.mubr.bf16.mxu0 0
  %4620 = vmatmul.mubr.bf16.gmra.mxu0 %v3614
  %v4621 = vpop.f32.mrf.mxu0
  %v4622 = vadd.f32 0.0, %v4621
  %v4623 = vpop.f32.mrf.mxu0
  %v4624 = vadd.f32 0.0, %v4623
  %v4625 = vpop.f32.mrf.mxu0
  %v4626 = vadd.f32 0.0, %v4625
  %v4627 = vpop.f32.mrf.mxu0
  %v4628 = vadd.f32 0.0, %v4627
  %4629 = vmatprep.mubr.bf16.mxu0 0
  %4630 = vmatmul.mubr.bf16.gmra.mxu0 %v4021
  %v4631 = vpop.f32.mrf.mxu0
  %v4632 = vadd.f32 0.0, %v4631
  %v4633 = vpop.f32.mrf.mxu0
  %v4634 = vadd.f32 0.0, %v4633
  %v4635 = vpop.f32.mrf.mxu0
  %v4636 = vadd.f32 0.0, %v4635
  %v4637 = vpop.f32.mrf.mxu0
  %v4638 = vadd.f32 0.0, %v4637
  %4639 = vmatprep.mubr.bf16.mxu0 0
  %4640 = vmatmul.mubr.bf16.gmra.mxu0 %v4270
  %v4641 = vpop.f32.mrf.mxu0
  %v4642 = vadd.f32 0.0, %v4641
  %v4643 = vpop.f32.mrf.mxu0
  %v4644 = vadd.f32 0.0, %v4643
  %v4645 = vpop.f32.mrf.mxu0
  %v4646 = vadd.f32 0.0, %v4645
  %v4647 = vpop.f32.mrf.mxu0
  %v4648 = vadd.f32 0.0, %v4647
  %4649 = vmatprep.mubr.bf16.mxu0 0
  %4650 = vmatmul.mubr.bf16.gmra.mxu0 %v4519
  %v4651 = vpop.f32.mrf.mxu0
  %v4652 = vadd.f32 0.0, %v4651
  %v4653 = vpop.f32.mrf.mxu0
  %v4654 = vadd.f32 0.0, %v4653
  %v4655 = vpop.f32.mrf.mxu0
  %v4656 = vadd.f32 0.0, %v4655
  %v4657 = vpop.f32.mrf.mxu0
  %v4658 = vadd.f32 0.0, %v4657
  %4659 = vdwg.mxu0
  %v4660 = vadd.f32 %v4411, %v4562
  %v4661 = vadd.f32 %v4412, %v4564
  %v4662 = vadd.f32 %v4413, %v4566
  %v4663 = vadd.f32 %v4414, %v4568
  %v4664 = vadd.f32 %v4415, %v4572
  %v4665 = vadd.f32 %v4416, %v4574
  %v4666 = vadd.f32 %v4417, %v4576
  %v4667 = vadd.f32 %v4418, %v4578
  %v4668 = vadd.f32 %v4419, %v4582
  %v4669 = vadd.f32 %v4420, %v4584
  %v4670 = vadd.f32 %v4421, %v4586
  %v4671 = vadd.f32 %v4422, %v4588
  %v4672 = vadd.f32 %v4423, %v4592
  %v4673 = vadd.f32 %v4424, %v4594
  %v4674 = vadd.f32 %v4425, %v4596
  %v4675 = vadd.f32 %v4426, %v4598
  %v4676 = vadd.f32 %v4427, %v4602
  %v4677 = vadd.f32 %v4428, %v4604
  %v4678 = vadd.f32 %v4429, %v4606
  %v4679 = vadd.f32 %v4430, %v4608
  %v4680 = vadd.f32 %v4431, %v4612
  %v4681 = vadd.f32 %v4432, %v4614
  %v4682 = vadd.f32 %v4433, %v4616
  %v4683 = vadd.f32 %v4434, %v4618
  %v4684 = vadd.f32 %v4435, %v4622
  %v4685 = vadd.f32 %v4436, %v4624
  %v4686 = vadd.f32 %v4437, %v4626
  %v4687 = vadd.f32 %v4438, %v4628
  %v4688 = vadd.f32 %v4439, %v4632
  %v4689 = vadd.f32 %v4440, %v4634
  %v4690 = vadd.f32 %v4441, %v4636
  %v4691 = vadd.f32 %v4442, %v4638
  %v4692 = vadd.f32 %v4443, %v4642
  %v4693 = vadd.f32 %v4444, %v4644
  %v4694 = vadd.f32 %v4445, %v4646
  %v4695 = vadd.f32 %v4446, %v4648
  %v4696 = vadd.f32 %v4447, %v4652
  %v4697 = vadd.f32 %v4448, %v4654
  %v4698 = vadd.f32 %v4449, %v4656
  %v4699 = vadd.f32 %v4450, %v4658
  %v4700 = vld [vmem:[%s6] sm:$0x3]
  %v4702 = vlaneseq
  %v4703 = vshrl.u32 %v4702, 7
  %v4704 = vsub.s32 0, %v4703
  %v4705 = vrot.slane %v4700, %v4704
  %v4706 = vlaneseq
  %v4707 = vshrl.u32 %v4706, 7
  %v4708 = vsub.s32 1, %v4707
  %v4709 = vrot.slane %v4700, %v4708
  %v4712 = vadd.f32 %v4660, %v4705
  %v4713 = vadd.f32 %v4661, %v4709
  %v4714 = vadd.f32 %v4662, %v4705
  %v4715 = vadd.f32 %v4663, %v4709
  %v4716 = vadd.f32 %v4664, %v4705
  %v4717 = vadd.f32 %v4665, %v4709
  %v4718 = vadd.f32 %v4666, %v4705
  %v4719 = vadd.f32 %v4667, %v4709
  %v4720 = vadd.f32 %v4668, %v4705
  %v4721 = vadd.f32 %v4669, %v4709
  %v4722 = vadd.f32 %v4670, %v4705
  %v4723 = vadd.f32 %v4671, %v4709
  %v4724 = vadd.f32 %v4672, %v4705
  %v4725 = vadd.f32 %v4673, %v4709
  %v4726 = vadd.f32 %v4674, %v4705
  %v4727 = vadd.f32 %v4675, %v4709
  %v4728 = vadd.f32 %v4676, %v4705
  %v4729 = vadd.f32 %v4677, %v4709
  %v4730 = vadd.f32 %v4678, %v4705
  %v4731 = vadd.f32 %v4679, %v4709
  %v4732 = vadd.f32 %v4680, %v4705
  %v4733 = vadd.f32 %v4681, %v4709
  %v4734 = vadd.f32 %v4682, %v4705
  %v4735 = vadd.f32 %v4683, %v4709
  %v4736 = vadd.f32 %v4684, %v4705
  %v4737 = vadd.f32 %v4685, %v4709
  %v4738 = vadd.f32 %v4686, %v4705
  %v4739 = vadd.f32 %v4687, %v4709
  %v4740 = vadd.f32 %v4688, %v4705
  %v4741 = vadd.f32 %v4689, %v4709
  %v4742 = vadd.f32 %v4690, %v4705
  %v4743 = vadd.f32 %v4691, %v4709
  %v4744 = vadd.f32 %v4692, %v4705
  %v4745 = vadd.f32 %v4693, %v4709
  %v4746 = vadd.f32 %v4694, %v4705
  %v4747 = vadd.f32 %v4695, %v4709
  %v4748 = vadd.f32 %v4696, %v4705
  %v4749 = vadd.f32 %v4697, %v4709
  %v4750 = vadd.f32 %v4698, %v4705
  %v4751 = vadd.f32 %v4699, %v4709
  %v4752 = vmax.f32 %v4712, 0.0
  %v4753 = vmax.f32 %v4713, 0.0
  %v4754 = vmax.f32 %v4714, 0.0
  %v4755 = vmax.f32 %v4715, 0.0
  %v4756 = vmax.f32 %v4716, 0.0
  %v4757 = vmax.f32 %v4717, 0.0
  %v4758 = vmax.f32 %v4718, 0.0
  %v4759 = vmax.f32 %v4719, 0.0
  %v4760 = vmax.f32 %v4720, 0.0
  %v4761 = vmax.f32 %v4721, 0.0
  %v4762 = vmax.f32 %v4722, 0.0
  %v4763 = vmax.f32 %v4723, 0.0
  %v4764 = vmax.f32 %v4724, 0.0
  %v4765 = vmax.f32 %v4725, 0.0
  %v4766 = vmax.f32 %v4726, 0.0
  %v4767 = vmax.f32 %v4727, 0.0
  %v4768 = vmax.f32 %v4728, 0.0
  %v4769 = vmax.f32 %v4729, 0.0
  %v4770 = vmax.f32 %v4730, 0.0
  %v4771 = vmax.f32 %v4731, 0.0
  %v4772 = vmax.f32 %v4732, 0.0
  %v4773 = vmax.f32 %v4733, 0.0
  %v4774 = vmax.f32 %v4734, 0.0
  %v4775 = vmax.f32 %v4735, 0.0
  %v4776 = vmax.f32 %v4736, 0.0
  %v4777 = vmax.f32 %v4737, 0.0
  %v4778 = vmax.f32 %v4738, 0.0
  %v4779 = vmax.f32 %v4739, 0.0
  %v4780 = vmax.f32 %v4740, 0.0
  %v4781 = vmax.f32 %v4741, 0.0
  %v4782 = vmax.f32 %v4742, 0.0
  %v4783 = vmax.f32 %v4743, 0.0
  %v4784 = vmax.f32 %v4744, 0.0
  %v4785 = vmax.f32 %v4745, 0.0
  %v4786 = vmax.f32 %v4746, 0.0
  %v4787 = vmax.f32 %v4747, 0.0
  %v4788 = vmax.f32 %v4748, 0.0
  %v4789 = vmax.f32 %v4749, 0.0
  %v4790 = vmax.f32 %v4750, 0.0
  %v4791 = vmax.f32 %v4751, 0.0
  %v4792 = vmax.f32 %v4752, %v4756
  %v4793 = vmax.f32 %v4753, %v4757
  %v4794 = vmax.f32 %v4754, %v4758
  %v4795 = vmax.f32 %v4755, %v4759
  %v4796 = vmax.f32 %v4760, %v4764
  %v4797 = vmax.f32 %v4761, %v4765
  %v4798 = vmax.f32 %v4762, %v4766
  %v4799 = vmax.f32 %v4763, %v4767
  %v4800 = vmax.f32 %v4768, %v4772
  %v4801 = vmax.f32 %v4769, %v4773
  %v4802 = vmax.f32 %v4770, %v4774
  %v4803 = vmax.f32 %v4771, %v4775
  %v4804 = vmax.f32 %v4776, %v4780
  %v4805 = vmax.f32 %v4777, %v4781
  %v4806 = vmax.f32 %v4778, %v4782
  %v4807 = vmax.f32 %v4779, %v4783
  %v4808 = vmax.f32 %v4784, %v4788
  %v4809 = vmax.f32 %v4785, %v4789
  %v4810 = vmax.f32 %v4786, %v4790
  %v4811 = vmax.f32 %v4787, %v4791
  %v4812 = vpack.c.bf16 %v4794, %v4792
  %v4813 = vpack.c.bf16 %v4795, %v4793
  %v4814 = vpack.c.bf16 %v4798, %v4796
  %v4815 = vpack.c.bf16 %v4799, %v4797
  %v4816 = vpack.c.bf16 %v4802, %v4800
  %v4817 = vpack.c.bf16 %v4803, %v4801
  %v4818 = vpack.c.bf16 %v4806, %v4804
  %v4819 = vpack.c.bf16 %v4807, %v4805
  %v4820 = vpack.c.bf16 %v4810, %v4808
  %v4821 = vpack.c.bf16 %v4811, %v4809
  %v4822 = vld [vmem:[%s7] sm:$0xf]
  %v4823 = vld [vmem:[%s7 + $0x4] sm:$0xf]
  %v4824 = vld [vmem:[%s7 + $0x8] sm:$0xf]
  %v4825 = vld [vmem:[%s7 + $0xc] sm:$0xf]
  %v4826 = vld [vmem:[%s7 + $0x10] sm:$0xf]
  %v4827 = vld [vmem:[%s7 + $0x14] sm:$0xf]
  %v4828 = vld [vmem:[%s7 + $0x18] sm:$0xf]
  %v4829 = vld [vmem:[%s7 + $0x1c] sm:$0xf]
  %v4830 = vld [vmem:[%s7 + $0x20] sm:$0xf]
  %v4831 = vld [vmem:[%s7 + $0x24] sm:$0xf]
  %v4832 = vld [vmem:[%s7 + $0x28] sm:$0xf]
  %v4833 = vld [vmem:[%s7 + $0x2c] sm:$0xf]
  %v4834 = vld [vmem:[%s7 + $0x30] sm:$0xf]
  %v4835 = vld [vmem:[%s7 + $0x34] sm:$0xf]
  %v4836 = vld [vmem:[%s7 + $0x38] sm:$0xf]
  %v4837 = vld [vmem:[%s7 + $0x3c] sm:$0xf]
  %v4838 = vld [vmem:[%s7 + $0x40] sm:$0xf]
  %v4839 = vld [vmem:[%s7 + $0x44] sm:$0xf]
  %v4840 = vld [vmem:[%s7 + $0x48] sm:$0xf]
  %v4841 = vld [vmem:[%s7 + $0x4c] sm:$0xf]
  %v4862 = vunpack.c.l.b16 %v4822
  %v4863 = vunpack.c.l.b16 %v4823
  %v4864 = vunpack.c.l.b16 %v4824
  %v4865 = vunpack.c.l.b16 %v4825
  %v4866 = vunpack.c.l.b16 %v4826
  %v4867 = vunpack.c.l.b16 %v4827
  %v4868 = vunpack.c.l.b16 %v4828
  %v4869 = vunpack.c.l.b16 %v4829
  %v4870 = vunpack.c.l.b16 %v4830
  %v4871 = vunpack.c.l.b16 %v4831
  %v4872 = vunpack.c.l.b16 %v4832
  %v4873 = vunpack.c.l.b16 %v4833
  %v4874 = vunpack.c.l.b16 %v4834
  %v4875 = vunpack.c.l.b16 %v4835
  %v4876 = vunpack.c.l.b16 %v4836
  %v4877 = vunpack.c.l.b16 %v4837
  %v4878 = vunpack.c.l.b16 %v4838
  %v4879 = vunpack.c.l.b16 %v4839
  %v4880 = vunpack.c.l.b16 %v4840
  %v4881 = vunpack.c.l.b16 %v4841
  %v4882 = vpack.c.b16 %v4863, %v4862
  %v4883 = vpack.c.b16 %v4865, %v4864
  %v4884 = vpack.c.b16 %v4867, %v4866
  %v4885 = vpack.c.b16 %v4869, %v4868
  %v4886 = vpack.c.b16 %v4871, %v4870
  %v4887 = vpack.c.b16 %v4873, %v4872
  %v4888 = vpack.c.b16 %v4875, %v4874
  %v4889 = vpack.c.b16 %v4877, %v4876
  %v4890 = vpack.c.b16 %v4879, %v4878
  %v4891 = vpack.c.b16 %v4881, %v4880
  %vm4902 = vcmask 261120
  %v4904 = vsel %vm4902, %v4813, 0
  %v4907 = vsel %vm4902, %v4815, 0
  %v4910 = vsel %vm4902, %v4817, 0
  %v4913 = vsel %vm4902, %v4819, 0
  %v4916 = vsel %vm4902, %v4821, 0
  %4918 = vmatprep.subr.bf16.mxu0 0
  %4919 = vmatpush1.bf16.msra.mxu0 %v4889
  %4920 = vmatprep.subr.bf16.mxu0 0
  %4921 = vmatpush1.bf16.msra.mxu0 %v4888
  %4922 = vmatprep.subr.bf16.mxu0 0
  %4923 = vmatpush1.bf16.msra.mxu0 %v4887
  %4924 = vmatprep.subr.bf16.mxu0 0
  %4925 = vmatpush1.bf16.msra.mxu0 %v4886
  %4926 = vmatprep.subr.bf16.mxu0 0
  %4927 = vmatpush1.bf16.msra.mxu0 %v4885
  %4928 = vmatprep.subr.bf16.mxu0 0
  %4929 = vmatpush1.bf16.msra.mxu0 %v4884
  %4930 = vmatprep.subr.bf16.mxu0 0
  %4931 = vmatpush1.bf16.msra.mxu0 %v4883
  %4932 = vmatprep.subr.bf16.mxu0 0
  %4933 = vmatpush1.bf16.msra.mxu0 %v4882
  %4934 = vmatprep.subr.bf16.mxu0 0
  %4935 = vmatpush2.bf16.msra.mxu0 0
  %4936 = vmatprep.subr.bf16.mxu0 0
  %4937 = vmatpush2.bf16.msra.mxu0 0
  %4938 = vmatprep.subr.bf16.mxu0 0
  %4939 = vmatpush2.bf16.msra.mxu0 0
  %4940 = vmatprep.subr.bf16.mxu0 0
  %4941 = vmatpush2.bf16.msra.mxu0 0
  %4942 = vmatprep.subr.bf16.mxu0 0
  %4943 = vmatpush2.bf16.msra.mxu0 0
  %4944 = vmatprep.subr.bf16.mxu0 0
  %4945 = vmatpush2.bf16.msra.mxu0 0
  %4946 = vmatprep.subr.bf16.mxu0 0
  %4947 = vmatpush2.bf16.msra.mxu0 %v4891
  %4948 = vmatprep.subr.bf16.mxu0 0
  %4949 = vmatpush2.bf16.msra.mxu0 %v4890
  %4950 = vmatprep.mubr.bf16.mxu0 %v4904
  %4951 = vmatmul.mubr.bf16.gmra.mxu0 %v4812
  %v4952 = vpop.f32.mrf.mxu0
  %v4953 = vadd.f32 0.0, %v4952
  %v4954 = vpop.f32.mrf.mxu0
  %v4955 = vpop.f32.mrf.mxu0
  %v4956 = vadd.f32 0.0, %v4955
  %v4957 = vpop.f32.mrf.mxu0
  %4958 = vmatprep.mubr.bf16.mxu0 %v4907
  %4959 = vmatmul.mubr.bf16.gmra.mxu0 %v4814
  %v4960 = vpop.f32.mrf.mxu0
  %v4961 = vadd.f32 0.0, %v4960
  %v4962 = vpop.f32.mrf.mxu0
  %v4963 = vpop.f32.mrf.mxu0
  %v4964 = vadd.f32 0.0, %v4963
  %v4965 = vpop.f32.mrf.mxu0
  %4966 = vmatprep.mubr.bf16.mxu0 %v4910
  %4967 = vmatmul.mubr.bf16.gmra.mxu0 %v4816
  %v4968 = vpop.f32.mrf.mxu0
  %v4969 = vadd.f32 0.0, %v4968
  %v4970 = vpop.f32.mrf.mxu0
  %v4971 = vpop.f32.mrf.mxu0
  %v4972 = vadd.f32 0.0, %v4971
  %v4973 = vpop.f32.mrf.mxu0
  %4974 = vmatprep.mubr.bf16.mxu0 %v4913
  %4975 = vmatmul.mubr.bf16.gmra.mxu0 %v4818
  %v4976 = vpop.f32.mrf.mxu0
  %v4977 = vadd.f32 0.0, %v4976
  %v4978 = vpop.f32.mrf.mxu0
  %v4979 = vpop.f32.mrf.mxu0
  %v4980 = vadd.f32 0.0, %v4979
  %v4981 = vpop.f32.mrf.mxu0
  %4982 = vmatprep.mubr.bf16.mxu0 %v4916
  %4983 = vmatmul.mubr.bf16.gmra.mxu0 %v4820
  %v4984 = vpop.f32.mrf.mxu0
  %v4985 = vadd.f32 0.0, %v4984
  %v4986 = vpop.f32.mrf.mxu0
  %v4987 = vpop.f32.mrf.mxu0
  %v4988 = vadd.f32 0.0, %v4987
  %v4989 = vpop.f32.mrf.mxu0
  %4990 = vdwg.mxu0
  %v4991 = vld [vmem:[%s8] sm:$0xf]
  %v4992 = vld [vmem:[%s8 + $0x4] sm:$0xf]
  %v4993 = vld [vmem:[%s8 + $0x8] sm:$0xf]
  %v4994 = vld [vmem:[%s8 + $0xc] sm:$0xf]
  %v4995 = vld [vmem:[%s8 + $0x10] sm:$0xf]
  %v4996 = vld [vmem:[%s8 + $0x14] sm:$0xf]
  %v4997 = vld [vmem:[%s8 + $0x18] sm:$0xf]
  %v4998 = vld [vmem:[%s8 + $0x1c] sm:$0xf]
  %v4999 = vld [vmem:[%s8 + $0x20] sm:$0xf]
  %v5000 = vld [vmem:[%s8 + $0x24] sm:$0xf]
  %v5001 = vld [vmem:[%s8 + $0x28] sm:$0xf]
  %v5002 = vld [vmem:[%s8 + $0x2c] sm:$0xf]
  %v5003 = vld [vmem:[%s8 + $0x30] sm:$0xf]
  %v5004 = vld [vmem:[%s8 + $0x34] sm:$0xf]
  %v5005 = vld [vmem:[%s8 + $0x38] sm:$0xf]
  %v5006 = vld [vmem:[%s8 + $0x3c] sm:$0xf]
  %v5007 = vld [vmem:[%s8 + $0x40] sm:$0xf]
  %v5008 = vld [vmem:[%s8 + $0x44] sm:$0xf]
  %v5009 = vld [vmem:[%s8 + $0x48] sm:$0xf]
  %v5010 = vld [vmem:[%s8 + $0x4c] sm:$0xf]
  %v5031 = vunpack.c.l.b16 %v4991
  %v5032 = vunpack.c.l.b16 %v4992
  %v5033 = vunpack.c.l.b16 %v4993
  %v5034 = vunpack.c.l.b16 %v4994
  %v5035 = vunpack.c.l.b16 %v4995
  %v5036 = vunpack.c.l.b16 %v4996
  %v5037 = vunpack.c.l.b16 %v4997
  %v5038 = vunpack.c.l.b16 %v4998
  %v5039 = vunpack.c.l.b16 %v4999
  %v5040 = vunpack.c.l.b16 %v5000
  %v5041 = vunpack.c.l.b16 %v5001
  %v5042 = vunpack.c.l.b16 %v5002
  %v5043 = vunpack.c.l.b16 %v5003
  %v5044 = vunpack.c.l.b16 %v5004
  %v5045 = vunpack.c.l.b16 %v5005
  %v5046 = vunpack.c.l.b16 %v5006
  %v5047 = vunpack.c.l.b16 %v5007
  %v5048 = vunpack.c.l.b16 %v5008
  %v5049 = vunpack.c.l.b16 %v5009
  %v5050 = vunpack.c.l.b16 %v5010
  %v5051 = vpack.c.b16 %v5032, %v5031
  %v5052 = vpack.c.b16 %v5034, %v5033
  %v5053 = vpack.c.b16 %v5036, %v5035
  %v5054 = vpack.c.b16 %v5038, %v5037
  %v5055 = vpack.c.b16 %v5040, %v5039
  %v5056 = vpack.c.b16 %v5042, %v5041
  %v5057 = vpack.c.b16 %v5044, %v5043
  %v5058 = vpack.c.b16 %v5046, %v5045
  %v5059 = vpack.c.b16 %v5048, %v5047
  %v5060 = vpack.c.b16 %v5050, %v5049
  %5071 = vmatprep.subr.bf16.mxu0 0
  %5072 = vmatpush1.bf16.msra.mxu0 %v5058
  %5073 = vmatprep.subr.bf16.mxu0 0
  %5074 = vmatpush1.bf16.msra.mxu0 %v5057
  %5075 = vmatprep.subr.bf16.mxu0 0
  %5076 = vmatpush1.bf16.msra.mxu0 %v5056
  %5077 = vmatprep.subr.bf16.mxu0 0
  %5078 = vmatpush1.bf16.msra.mxu0 %v5055
  %5079 = vmatprep.subr.bf16.mxu0 0
  %5080 = vmatpush1.bf16.msra.mxu0 %v5054
  %5081 = vmatprep.subr.bf16.mxu0 0
  %5082 = vmatpush1.bf16.msra.mxu0 %v5053
  %5083 = vmatprep.subr.bf16.mxu0 0
  %5084 = vmatpush1.bf16.msra.mxu0 %v5052
  %5085 = vmatprep.subr.bf16.mxu0 0
  %5086 = vmatpush1.bf16.msra.mxu0 %v5051
  %5087 = vmatprep.subr.bf16.mxu0 0
  %5088 = vmatpush2.bf16.msra.mxu0 0
  %5089 = vmatprep.subr.bf16.mxu0 0
  %5090 = vmatpush2.bf16.msra.mxu0 0
  %5091 = vmatprep.subr.bf16.mxu0 0
  %5092 = vmatpush2.bf16.msra.mxu0 0
  %5093 = vmatprep.subr.bf16.mxu0 0
  %5094 = vmatpush2.bf16.msra.mxu0 0
  %5095 = vmatprep.subr.bf16.mxu0 0
  %5096 = vmatpush2.bf16.msra.mxu0 0
  %5097 = vmatprep.subr.bf16.mxu0 0
  %5098 = vmatpush2.bf16.msra.mxu0 0
  %5099 = vmatprep.subr.bf16.mxu0 0
  %5100 = vmatpush2.bf16.msra.mxu0 %v5060
  %5101 = vmatprep.subr.bf16.mxu0 0
  %5102 = vmatpush2.bf16.msra.mxu0 %v5059
  %5103 = vmatprep.mubr.bf16.mxu0 %v4904
  %5104 = vmatmul.mubr.bf16.gmra.mxu0 %v4812
  %v5105 = vpop.f32.mrf.mxu0
  %v5106 = vadd.f32 0.0, %v5105
  %v5107 = vpop.f32.mrf.mxu0
  %v5108 = vpop.f32.mrf.mxu0
  %v5109 = vadd.f32 0.0, %v5108
  %v5110 = vpop.f32.mrf.mxu0
  %5111 = vmatprep.mubr.bf16.mxu0 %v4907
  %5112 = vmatmul.mubr.bf16.gmra.mxu0 %v4814
  %v5113 = vpop.f32.mrf.mxu0
  %v5114 = vadd.f32 0.0, %v5113
  %v5115 = vpop.f32.mrf.mxu0
  %v5116 = vpop.f32.mrf.mxu0
  %v5117 = vadd.f32 0.0, %v5116
  %v5118 = vpop.f32.mrf.mxu0
  %5119 = vmatprep.mubr.bf16.mxu0 %v4910
  %5120 = vmatmul.mubr.bf16.gmra.mxu0 %v4816
  %v5121 = vpop.f32.mrf.mxu0
  %v5122 = vadd.f32 0.0, %v5121
  %v5123 = vpop.f32.mrf.mxu0
  %v5124 = vpop.f32.mrf.mxu0
  %v5125 = vadd.f32 0.0, %v5124
  %v5126 = vpop.f32.mrf.mxu0
  %5127 = vmatprep.mubr.bf16.mxu0 %v4913
  %5128 = vmatmul.mubr.bf16.gmra.mxu0 %v4818
  %v5129 = vpop.f32.mrf.mxu0
  %v5130 = vadd.f32 0.0, %v5129
  %v5131 = vpop.f32.mrf.mxu0
  %v5132 = vpop.f32.mrf.mxu0
  %v5133 = vadd.f32 0.0, %v5132
  %v5134 = vpop.f32.mrf.mxu0
  %5135 = vmatprep.mubr.bf16.mxu0 %v4916
  %5136 = vmatmul.mubr.bf16.gmra.mxu0 %v4820
  %v5137 = vpop.f32.mrf.mxu0
  %v5138 = vadd.f32 0.0, %v5137
  %v5139 = vpop.f32.mrf.mxu0
  %v5140 = vpop.f32.mrf.mxu0
  %v5141 = vadd.f32 0.0, %v5140
  %v5142 = vpop.f32.mrf.mxu0
  %5143 = vdwg.mxu0
  %v5144 = vmax.f32 %v4953, %v5106
  %v5145 = vmax.f32 %v4956, %v5109
  %v5146 = vmax.f32 %v4961, %v5114
  %v5147 = vmax.f32 %v4964, %v5117
  %v5148 = vmax.f32 %v4969, %v5122
  %v5149 = vmax.f32 %v4972, %v5125
  %v5150 = vmax.f32 %v4977, %v5130
  %v5151 = vmax.f32 %v4980, %v5133
  %v5152 = vmax.f32 %v4985, %v5138
  %v5153 = vmax.f32 %v4988, %v5141
  %v5154 = vpack.c.bf16 %v5145, %v5144
  %v5155 = vpack.c.bf16 %v5147, %v5146
  %v5156 = vpack.c.bf16 %v5149, %v5148
  %v5157 = vpack.c.bf16 %v5151, %v5150
  %v5158 = vpack.c.bf16 %v5153, %v5152
  %v5159 = vld [vmem:[%s9] sm:$0xf]
  %v5160 = vld [vmem:[%s9 + $0x4] sm:$0xf]
  %v5161 = vld [vmem:[%s9 + $0x8] sm:$0xf]
  %v5162 = vld [vmem:[%s9 + $0xc] sm:$0xf]
  %v5163 = vld [vmem:[%s9 + $0x10] sm:$0xf]
  %v5164 = vld [vmem:[%s9 + $0x14] sm:$0xf]
  %v5165 = vld [vmem:[%s9 + $0x18] sm:$0xf]
  %v5166 = vld [vmem:[%s9 + $0x1c] sm:$0xf]
  %v5167 = vld [vmem:[%s9 + $0x20] sm:$0xf]
  %v5168 = vld [vmem:[%s9 + $0x24] sm:$0xf]
  %s5169 = scalar_lea.vmem %s9, 40
  %v5170 = vld [vmem:[%s5169] sm:$0xf]
  %v5171 = vld [vmem:[%s5169 + $0x4] sm:$0xf]
  %v5172 = vld [vmem:[%s5169 + $0x8] sm:$0xf]
  %v5173 = vld [vmem:[%s5169 + $0xc] sm:$0xf]
  %v5174 = vld [vmem:[%s5169 + $0x10] sm:$0xf]
  %v5175 = vld [vmem:[%s5169 + $0x14] sm:$0xf]
  %v5176 = vld [vmem:[%s5169 + $0x18] sm:$0xf]
  %v5177 = vld [vmem:[%s5169 + $0x1c] sm:$0xf]
  %v5178 = vld [vmem:[%s5169 + $0x20] sm:$0xf]
  %v5179 = vld [vmem:[%s5169 + $0x24] sm:$0xf]
  %v5190 = vunpack.c.l.b16 %v5170
  %v5191 = vunpack.c.l.b16 %v5171
  %v5192 = vunpack.c.l.b16 %v5172
  %v5193 = vunpack.c.l.b16 %v5173
  %v5194 = vunpack.c.l.b16 %v5174
  %v5195 = vunpack.c.l.b16 %v5175
  %v5196 = vunpack.c.l.b16 %v5176
  %v5197 = vunpack.c.l.b16 %v5177
  %v5198 = vunpack.c.l.b16 %v5178
  %v5199 = vunpack.c.l.b16 %v5179
  %v5200 = vpack.c.b16 %v5191, %v5190
  %v5201 = vpack.c.b16 %v5193, %v5192
  %v5202 = vpack.c.b16 %v5195, %v5194
  %v5203 = vpack.c.b16 %v5197, %v5196
  %v5204 = vpack.c.b16 %v5199, %v5198
  %vm5210 = vcmask 654336
  %v5212 = vsel %vm5210, %v5155, 0
  %5214 = vmatprep.subr.bf16.mxu0 0
  %5215 = vmatpush1.bf16.msra.mxu0 0
  %5216 = vmatprep.subr.bf16.mxu0 0
  %5217 = vmatpush1.bf16.msra.mxu0 0
  %5218 = vmatprep.subr.bf16.mxu0 0
  %5219 = vmatpush1.bf16.msra.mxu0 0
  %5220 = vmatprep.subr.bf16.mxu0 0
  %5221 = vmatpush1.bf16.msra.mxu0 %v5204
  %5222 = vmatprep.subr.bf16.mxu0 0
  %5223 = vmatpush1.bf16.msra.mxu0 %v5203
  %5224 = vmatprep.subr.bf16.mxu0 0
  %5225 = vmatpush1.bf16.msra.mxu0 %v5202
  %5226 = vmatprep.subr.bf16.mxu0 0
  %5227 = vmatpush1.bf16.msra.mxu0 %v5201
  %5228 = vmatprep.subr.bf16.mxu0 0
  %5229 = vmatpush1.bf16.msra.mxu0 %v5200
  %5230 = vmatprep.subr.bf16.mxu0 0
  %5231 = vmatpush2.bf16.msra.mxu0 0
  %5232 = vmatprep.subr.bf16.mxu0 0
  %5233 = vmatpush2.bf16.msra.mxu0 0
  %5234 = vmatprep.subr.bf16.mxu0 0
  %5235 = vmatpush2.bf16.msra.mxu0 0
  %5236 = vmatprep.subr.bf16.mxu0 0
  %5237 = vmatpush2.bf16.msra.mxu0 0
  %5238 = vmatprep.subr.bf16.mxu0 0
  %5239 = vmatpush2.bf16.msra.mxu0 0
  %5240 = vmatprep.subr.bf16.mxu0 0
  %5241 = vmatpush2.bf16.msra.mxu0 0
  %5242 = vmatprep.subr.bf16.mxu0 0
  %5243 = vmatpush2.bf16.msra.mxu0 0
  %5244 = vmatprep.subr.bf16.mxu0 0
  %5245 = vmatpush2.bf16.msra.mxu0 0
  %5246 = vmatprep.mubr.bf16.mxu0 0
  %5247 = vmatmul.mubr.bf16.gmra.mxu0 %v5212
  %v5248 = vpop.f32.mrf.mxu0
  %v5249 = vadd.f32 0.0, %v5248
  %v5250 = vpop.f32.mrf.mxu0
  %v5251 = vpop.f32.mrf.mxu0
  %v5252 = vadd.f32 0.0, %v5251
  %v5253 = vpop.f32.mrf.mxu0
  %5254 = vdwg.mxu0
  %v5265 = vunpack.c.l.b16 %v5159
  %v5266 = vunpack.c.l.b16 %v5160
  %v5267 = vunpack.c.l.b16 %v5161
  %v5268 = vunpack.c.l.b16 %v5162
  %v5269 = vunpack.c.l.b16 %v5163
  %v5270 = vunpack.c.l.b16 %v5164
  %v5271 = vunpack.c.l.b16 %v5165
  %v5272 = vunpack.c.l.b16 %v5166
  %v5273 = vunpack.c.l.b16 %v5167
  %v5274 = vunpack.c.l.b16 %v5168
  %v5275 = vpack.c.b16 %v5266, %v5265
  %v5276 = vpack.c.b16 %v5268, %v5267
  %v5277 = vpack.c.b16 %v5270, %v5269
  %v5278 = vpack.c.b16 %v5272, %v5271
  %v5279 = vpack.c.b16 %v5274, %v5273
  %v5286 = vsel %vm5210, %v5154, 0
  %5288 = vmatprep.subr.bf16.mxu0 0
  %5289 = vmatpush1.bf16.msra.mxu0 0
  %5290 = vmatprep.subr.bf16.mxu0 0
  %5291 = vmatpush1.bf16.msra.mxu0 0
  %5292 = vmatprep.subr.bf16.mxu0 0
  %5293 = vmatpush1.bf16.msra.mxu0 0
  %5294 = vmatprep.subr.bf16.mxu0 0
  %5295 = vmatpush1.bf16.msra.mxu0 %v5279
  %5296 = vmatprep.subr.bf16.mxu0 0
  %5297 = vmatpush1.bf16.msra.mxu0 %v5278
  %5298 = vmatprep.subr.bf16.mxu0 0
  %5299 = vmatpush1.bf16.msra.mxu0 %v5277
  %5300 = vmatprep.subr.bf16.mxu0 0
  %5301 = vmatpush1.bf16.msra.mxu0 %v5276
  %5302 = vmatprep.subr.bf16.mxu0 0
  %5303 = vmatpush1.bf16.msra.mxu0 %v5275
  %5304 = vmatprep.subr.bf16.mxu0 0
  %5305 = vmatpush2.bf16.msra.mxu0 0
  %5306 = vmatprep.subr.bf16.mxu0 0
  %5307 = vmatpush2.bf16.msra.mxu0 0
  %5308 = vmatprep.subr.bf16.mxu0 0
  %5309 = vmatpush2.bf16.msra.mxu0 0
  %5310 = vmatprep.subr.bf16.mxu0 0
  %5311 = vmatpush2.bf16.msra.mxu0 0
  %5312 = vmatprep.subr.bf16.mxu0 0
  %5313 = vmatpush2.bf16.msra.mxu0 0
  %5314 = vmatprep.subr.bf16.mxu0 0
  %5315 = vmatpush2.bf16.msra.mxu0 0
  %5316 = vmatprep.subr.bf16.mxu0 0
  %5317 = vmatpush2.bf16.msra.mxu0 0
  %5318 = vmatprep.subr.bf16.mxu0 0
  %5319 = vmatpush2.bf16.msra.mxu0 0
  %5320 = vmatprep.mubr.bf16.mxu0 0
  %5321 = vmatmul.mubr.bf16.gmra.mxu0 %v5286
  %v5322 = vpop.f32.mrf.mxu0
  %v5323 = vadd.f32 %v5249, %v5322
  %v5324 = vpop.f32.mrf.mxu0
  %v5325 = vpop.f32.mrf.mxu0
  %v5326 = vadd.f32 %v5252, %v5325
  %v5327 = vpop.f32.mrf.mxu0
  %5328 = vdwg.mxu0
  %s5329 = scalar_lea.vmem %s9, 80
  %v5330 = vld [vmem:[%s5329] sm:$0xf]
  %v5331 = vld [vmem:[%s5329 + $0x4] sm:$0xf]
  %v5332 = vld [vmem:[%s5329 + $0x8] sm:$0xf]
  %v5333 = vld [vmem:[%s5329 + $0xc] sm:$0xf]
  %v5334 = vld [vmem:[%s5329 + $0x10] sm:$0xf]
  %v5335 = vld [vmem:[%s5329 + $0x14] sm:$0xf]
  %v5336 = vld [vmem:[%s5329 + $0x18] sm:$0xf]
  %v5337 = vld [vmem:[%s5329 + $0x1c] sm:$0xf]
  %v5338 = vld [vmem:[%s5329 + $0x20] sm:$0xf]
  %v5339 = vld [vmem:[%s5329 + $0x24] sm:$0xf]
  %v5350 = vunpack.c.l.b16 %v5330
  %v5351 = vunpack.c.l.b16 %v5331
  %v5352 = vunpack.c.l.b16 %v5332
  %v5353 = vunpack.c.l.b16 %v5333
  %v5354 = vunpack.c.l.b16 %v5334
  %v5355 = vunpack.c.l.b16 %v5335
  %v5356 = vunpack.c.l.b16 %v5336
  %v5357 = vunpack.c.l.b16 %v5337
  %v5358 = vunpack.c.l.b16 %v5338
  %v5359 = vunpack.c.l.b16 %v5339
  %v5360 = vpack.c.b16 %v5351, %v5350
  %v5361 = vpack.c.b16 %v5353, %v5352
  %v5362 = vpack.c.b16 %v5355, %v5354
  %v5363 = vpack.c.b16 %v5357, %v5356
  %v5364 = vpack.c.b16 %v5359, %v5358
  %v5371 = vsel %vm5210, %v5156, 0
  %5373 = vmatprep.subr.bf16.mxu0 0
  %5374 = vmatpush1.bf16.msra.mxu0 0
  %5375 = vmatprep.subr.bf16.mxu0 0
  %5376 = vmatpush1.bf16.msra.mxu0 0
  %5377 = vmatprep.subr.bf16.mxu0 0
  %5378 = vmatpush1.bf16.msra.mxu0 0
  %5379 = vmatprep.subr.bf16.mxu0 0
  %5380 = vmatpush1.bf16.msra.mxu0 %v5364
  %5381 = vmatprep.subr.bf16.mxu0 0
  %5382 = vmatpush1.bf16.msra.mxu0 %v5363
  %5383 = vmatprep.subr.bf16.mxu0 0
  %5384 = vmatpush1.bf16.msra.mxu0 %v5362
  %5385 = vmatprep.subr.bf16.mxu0 0
  %5386 = vmatpush1.bf16.msra.mxu0 %v5361
  %5387 = vmatprep.subr.bf16.mxu0 0
  %5388 = vmatpush1.bf16.msra.mxu0 %v5360
  %5389 = vmatprep.subr.bf16.mxu0 0
  %5390 = vmatpush2.bf16.msra.mxu0 0
  %5391 = vmatprep.subr.bf16.mxu0 0
  %5392 = vmatpush2.bf16.msra.mxu0 0
  %5393 = vmatprep.subr.bf16.mxu0 0
  %5394 = vmatpush2.bf16.msra.mxu0 0
  %5395 = vmatprep.subr.bf16.mxu0 0
  %5396 = vmatpush2.bf16.msra.mxu0 0
  %5397 = vmatprep.subr.bf16.mxu0 0
  %5398 = vmatpush2.bf16.msra.mxu0 0
  %5399 = vmatprep.subr.bf16.mxu0 0
  %5400 = vmatpush2.bf16.msra.mxu0 0
  %5401 = vmatprep.subr.bf16.mxu0 0
  %5402 = vmatpush2.bf16.msra.mxu0 0
  %5403 = vmatprep.subr.bf16.mxu0 0
  %5404 = vmatpush2.bf16.msra.mxu0 0
  %5405 = vmatprep.mubr.bf16.mxu0 0
  %5406 = vmatmul.mubr.bf16.gmra.mxu0 %v5371
  %v5407 = vpop.f32.mrf.mxu0
  %v5408 = vadd.f32 0.0, %v5407
  %v5409 = vpop.f32.mrf.mxu0
  %v5410 = vpop.f32.mrf.mxu0
  %v5411 = vadd.f32 0.0, %v5410
  %v5412 = vpop.f32.mrf.mxu0
  %5413 = vdwg.mxu0
  %v5414 = vadd.f32 %v5323, %v5408
  %v5415 = vadd.f32 %v5326, %v5411
  %s5416 = scalar_lea.vmem %s9, 120
  %v5417 = vld [vmem:[%s5416] sm:$0xf]
  %v5418 = vld [vmem:[%s5416 + $0x4] sm:$0xf]
  %v5419 = vld [vmem:[%s5416 + $0x8] sm:$0xf]
  %v5420 = vld [vmem:[%s5416 + $0xc] sm:$0xf]
  %v5421 = vld [vmem:[%s5416 + $0x10] sm:$0xf]
  %v5422 = vld [vmem:[%s5416 + $0x14] sm:$0xf]
  %v5423 = vld [vmem:[%s5416 + $0x18] sm:$0xf]
  %v5424 = vld [vmem:[%s5416 + $0x1c] sm:$0xf]
  %v5425 = vld [vmem:[%s5416 + $0x20] sm:$0xf]
  %v5426 = vld [vmem:[%s5416 + $0x24] sm:$0xf]
  %v5437 = vunpack.c.l.b16 %v5417
  %v5438 = vunpack.c.l.b16 %v5418
  %v5439 = vunpack.c.l.b16 %v5419
  %v5440 = vunpack.c.l.b16 %v5420
  %v5441 = vunpack.c.l.b16 %v5421
  %v5442 = vunpack.c.l.b16 %v5422
  %v5443 = vunpack.c.l.b16 %v5423
  %v5444 = vunpack.c.l.b16 %v5424
  %v5445 = vunpack.c.l.b16 %v5425
  %v5446 = vunpack.c.l.b16 %v5426
  %v5447 = vpack.c.b16 %v5438, %v5437
  %v5448 = vpack.c.b16 %v5440, %v5439
  %v5449 = vpack.c.b16 %v5442, %v5441
  %v5450 = vpack.c.b16 %v5444, %v5443
  %v5451 = vpack.c.b16 %v5446, %v5445
  %v5458 = vsel %vm5210, %v5157, 0
  %5460 = vmatprep.subr.bf16.mxu0 0
  %5461 = vmatpush1.bf16.msra.mxu0 0
  %5462 = vmatprep.subr.bf16.mxu0 0
  %5463 = vmatpush1.bf16.msra.mxu0 0
  %5464 = vmatprep.subr.bf16.mxu0 0
  %5465 = vmatpush1.bf16.msra.mxu0 0
  %5466 = vmatprep.subr.bf16.mxu0 0
  %5467 = vmatpush1.bf16.msra.mxu0 %v5451
  %5468 = vmatprep.subr.bf16.mxu0 0
  %5469 = vmatpush1.bf16.msra.mxu0 %v5450
  %5470 = vmatprep.subr.bf16.mxu0 0
  %5471 = vmatpush1.bf16.msra.mxu0 %v5449
  %5472 = vmatprep.subr.bf16.mxu0 0
  %5473 = vmatpush1.bf16.msra.mxu0 %v5448
  %5474 = vmatprep.subr.bf16.mxu0 0
  %5475 = vmatpush1.bf16.msra.mxu0 %v5447
  %5476 = vmatprep.subr.bf16.mxu0 0
  %5477 = vmatpush2.bf16.msra.mxu0 0
  %5478 = vmatprep.subr.bf16.mxu0 0
  %5479 = vmatpush2.bf16.msra.mxu0 0
  %5480 = vmatprep.subr.bf16.mxu0 0
  %5481 = vmatpush2.bf16.msra.mxu0 0
  %5482 = vmatprep.subr.bf16.mxu0 0
  %5483 = vmatpush2.bf16.msra.mxu0 0
  %5484 = vmatprep.subr.bf16.mxu0 0
  %5485 = vmatpush2.bf16.msra.mxu0 0
  %5486 = vmatprep.subr.bf16.mxu0 0
  %5487 = vmatpush2.bf16.msra.mxu0 0
  %5488 = vmatprep.subr.bf16.mxu0 0
  %5489 = vmatpush2.bf16.msra.mxu0 0
  %5490 = vmatprep.subr.bf16.mxu0 0
  %5491 = vmatpush2.bf16.msra.mxu0 0
  %5492 = vmatprep.mubr.bf16.mxu0 0
  %5493 = vmatmul.mubr.bf16.gmra.mxu0 %v5458
  %v5494 = vpop.f32.mrf.mxu0
  %v5495 = vadd.f32 0.0, %v5494
  %v5496 = vpop.f32.mrf.mxu0
  %v5497 = vpop.f32.mrf.mxu0
  %v5498 = vadd.f32 0.0, %v5497
  %v5499 = vpop.f32.mrf.mxu0
  %5500 = vdwg.mxu0
  %v5501 = vadd.f32 %v5414, %v5495
  %v5502 = vadd.f32 %v5415, %v5498
  %s5503 = scalar_lea.vmem %s9, 160
  %v5504 = vld [vmem:[%s5503] sm:$0xf]
  %v5505 = vld [vmem:[%s5503 + $0x4] sm:$0xf]
  %v5506 = vld [vmem:[%s5503 + $0x8] sm:$0xf]
  %v5507 = vld [vmem:[%s5503 + $0xc] sm:$0xf]
  %v5508 = vld [vmem:[%s5503 + $0x10] sm:$0xf]
  %v5509 = vld [vmem:[%s5503 + $0x14] sm:$0xf]
  %v5510 = vld [vmem:[%s5503 + $0x18] sm:$0xf]
  %v5511 = vld [vmem:[%s5503 + $0x1c] sm:$0xf]
  %v5512 = vld [vmem:[%s5503 + $0x20] sm:$0xf]
  %v5513 = vld [vmem:[%s5503 + $0x24] sm:$0xf]
  %v5524 = vunpack.c.l.b16 %v5504
  %v5525 = vunpack.c.l.b16 %v5505
  %v5526 = vunpack.c.l.b16 %v5506
  %v5527 = vunpack.c.l.b16 %v5507
  %v5528 = vunpack.c.l.b16 %v5508
  %v5529 = vunpack.c.l.b16 %v5509
  %v5530 = vunpack.c.l.b16 %v5510
  %v5531 = vunpack.c.l.b16 %v5511
  %v5532 = vunpack.c.l.b16 %v5512
  %v5533 = vunpack.c.l.b16 %v5513
  %v5534 = vpack.c.b16 %v5525, %v5524
  %v5535 = vpack.c.b16 %v5527, %v5526
  %v5536 = vpack.c.b16 %v5529, %v5528
  %v5537 = vpack.c.b16 %v5531, %v5530
  %v5538 = vpack.c.b16 %v5533, %v5532
  %v5545 = vsel %vm5210, %v5158, 0
  %5547 = vmatprep.subr.bf16.mxu0 0
  %5548 = vmatpush1.bf16.msra.mxu0 0
  %5549 = vmatprep.subr.bf16.mxu0 0
  %5550 = vmatpush1.bf16.msra.mxu0 0
  %5551 = vmatprep.subr.bf16.mxu0 0
  %5552 = vmatpush1.bf16.msra.mxu0 0
  %5553 = vmatprep.subr.bf16.mxu0 0
  %5554 = vmatpush1.bf16.msra.mxu0 %v5538
  %5555 = vmatprep.subr.bf16.mxu0 0
  %5556 = vmatpush1.bf16.msra.mxu0 %v5537
  %5557 = vmatprep.subr.bf16.mxu0 0
  %5558 = vmatpush1.bf16.msra.mxu0 %v5536
  %5559 = vmatprep.subr.bf16.mxu0 0
  %5560 = vmatpush1.bf16.msra.mxu0 %v5535
  %5561 = vmatprep.subr.bf16.mxu0 0
  %5562 = vmatpush1.bf16.msra.mxu0 %v5534
  %5563 = vmatprep.subr.bf16.mxu0 0
  %5564 = vmatpush2.bf16.msra.mxu0 0
  %5565 = vmatprep.subr.bf16.mxu0 0
  %5566 = vmatpush2.bf16.msra.mxu0 0
  %5567 = vmatprep.subr.bf16.mxu0 0
  %5568 = vmatpush2.bf16.msra.mxu0 0
  %5569 = vmatprep.subr.bf16.mxu0 0
  %5570 = vmatpush2.bf16.msra.mxu0 0
  %5571 = vmatprep.subr.bf16.mxu0 0
  %5572 = vmatpush2.bf16.msra.mxu0 0
  %5573 = vmatprep.subr.bf16.mxu0 0
  %5574 = vmatpush2.bf16.msra.mxu0 0
  %5575 = vmatprep.subr.bf16.mxu0 0
  %5576 = vmatpush2.bf16.msra.mxu0 0
  %5577 = vmatprep.subr.bf16.mxu0 0
  %5578 = vmatpush2.bf16.msra.mxu0 0
  %5579 = vmatprep.mubr.bf16.mxu0 0
  %5580 = vmatmul.mubr.bf16.gmra.mxu0 %v5545
  %v5581 = vpop.f32.mrf.mxu0
  %v5582 = vadd.f32 0.0, %v5581
  %v5583 = vpop.f32.mrf.mxu0
  %v5584 = vpop.f32.mrf.mxu0
  %v5585 = vadd.f32 0.0, %v5584
  %v5586 = vpop.f32.mrf.mxu0
  %5587 = vdwg.mxu0
  %v5588 = vadd.f32 %v5501, %v5582
  %v5589 = vadd.f32 %v5502, %v5585
  %v5590 = vld [vmem:[%s10] sm:$0x1]
  %v5592 = vlaneseq
  %v5593 = vshrl.u32 %v5592, 7
  %v5594 = vsub.s32 0, %v5593
  %v5595 = vrot.slane %v5590, %v5594
  %v5597 = vadd.f32 %v5588, %v5595
  %v5598 = vadd.f32 %v5589, %v5595
  %v5599 = vmax.f32 %v5597, 0.0
  %v5600 = vmax.f32 %v5598, 0.0
  %v5601 = vpack.c.bf16 %v5600, %v5599
  %v5602 = vld [vmem:[%s11] sm:$0xf]
  %v5603 = vld [vmem:[%s11 + $0x4] sm:$0xf]
  %v5604 = vld [vmem:[%s11 + $0x8] sm:$0xf]
  %v5605 = vld [vmem:[%s11 + $0xc] sm:$0xf]
  %v5606 = vld [vmem:[%s11 + $0x10] sm:$0xf]
  %v5607 = vld [vmem:[%s11 + $0x14] sm:$0xf]
  %v5608 = vld [vmem:[%s11 + $0x18] sm:$0xf]
  %v5609 = vld [vmem:[%s11 + $0x1c] sm:$0xf]
  %v5610 = vld [vmem:[%s11 + $0x20] sm:$0xf]
  %v5611 = vld [vmem:[%s11 + $0x24] sm:$0xf]
  %v5612 = vld [vmem:[%s11 + $0x28] sm:$0xf]
  %v5613 = vld [vmem:[%s11 + $0x2c] sm:$0xf]
  %v5614 = vld [vmem:[%s11 + $0x30] sm:$0xf]
  %v5615 = vld [vmem:[%s11 + $0x34] sm:$0xf]
  %v5616 = vld [vmem:[%s11 + $0x38] sm:$0xf]
  %v5617 = vld [vmem:[%s12] sm:$0x1]
  %v5619 = vlaneseq
  %v5620 = vshrl.u32 %v5619, 7
  %v5621 = vsub.s32 0, %v5620
  %v5622 = vrot.slane %v5617, %v5621
  %v5639 = vunpack.c.l.b16 %v5602
  %v5640 = vunpack.c.l.b16 %v5603
  %v5641 = vunpack.c.l.b16 %v5604
  %v5642 = vunpack.c.l.b16 %v5605
  %v5643 = vunpack.c.l.b16 %v5606
  %v5644 = vunpack.c.l.b16 %v5607
  %v5645 = vunpack.c.l.b16 %v5608
  %v5646 = vunpack.c.l.b16 %v5609
  %v5647 = vunpack.c.l.b16 %v5610
  %v5648 = vunpack.c.l.b16 %v5611
  %v5649 = vunpack.c.l.b16 %v5612
  %v5650 = vunpack.c.l.b16 %v5613
  %v5651 = vunpack.c.l.b16 %v5614
  %v5652 = vunpack.c.l.b16 %v5615
  %v5653 = vunpack.c.l.b16 %v5616
  %v5654 = vpack.c.b16 %v5640, %v5639
  %v5655 = vpack.c.b16 %v5642, %v5641
  %v5656 = vpack.c.b16 %v5644, %v5643
  %v5657 = vpack.c.b16 %v5646, %v5645
  %v5658 = vpack.c.b16 %v5648, %v5647
  %v5659 = vpack.c.b16 %v5650, %v5649
  %v5660 = vpack.c.b16 %v5652, %v5651
  %v5661 = vpack.c.b16 %v5653, %v5653
  %vm5669 = vcmask 982016
  %v5671 = vsel %vm5669, %v5601, 0
  %v5674 = vsel %vm3084, %v5661, 0
  %5676 = vmatprep.subr.bf16.mxu0 0
  %5677 = vmatpush1.bf16.msra.mxu0 %v5674
  %5678 = vmatprep.subr.bf16.mxu0 0
  %5679 = vmatpush1.bf16.msra.mxu0 %v5660
  %5680 = vmatprep.subr.bf16.mxu0 0
  %5681 = vmatpush1.bf16.msra.mxu0 %v5659
  %5682 = vmatprep.subr.bf16.mxu0 0
  %5683 = vmatpush1.bf16.msra.mxu0 %v5658
  %5684 = vmatprep.subr.bf16.mxu0 0
  %5685 = vmatpush1.bf16.msra.mxu0 %v5657
  %5686 = vmatprep.subr.bf16.mxu0 0
  %5687 = vmatpush1.bf16.msra.mxu0 %v5656
  %5688 = vmatprep.subr.bf16.mxu0 0
  %5689 = vmatpush1.bf16.msra.mxu0 %v5655
  %5690 = vmatprep.subr.bf16.mxu0 0
  %5691 = vmatpush1.bf16.msra.mxu0 %v5654
  %5692 = vmatprep.subr.bf16.mxu0 0
  %5693 = vmatpush2.bf16.msra.mxu0 0
  %5694 = vmatprep.subr.bf16.mxu0 0
  %5695 = vmatpush2.bf16.msra.mxu0 0
  %5696 = vmatprep.subr.bf16.mxu0 0
  %5697 = vmatpush2.bf16.msra.mxu0 0
  %5698 = vmatprep.subr.bf16.mxu0 0
  %5699 = vmatpush2.bf16.msra.mxu0 0
  %5700 = vmatprep.subr.bf16.mxu0 0
  %5701 = vmatpush2.bf16.msra.mxu0 0
  %5702 = vmatprep.subr.bf16.mxu0 0
  %5703 = vmatpush2.bf16.msra.mxu0 0
  %5704 = vmatprep.subr.bf16.mxu0 0
  %5705 = vmatpush2.bf16.msra.mxu0 0
  %5706 = vmatprep.subr.bf16.mxu0 0
  %5707 = vmatpush2.bf16.msra.mxu0 0
  %5708 = vmatprep.mubr.bf16.mxu0 0
  %5709 = vmatmul.mubr.bf16.gmra.mxu0 %v5671
  %v5710 = vpop.f32.mrf.mxu0
  %v5711 = vadd.f32 %v5622, %v5710
  %v5712 = vpop.f32.mrf.mxu0
  %v5713 = vpop.f32.mrf.mxu0
  %v5714 = vadd.f32 %v5622, %v5713
  %v5715 = vpop.f32.mrf.mxu0
  %5716 = vdwg.mxu0
  %v5717 = vmax.f32 %v5711, 0.0
  %v5718 = vmax.f32 %v5714, 0.0
  %v5719 = vpack.c.bf16 %v5718, %v5717
  %v5720 = vld [vmem:[%s13] sm:$0xf]
  %v5721 = vld [vmem:[%s13 + $0x4] sm:$0xf]
  %v5722 = vld [vmem:[%s13 + $0x8] sm:$0xf]
  %v5723 = vld [vmem:[%s13 + $0xc] sm:$0xf]
  %v5724 = vld [vmem:[%s13 + $0x10] sm:$0xf]
  %v5725 = vld [vmem:[%s13 + $0x14] sm:$0xf]
  %v5726 = vld [vmem:[%s13 + $0x18] sm:$0xf]
  %v5727 = vld [vmem:[%s13 + $0x1c] sm:$0xf]
  %v5728 = vld [vmem:[%s13 + $0x20] sm:$0xf]
  %v5729 = vld [vmem:[%s13 + $0x24] sm:$0xf]
  %v5730 = vld [vmem:[%s13 + $0x28] sm:$0x3]
  %v5731 = vld [vmem:[%s14] sm:$0x1]
  %v5733 = vlaneseq
  %v5734 = vshrl.u32 %v5733, 7
  %v5735 = vsub.s32 0, %v5734
  %v5736 = vrot.slane %v5731, %v5735
  %v5749 = vunpack.c.l.b16 %v5720
  %v5750 = vunpack.c.l.b16 %v5721
  %v5751 = vunpack.c.l.b16 %v5722
  %v5752 = vunpack.c.l.b16 %v5723
  %v5753 = vunpack.c.l.b16 %v5724
  %v5754 = vunpack.c.l.b16 %v5725
  %v5755 = vunpack.c.l.b16 %v5726
  %v5756 = vunpack.c.l.b16 %v5727
  %v5757 = vunpack.c.l.b16 %v5728
  %v5758 = vunpack.c.l.b16 %v5729
  %v5759 = vunpack.c.l.b16 %v5730
  %v5760 = vpack.c.b16 %v5750, %v5749
  %v5761 = vpack.c.b16 %v5752, %v5751
  %v5762 = vpack.c.b16 %v5754, %v5753
  %v5763 = vpack.c.b16 %v5756, %v5755
  %v5764 = vpack.c.b16 %v5758, %v5757
  %v5765 = vpack.c.b16 %v5759, %v5759
  %v5772 = vsel %vm3585, %v5719, 0
  %v5775 = vsel %vm3616, %v5765, 0
  %5777 = vmatprep.subr.bf16.mxu0 0
  %5778 = vmatpush1.bf16.msra.mxu0 0
  %5779 = vmatprep.subr.bf16.mxu0 0
  %5780 = vmatpush1.bf16.msra.mxu0 0
  %5781 = vmatprep.subr.bf16.mxu0 0
  %5782 = vmatpush1.bf16.msra.mxu0 %v5775
  %5783 = vmatprep.subr.bf16.mxu0 0
  %5784 = vmatpush1.bf16.msra.mxu0 %v5764
  %5785 = vmatprep.subr.bf16.mxu0 0
  %5786 = vmatpush1.bf16.msra.mxu0 %v5763
  %5787 = vmatprep.subr.bf16.mxu0 0
  %5788 = vmatpush1.bf16.msra.mxu0 %v5762
  %5789 = vmatprep.subr.bf16.mxu0 0
  %5790 = vmatpush1.bf16.msra.mxu0 %v5761
  %5791 = vmatprep.subr.bf16.mxu0 0
  %5792 = vmatpush1.bf16.msra.mxu0 %v5760
  %5793 = vmatprep.subr.bf16.mxu0 0
  %5794 = vmatpush2.bf16.msra.mxu0 0
  %5795 = vmatprep.subr.bf16.mxu0 0
  %5796 = vmatpush2.bf16.msra.mxu0 0
  %5797 = vmatprep.subr.bf16.mxu0 0
  %5798 = vmatpush2.bf16.msra.mxu0 0
  %5799 = vmatprep.subr.bf16.mxu0 0
  %5800 = vmatpush2.bf16.msra.mxu0 0
  %5801 = vmatprep.subr.bf16.mxu0 0
  %5802 = vmatpush2.bf16.msra.mxu0 0
  %5803 = vmatprep.subr.bf16.mxu0 0
  %5804 = vmatpush2.bf16.msra.mxu0 0
  %5805 = vmatprep.subr.bf16.mxu0 0
  %5806 = vmatpush2.bf16.msra.mxu0 0
  %5807 = vmatprep.subr.bf16.mxu0 0
  %5808 = vmatpush2.bf16.msra.mxu0 0
  %5809 = vmatprep.mubr.bf16.mxu0 0
  %5810 = vmatmul.mubr.bf16.gmra.mxu0 %v5772
  %v5811 = vpop.f32.mrf.mxu0
  %v5812 = vadd.f32 %v5736, %v5811
  %v5813 = vpop.f32.mrf.mxu0
  %v5814 = vpop.f32.mrf.mxu0
  %v5815 = vadd.f32 %v5736, %v5814
  %v5816 = vpop.f32.mrf.mxu0
  %5817 = vdwg.mxu0
  %5818 = vst [vmem:[%s15] sm:$0xff] %v5812
  %5819 = vst [vmem:[%s15 + $0x8] sm:$0xff] %v5815
  // Predicated region
  $region62: #{net_forward.1} parent=0 // pred_check
    _
  $region63: #{net_forward.1} parent=0 // pred_check_branch
    %5821 = sbr.rel (0) target = $region65
  $region64: #{net_forward.1} parent=0 // pred_region
    _
  $region65: #{net_forward.1} parent=0 // pred_fallthru
    _
  // Predicated region
  $region66: #{net_forward.1} parent=0 // pred_check
    _
  $region67: #{net_forward.1} parent=0 // pred_check_branch
    %5823 = sbr.rel (0) target = $region69
  $region68: #{net_forward.1} parent=0 // pred_region
    _
  $region69: #{net_forward.1} parent=0 // pred_fallthru
    _

</llo_original>
